<compile_context>
chip_gen: v7x
topology: tpu7x:2x2x1
jax: 0.10.0
libtpu: 0.0.40
codegen_flags: <defaults>
</compile_context>

<pallas_src>
import functools

import numpy as np
import jax
import jax.numpy as jnp
from jax.experimental import pallas as pl
from jax.experimental.pallas import tpu as pltpu


def _round_up(x, m):
    return ((x + m - 1) // m) * m


# ----------------------------------------------------------------------------
# Pallas kernel: one (batch, group, time-tile) block of
#   y = W_g @ im2col(x_g) + b_g   (+ optional LeakyReLU), f32 accumulation.
# ----------------------------------------------------------------------------
def _conv1d_mxu_kernel(x_ref, h_ref, w_ref, b_ref, o32_ref, obf_ref, *,
                       K, stride, tile_t, neg_slope, apply_act):
    # x_ref: (1, S, Cpg, TILE_T)  phase-decomposed per-group input tile (bf16):
    #        x_ref[0, r, c, j] == x_padded[b, g*Cpg + c, (t0 + j) * stride + r]
    # h_ref: (1, S, Cpg, Qh)      halo columns just past this tile (bf16)
    # w_ref: (1, Cout_g, K*Cpg)   per-group folded weight, col = k*Cpg + c (bf16)
    # b_ref: (1, Cout_g, 1)       per-group bias (f32)
    # o32_ref: (1, Cout_g, TILE_T) f32 feature-map tile (lane-dense stores)
    # obf_ref: (1, Cout_g, TILE_T) bf16 copy feeding the next layer
    S = x_ref.shape[1]

    # Per-residue time rows with the halo appended on the lane axis.
    rows = [jnp.concatenate([x_ref[0, r], h_ref[0, r]], axis=-1)
            for r in range(S)]                              # each (Cpg, TILE_T + Qh)

    # im2col: fold the K taps into the MXU contraction -> one matmul per tile.
    pieces = []
    for k in range(K):                                      # short static loop
        q, r = k // stride, k % stride
        pieces.append(rows[r][:, q:q + tile_t])             # (Cpg, TILE_T)
    slab = pieces[0] if K == 1 else jnp.concatenate(pieces, axis=0)  # (K*Cpg, TILE_T)

    acc = jnp.dot(w_ref[0], slab,
                  preferred_element_type=jnp.float32)       # (Cout_g, TILE_T) f32
    acc = acc + b_ref[0]                                    # (Cout_g, 1) broadcast
    if apply_act:                                           # LeakyReLU(neg_slope)
        acc = jnp.where(acc >= 0.0, acc, jnp.float32(neg_slope) * acc)
    o32_ref[0] = acc.astype(o32_ref.dtype)
    obf_ref[0] = acc.astype(obf_ref.dtype)


# ----------------------------------------------------------------------------
# Wrapper: pad + per-group channel pad + phase-decompose (layout glue), then a
# gridded pallas_call over (batch, group, output-time tiles).
# ----------------------------------------------------------------------------
def conv1d_layer(x_bct, w_mxu, bias_g, *, K, stride, padding, groups, pad_mode,
                 apply_act, neg_slope=0.2, max_tile_t=512):
    """x_bct: (B, Cin, T) NCW (any float dtype).
    w_mxu: (G, Cout_g, K*Cpg) bf16.  bias_g: (G, Cout_g, 1) f32.
    Returns (y_f32, y_bf16), each (B, Cout, T_out) NCW."""
    B, Cin, T = x_bct.shape
    G, cout_g, KCpg = w_mxu.shape
    assert G == groups
    Cout = G * cout_g
    cin_g = Cin // G
    Cpg = _round_up(cin_g, 8)                 # sublane-aligned per-group channels
    assert KCpg == K * Cpg
    S = stride

    # bf16 matmul inputs (accumulation stays f32 in the kernel); cast first so
    # all the layout glue below moves half-width data.
    x = x_bct.astype(jnp.bfloat16)

    # --- time padding (reflect / zero) --------------------------------------
    if pad_mode == "reflect":
        x_p = jnp.pad(x, ((0, 0), (0, 0), (padding, padding)), mode="reflect")
    else:
        x_p = jnp.pad(x, ((0, 0), (0, 0), (padding, padding)))
    T_pad = T + 2 * padding
    T_out = (T_pad - K) // stride + 1

    # --- tiling (lane-dense output tiles, multiple of 128) -------------------
    tile_t = min(max_tile_t, _round_up(T_out, 128))
    n_tiles = pl.cdiv(T_out, tile_t)
    q_max = (K - 1) // stride                 # phase-time halo needed by the taps
    q_h = max(q_max, 1)
    t_q = max(n_tiles * tile_t + q_h, -(-T_pad // stride))

    # per-group channel pad to Cpg, then time tail pad for the phase decomposition
    x_p = x_p.reshape(B, G, cin_g, T_pad)
    x_p = jnp.pad(x_p, ((0, 0), (0, 0), (0, Cpg - cin_g), (0, 0)))
    x_p = x_p.reshape(B, G * Cpg, T_pad)
    x_p = jnp.pad(x_p, ((0, 0), (0, 0), (0, stride * t_q - T_pad)))
    # phase decomposition: x_ph[b, r, c, j] = x_padded[b, c, j*stride + r]
    x_ph = x_p.reshape(B, G * Cpg, t_q, stride).transpose(0, 3, 1, 2)  # (B,S,G*Cpg,Tq)
    x_main = x_ph[..., :n_tiles * tile_t]                              # (B,S,G*Cpg,nT*tile)
    halo = jnp.stack([x_ph[..., (i + 1) * tile_t:(i + 1) * tile_t + q_h]
                      for i in range(n_tiles)], axis=1)
    x_halo = halo.reshape(B * n_tiles, S, G * Cpg, q_h)                # (B*nT,S,G*Cpg,Qh)

    kern = functools.partial(_conv1d_mxu_kernel, K=K, stride=stride,
                             tile_t=tile_t, neg_slope=neg_slope,
                             apply_act=apply_act)

    flops = 2 * B * G * n_tiles * tile_t * cout_g * (K * Cpg)
    bytes_accessed = ((x_main.size + x_halo.size + w_mxu.size) * 2
                      + bias_g.size * 4 + B * Cout * n_tiles * tile_t * 6)

    out32, outbf = pl.pallas_call(
        kern,
        out_shape=(jax.ShapeDtypeStruct((B, Cout, n_tiles * tile_t), jnp.float32),
                   jax.ShapeDtypeStruct((B, Cout, n_tiles * tile_t), jnp.bfloat16)),
        grid=(B, G, n_tiles),                 # time tiles innermost -> weights resident
        in_specs=[
            pl.BlockSpec((1, S, Cpg, tile_t), lambda b, g, i: (b, 0, g, i)),
            pl.BlockSpec((1, S, Cpg, q_h),
                         lambda b, g, i, nt=n_tiles: (b * nt + i, 0, g, 0)),
            pl.BlockSpec((1, cout_g, K * Cpg), lambda b, g, i: (g, 0, 0)),
            pl.BlockSpec((1, cout_g, 1), lambda b, g, i: (g, 0, 0)),
        ],
        out_specs=[pl.BlockSpec((1, cout_g, tile_t), lambda b, g, i: (b, g, i)),
                   pl.BlockSpec((1, cout_g, tile_t), lambda b, g, i: (b, g, i))],
        compiler_params=pltpu.CompilerParams(
            dimension_semantics=("parallel", "parallel", "parallel"),
            vmem_limit_bytes=32 * 1024 * 1024),
        cost_estimate=pl.CostEstimate(flops=int(flops), transcendentals=0,
                                      bytes_accessed=int(bytes_accessed)),
    )(x_main, x_halo, w_mxu, bias_g)

    return out32[:, :, :T_out], outbf[:, :, :T_out]


# ----------------------------------------------------------------------------
# Model configuration (mirrors ScaleDiscriminator.__init__, small hyperparams)
# ----------------------------------------------------------------------------
def build_config(in_channels=1, out_channels=1, kernel_sizes=(5, 3), filters=4,
                 max_filters=32, downsample_scales=(2, 2)):
    layers = []
    k0 = int(np.prod(kernel_sizes))
    # first conv: ReflectionPad1d((prod(ks)-1)//2) + Conv1d(in, filters, prod(ks))
    layers.append(dict(cin=in_channels, cout=filters, K=k0, stride=1,
                       padding=(k0 - 1) // 2, groups=1, pad_mode="reflect"))
    in_chs = filters
    for ds in downsample_scales:
        out_chs = min(in_chs * ds, max_filters)
        K = ds * 10 + 1
        layers.append(dict(cin=in_chs, cout=out_chs, K=K, stride=ds,
                           padding=(K - 1) // 2, groups=max(in_chs // 4, 1),
                           pad_mode="zero"))
        in_chs = out_chs
    out_chs = min(in_chs * 2, max_filters)
    layers.append(dict(cin=in_chs, cout=out_chs, K=kernel_sizes[0], stride=1,
                       padding=(kernel_sizes[0] - 1) // 2, groups=1,
                       pad_mode="zero"))
    post = dict(cin=out_chs, cout=out_channels, K=kernel_sizes[1], stride=1,
                padding=(kernel_sizes[1] - 1) // 2, groups=1, pad_mode="zero")
    return layers, post


def make_norm_conv_params(key, cfg):
    """Deterministic weight_norm-parameterised Conv1d params (effective weight)."""
    # TODO(synk): weight_norm's (v, g) split only matters for training; the forward
    # uses the folded effective weight, which is what we build here.
    cout, cin, K, groups = cfg["cout"], cfg["cin"], cfg["K"], cfg["groups"]
    kv, kg, kb = jax.random.split(key, 3)
    v = jax.random.normal(kv, (cout, cin // groups, K), jnp.float32) * 0.2
    g = jax.random.uniform(kg, (cout,), jnp.float32, minval=0.5, maxval=1.5)
    norm = jnp.sqrt(jnp.sum(v * v, axis=(1, 2), keepdims=True))
    w = g[:, None, None] * v / norm          # (Cout, Cin/groups, K), PyTorch layout
    b = jax.random.normal(kb, (cout,), jnp.float32) * 0.1

    # Per-group MXU weight (G, Cout_g, K*Cpg): column index = k*Cpg + c_local,
    # per-group input channels zero-padded to a multiple of 8; bf16 matmul inputs.
    cin_g, cout_g = cin // groups, cout // groups
    cpg = _round_up(cin_g, 8)
    w_g = w.reshape(groups, cout_g, cin_g, K)
    w_g = jnp.pad(w_g, ((0, 0), (0, 0), (0, cpg - cin_g), (0, 0)))
    w_mxu = jnp.transpose(w_g, (0, 1, 3, 2)).reshape(
        groups, cout_g, K * cpg).astype(jnp.bfloat16)
    b_g = b.reshape(groups, cout_g, 1).astype(jnp.float32)
    return dict(w=w, b=b, w_mxu=w_mxu, b_g=b_g)


# ----------------------------------------------------------------------------
# Full forward pass (Pallas) and pure-JAX references
# ----------------------------------------------------------------------------
def scale_discriminator_forward(x_ncw, params, layers_cfg, post_cfg):
    x = x_ncw                                 # stays NCW throughout (no transposes)
    fmap = []
    for cfg, p in zip(layers_cfg, params["convs"]):
        y32, ybf = conv1d_layer(x, p["w_mxu"], p["b_g"], K=cfg["K"],
                                stride=cfg["stride"], padding=cfg["padding"],
                                groups=cfg["groups"], pad_mode=cfg["pad_mode"],
                                apply_act=True, neg_slope=0.2)
        fmap.append(y32)                      # f32 fmap, NCW like PyTorch
        x = ybf                               # bf16 carry into next layer (no XLA cast)
    p = params["post"]
    y32, _ = conv1d_layer(x, p["w_mxu"], p["b_g"], K=post_cfg["K"],
                          stride=post_cfg["stride"], padding=post_cfg["padding"],
                          groups=post_cfg["groups"], pad_mode=post_cfg["pad_mode"],
                          apply_act=False)
    fmap.append(y32)
    return y32, fmap


def _ref_conv1d(x_ncw, w, b, *, stride, padding, groups, pad_mode, matmul_dtype=None):
    if pad_mode == "reflect":
        x_ncw = jnp.pad(x_ncw, ((0, 0), (0, 0), (padding, padding)), mode="reflect")
        pad_cfg = [(0, 0)]
    else:
        pad_cfg = [(padding, padding)]
    if matmul_dtype is not None:
        x_ncw = x_ncw.astype(matmul_dtype)
        w = w.astype(matmul_dtype)
    y = jax.lax.conv_general_dilated(
        x_ncw, w, window_strides=(stride,), padding=pad_cfg,
        feature_group_count=groups, dimension_numbers=("NCH", "OIH", "NCH"),
        preferred_element_type=jnp.float32,
        precision=jax.lax.Precision.HIGHEST)
    return y + b[None, :, None]


def reference_forward(x_ncw, params, layers_cfg, post_cfg, matmul_dtype=None):
    x = x_ncw
    fmap = []
    for cfg, p in zip(layers_cfg, params["convs"]):
        x = _ref_conv1d(x, p["w"], p["b"], stride=cfg["stride"],
                        padding=cfg["padding"], groups=cfg["groups"],
                        pad_mode=cfg["pad_mode"], matmul_dtype=matmul_dtype)
        x = jnp.where(x >= 0.0, x, 0.2 * x)   # LeakyReLU(0.2)
        fmap.append(x)
    p = params["post"]
    x = _ref_conv1d(x, p["w"], p["b"], stride=post_cfg["stride"],
                    padding=post_cfg["padding"], groups=post_cfg["groups"],
                    pad_mode=post_cfg["pad_mode"], matmul_dtype=matmul_dtype)
    fmap.append(x)
    return x, fmap


# ----------------------------------------------------------------------------
if __name__ == "__main__":
    # Small, module-consistent hyperparameters: in_channels=1, out_channels=1,
    # kernel_sizes=[5, 3], filters=4, max_filters=32, downsample_scales=[2, 2]
    # -> 4 convs (reflect pad + strided grouped convs) + conv_post.
    layers_cfg, post_cfg = build_config()

    key = jax.random.PRNGKey(0)
    keys = jax.random.split(key, len(layers_cfg) + 2)
    params = {
        "convs": [make_norm_conv_params(keys[i], cfg)
                  for i, cfg in enumerate(layers_cfg)],
        "post": make_norm_conv_params(keys[len(layers_cfg)], post_cfg),
    }

    # input waveform: NCW = (batch=2, channels=1, T=64)
    x = jax.random.normal(keys[-1], (2, 1, 64), jnp.float32)

    fwd = jax.jit(lambda xx, pp: scale_discriminator_forward(xx, pp,
                                                             layers_cfg, post_cfg))
    out, fmap = fwd(x, params)
    out = jax.block_until_ready(out)
    fmap = [jax.block_until_ready(f) for f in fmap]

    # 1) Tight check against a lax.conv reference with the SAME numerics
    #    (bf16 matmul inputs / inter-layer carry, f32 accumulation).
    ref_out, ref_fmap = reference_forward(x, params, layers_cfg, post_cfg,
                                          matmul_dtype=jnp.bfloat16)
    np.testing.assert_allclose(np.asarray(out), np.asarray(ref_out),
                               rtol=5e-3, atol=5e-3)
    assert len(fmap) == len(ref_fmap) == len(layers_cfg) + 1
    for got, want in zip(fmap, ref_fmap):
        assert got.shape == want.shape
        np.testing.assert_allclose(np.asarray(got), np.asarray(want),
                                   rtol=5e-3, atol=5e-3)

    # 2) Looser sanity check against the full-f32 reference (module semantics);
    #    the slack only reflects the intentional bf16 cast of the matmul inputs.
    f32_out, f32_fmap = reference_forward(x, params, layers_cfg, post_cfg)
    np.testing.assert_allclose(np.asarray(out), np.asarray(f32_out),
                               rtol=1e-1, atol=1e-1)
    for got, want in zip(fmap, f32_fmap):
        np.testing.assert_allclose(np.asarray(got), np.asarray(want),
                                   rtol=1e-1, atol=1e-1)

    print("KERNEL_OK")
</pallas_src>

<mosaic_0001>
module attributes {stable_mosaic.version = 11 : i64} {
  func.func @_conv1d_mxu_kernel(%arg0: i32, %arg1: i32, %arg2: i32, %arg3: memref<1x2x8x128xbf16, #tpu.memory_space<vmem>>, %arg4: memref<1x2x8x10xbf16, #tpu.memory_space<vmem>>, %arg5: memref<1x8x168xbf16, #tpu.memory_space<vmem>>, %arg6: memref<1x8x1xf32, #tpu.memory_space<vmem>>, %arg7: memref<1x8x128xf32, #tpu.memory_space<vmem>>, %arg8: memref<1x8x128xbf16, #tpu.memory_space<vmem>>) attributes {dimension_semantics = [#tpu.dimension_semantics<parallel>, #tpu.dimension_semantics<parallel>, #tpu.dimension_semantics<parallel>], iteration_bounds = array<i64: 2, 1, 1>, scalar_prefetch = 0 : i64, scratch_operands = 0 : i64, tpu.core_type = #tpu.core_type<tc>, window_params = [{transform_indices = @transform_0, window_bounds = array<i64: 1, 2, 8, 128>}, {transform_indices = @transform_1, window_bounds = array<i64: 1, 2, 8, 10>}, {transform_indices = @transform_2, window_bounds = array<i64: 1, 8, 168>}, {transform_indices = @transform_3, window_bounds = array<i64: 1, 8, 1>}, {transform_indices = @transform_4, window_bounds = array<i64: 1, 8, 128>}, {transform_indices = @transform_5, window_bounds = array<i64: 1, 8, 128>}]} {
    %c0 = arith.constant 0 : index
    %c0_0 = arith.constant 0 : index
    %c0_1 = arith.constant 0 : index
    %c0_2 = arith.constant 0 : index
    %0 = vector.load %arg3[%c0, %c0_0, %c0_1, %c0_2] : memref<1x2x8x128xbf16, #tpu.memory_space<vmem>>, vector<1x1x8x128xbf16>
    %1 = vector.shape_cast %0 : vector<1x1x8x128xbf16> to vector<8x128xbf16>
    %c0_3 = arith.constant 0 : index
    %c0_4 = arith.constant 0 : index
    %c0_5 = arith.constant 0 : index
    %c0_6 = arith.constant 0 : index
    %2 = vector.load %arg4[%c0_3, %c0_4, %c0_5, %c0_6] : memref<1x2x8x10xbf16, #tpu.memory_space<vmem>>, vector<1x1x8x10xbf16>
    %3 = vector.shape_cast %2 : vector<1x1x8x10xbf16> to vector<8x10xbf16>
    %4 = tpu.concatenate %1, %3 in 1 : vector<8x128xbf16>, vector<8x10xbf16> -> vector<8x138xbf16>
    %c0_7 = arith.constant 0 : index
    %c1 = arith.constant 1 : index
    %c0_8 = arith.constant 0 : index
    %c0_9 = arith.constant 0 : index
    %5 = vector.load %arg3[%c0_7, %c1, %c0_8, %c0_9] : memref<1x2x8x128xbf16, #tpu.memory_space<vmem>>, vector<1x1x8x128xbf16>
    %6 = vector.shape_cast %5 : vector<1x1x8x128xbf16> to vector<8x128xbf16>
    %c0_10 = arith.constant 0 : index
    %c1_11 = arith.constant 1 : index
    %c0_12 = arith.constant 0 : index
    %c0_13 = arith.constant 0 : index
    %7 = vector.load %arg4[%c0_10, %c1_11, %c0_12, %c0_13] : memref<1x2x8x10xbf16, #tpu.memory_space<vmem>>, vector<1x1x8x10xbf16>
    %8 = vector.shape_cast %7 : vector<1x1x8x10xbf16> to vector<8x10xbf16>
    %9 = tpu.concatenate %6, %8 in 1 : vector<8x128xbf16>, vector<8x10xbf16> -> vector<8x138xbf16>
    %10 = vector.extract_strided_slice %4 {offsets = [0, 0], sizes = [8, 128], strides = [1, 1]} : vector<8x138xbf16> to vector<8x128xbf16>
    %11 = vector.extract_strided_slice %9 {offsets = [0, 0], sizes = [8, 128], strides = [1, 1]} : vector<8x138xbf16> to vector<8x128xbf16>
    %12 = vector.extract_strided_slice %4 {offsets = [0, 1], sizes = [8, 128], strides = [1, 1]} : vector<8x138xbf16> to vector<8x128xbf16>
    %13 = vector.extract_strided_slice %9 {offsets = [0, 1], sizes = [8, 128], strides = [1, 1]} : vector<8x138xbf16> to vector<8x128xbf16>
    %14 = vector.extract_strided_slice %4 {offsets = [0, 2], sizes = [8, 128], strides = [1, 1]} : vector<8x138xbf16> to vector<8x128xbf16>
    %15 = vector.extract_strided_slice %9 {offsets = [0, 2], sizes = [8, 128], strides = [1, 1]} : vector<8x138xbf16> to vector<8x128xbf16>
    %16 = vector.extract_strided_slice %4 {offsets = [0, 3], sizes = [8, 128], strides = [1, 1]} : vector<8x138xbf16> to vector<8x128xbf16>
    %17 = vector.extract_strided_slice %9 {offsets = [0, 3], sizes = [8, 128], strides = [1, 1]} : vector<8x138xbf16> to vector<8x128xbf16>
    %18 = vector.extract_strided_slice %4 {offsets = [0, 4], sizes = [8, 128], strides = [1, 1]} : vector<8x138xbf16> to vector<8x128xbf16>
    %19 = vector.extract_strided_slice %9 {offsets = [0, 4], sizes = [8, 128], strides = [1, 1]} : vector<8x138xbf16> to vector<8x128xbf16>
    %20 = vector.extract_strided_slice %4 {offsets = [0, 5], sizes = [8, 128], strides = [1, 1]} : vector<8x138xbf16> to vector<8x128xbf16>
    %21 = vector.extract_strided_slice %9 {offsets = [0, 5], sizes = [8, 128], strides = [1, 1]} : vector<8x138xbf16> to vector<8x128xbf16>
    %22 = vector.extract_strided_slice %4 {offsets = [0, 6], sizes = [8, 128], strides = [1, 1]} : vector<8x138xbf16> to vector<8x128xbf16>
    %23 = vector.extract_strided_slice %9 {offsets = [0, 6], sizes = [8, 128], strides = [1, 1]} : vector<8x138xbf16> to vector<8x128xbf16>
    %24 = vector.extract_strided_slice %4 {offsets = [0, 7], sizes = [8, 128], strides = [1, 1]} : vector<8x138xbf16> to vector<8x128xbf16>
    %25 = vector.extract_strided_slice %9 {offsets = [0, 7], sizes = [8, 128], strides = [1, 1]} : vector<8x138xbf16> to vector<8x128xbf16>
    %26 = vector.extract_strided_slice %4 {offsets = [0, 8], sizes = [8, 128], strides = [1, 1]} : vector<8x138xbf16> to vector<8x128xbf16>
    %27 = vector.extract_strided_slice %9 {offsets = [0, 8], sizes = [8, 128], strides = [1, 1]} : vector<8x138xbf16> to vector<8x128xbf16>
    %28 = vector.extract_strided_slice %4 {offsets = [0, 9], sizes = [8, 128], strides = [1, 1]} : vector<8x138xbf16> to vector<8x128xbf16>
    %29 = vector.extract_strided_slice %9 {offsets = [0, 9], sizes = [8, 128], strides = [1, 1]} : vector<8x138xbf16> to vector<8x128xbf16>
    %30 = vector.extract_strided_slice %4 {offsets = [0, 10], sizes = [8, 128], strides = [1, 1]} : vector<8x138xbf16> to vector<8x128xbf16>
    %31 = tpu.concatenate %10, %11, %12, %13, %14, %15, %16, %17, %18, %19, %20, %21, %22, %23, %24, %25 in 0 : vector<8x128xbf16>, vector<8x128xbf16>, vector<8x128xbf16>, vector<8x128xbf16>, vector<8x128xbf16>, vector<8x128xbf16>, vector<8x128xbf16>, vector<8x128xbf16>, vector<8x128xbf16>, vector<8x128xbf16>, vector<8x128xbf16>, vector<8x128xbf16>, vector<8x128xbf16>, vector<8x128xbf16>, vector<8x128xbf16>, vector<8x128xbf16> -> vector<128x128xbf16>
    %32 = tpu.concatenate %26, %27, %28, %29, %30 in 0 : vector<8x128xbf16>, vector<8x128xbf16>, vector<8x128xbf16>, vector<8x128xbf16>, vector<8x128xbf16> -> vector<40x128xbf16>
    %33 = tpu.concatenate %31, %32 in 0 : vector<128x128xbf16>, vector<40x128xbf16> -> vector<168x128xbf16>
    %c0_14 = arith.constant 0 : index
    %c0_15 = arith.constant 0 : index
    %c0_16 = arith.constant 0 : index
    %34 = vector.load %arg5[%c0_14, %c0_15, %c0_16] : memref<1x8x168xbf16, #tpu.memory_space<vmem>>, vector<1x8x168xbf16>
    %35 = vector.shape_cast %34 : vector<1x8x168xbf16> to vector<8x168xbf16>
    %cst = arith.constant dense<0.000000e+00> : vector<8x128xf32>
    %36 = tpu.matmul %35, %33, %cst {dimension_numbers = #tpu.dot_dimension_numbers<[1], [0], [0], [1], [0, 0, 1, 1], [], []>} : vector<8x168xbf16>, vector<168x128xbf16>, vector<8x128xf32> -> vector<8x128xf32>
    %c0_17 = arith.constant 0 : index
    %c0_18 = arith.constant 0 : index
    %c0_19 = arith.constant 0 : index
    %37 = vector.load %arg6[%c0_17, %c0_18, %c0_19] : memref<1x8x1xf32, #tpu.memory_space<vmem>>, vector<1x8x1xf32>
    %38 = vector.shape_cast %37 : vector<1x8x1xf32> to vector<8x1xf32>
    %39 = vector.broadcast %38 : vector<8x1xf32> to vector<8x128xf32>
    %40 = arith.addf %36, %39 : vector<8x128xf32>
    %cst_20 = arith.constant 0.000000e+00 : f32
    %41 = vector.broadcast %cst_20 : f32 to vector<8x128xf32>
    %42 = arith.cmpf oge, %40, %41 : vector<8x128xf32>
    %cst_21 = arith.constant 2.000000e-01 : f32
    %43 = vector.broadcast %cst_21 : f32 to vector<8x128xf32>
    %44 = arith.mulf %43, %40 : vector<8x128xf32>
    %45 = arith.select %42, %40, %44 : vector<8x128xi1>, vector<8x128xf32>
    %c0_22 = arith.constant 0 : index
    %c0_23 = arith.constant 0 : index
    %c0_24 = arith.constant 0 : index
    %46 = vector.load %arg7[%c0_22, %c0_23, %c0_24] : memref<1x8x128xf32, #tpu.memory_space<vmem>>, vector<1x8x128xf32>
    %47 = vector.shape_cast %46 : vector<1x8x128xf32> to vector<8x128xf32>
    %48 = vector.shape_cast %45 : vector<8x128xf32> to vector<1x8x128xf32>
    tpu.vector_store %arg7[%c0_22, %c0_23, %c0_24], %48 {strides = array<i32>} : memref<1x8x128xf32, #tpu.memory_space<vmem>>, vector<1x8x128xf32>,
    %49 = arith.truncf %45 : vector<8x128xf32> to vector<8x128xbf16>
    %c0_25 = arith.constant 0 : index
    %c0_26 = arith.constant 0 : index
    %c0_27 = arith.constant 0 : index
    %50 = vector.load %arg8[%c0_25, %c0_26, %c0_27] : memref<1x8x128xbf16, #tpu.memory_space<vmem>>, vector<1x8x128xbf16>
    %51 = vector.shape_cast %50 : vector<1x8x128xbf16> to vector<8x128xbf16>
    %52 = vector.shape_cast %49 : vector<8x128xbf16> to vector<1x8x128xbf16>
    tpu.vector_store %arg8[%c0_25, %c0_26, %c0_27], %52 {strides = array<i32>} : memref<1x8x128xbf16, #tpu.memory_space<vmem>>, vector<1x8x128xbf16>,
    return
  }
  func.func @transform_0(%arg0: i32, %arg1: i32, %arg2: i32) -> (i32, i32, i32, i32) {
    %c0_i32 = arith.constant 0 : i32
    %c0_i32_0 = arith.constant 0 : i32
    return %arg0, %c0_i32, %arg1, %arg2 : i32, i32, i32, i32
  }
  func.func @transform_1(%arg0: i32, %arg1: i32, %arg2: i32) -> (i32, i32, i32, i32) {
    %c1_i32 = arith.constant 1 : i32
    %0 = arith.muli %arg0, %c1_i32 : i32
    %1 = arith.addi %0, %arg2 : i32
    %c0_i32 = arith.constant 0 : i32
    %c0_i32_0 = arith.constant 0 : i32
    %c0_i32_1 = arith.constant 0 : i32
    return %1, %c0_i32, %arg1, %c0_i32_0 : i32, i32, i32, i32
  }
  func.func @transform_2(%arg0: i32, %arg1: i32, %arg2: i32) -> (i32, i32, i32) {
    %c0_i32 = arith.constant 0 : i32
    %c0_i32_0 = arith.constant 0 : i32
    %c0_i32_1 = arith.constant 0 : i32
    return %arg1, %c0_i32, %c0_i32_0 : i32, i32, i32
  }
  func.func @transform_3(%arg0: i32, %arg1: i32, %arg2: i32) -> (i32, i32, i32) {
    %c0_i32 = arith.constant 0 : i32
    %c0_i32_0 = arith.constant 0 : i32
    %c0_i32_1 = arith.constant 0 : i32
    return %arg1, %c0_i32, %c0_i32_0 : i32, i32, i32
  }
  func.func @transform_4(%arg0: i32, %arg1: i32, %arg2: i32) -> (i32, i32, i32) {
    %c0_i32 = arith.constant 0 : i32
    return %arg0, %arg1, %arg2 : i32, i32, i32
  }
  func.func @transform_5(%arg0: i32, %arg1: i32, %arg2: i32) -> (i32, i32, i32) {
    %c0_i32 = arith.constant 0 : i32
    return %arg0, %arg1, %arg2 : i32, i32, i32
  }
}

module attributes {stable_mosaic.version = 11 : i64} {
  func.func @_conv1d_mxu_kernel(%arg0: i32, %arg1: i32, %arg2: i32, %arg3: memref<1x1x8x128xbf16, #tpu.memory_space<vmem>>, %arg4: memref<1x1x8x14xbf16, #tpu.memory_space<vmem>>, %arg5: memref<1x4x120xbf16, #tpu.memory_space<vmem>>, %arg6: memref<1x4x1xf32, #tpu.memory_space<vmem>>, %arg7: memref<1x4x128xf32, #tpu.memory_space<vmem>>, %arg8: memref<1x4x128xbf16, #tpu.memory_space<vmem>>) attributes {dimension_semantics = [#tpu.dimension_semantics<parallel>, #tpu.dimension_semantics<parallel>, #tpu.dimension_semantics<parallel>], iteration_bounds = array<i64: 2, 1, 1>, scalar_prefetch = 0 : i64, scratch_operands = 0 : i64, tpu.core_type = #tpu.core_type<tc>, window_params = [{transform_indices = @transform_0, window_bounds = array<i64: 1, 1, 8, 128>}, {transform_indices = @transform_1, window_bounds = array<i64: 1, 1, 8, 14>}, {transform_indices = @transform_2, window_bounds = array<i64: 1, 4, 120>}, {transform_indices = @transform_3, window_bounds = array<i64: 1, 4, 1>}, {transform_indices = @transform_4, window_bounds = array<i64: 1, 4, 128>}, {transform_indices = @transform_5, window_bounds = array<i64: 1, 4, 128>}]} {
    %c0 = arith.constant 0 : index
    %c0_0 = arith.constant 0 : index
    %c0_1 = arith.constant 0 : index
    %c0_2 = arith.constant 0 : index
    %0 = vector.load %arg3[%c0, %c0_0, %c0_1, %c0_2] : memref<1x1x8x128xbf16, #tpu.memory_space<vmem>>, vector<1x1x8x128xbf16>
    %1 = vector.shape_cast %0 : vector<1x1x8x128xbf16> to vector<8x128xbf16>
    %c0_3 = arith.constant 0 : index
    %c0_4 = arith.constant 0 : index
    %c0_5 = arith.constant 0 : index
    %c0_6 = arith.constant 0 : index
    %2 = vector.load %arg4[%c0_3, %c0_4, %c0_5, %c0_6] : memref<1x1x8x14xbf16, #tpu.memory_space<vmem>>, vector<1x1x8x14xbf16>
    %3 = vector.shape_cast %2 : vector<1x1x8x14xbf16> to vector<8x14xbf16>
    %4 = tpu.concatenate %1, %3 in 1 : vector<8x128xbf16>, vector<8x14xbf16> -> vector<8x142xbf16>
    %5 = vector.extract_strided_slice %4 {offsets = [0, 0], sizes = [8, 128], strides = [1, 1]} : vector<8x142xbf16> to vector<8x128xbf16>
    %6 = vector.extract_strided_slice %4 {offsets = [0, 1], sizes = [8, 128], strides = [1, 1]} : vector<8x142xbf16> to vector<8x128xbf16>
    %7 = vector.extract_strided_slice %4 {offsets = [0, 2], sizes = [8, 128], strides = [1, 1]} : vector<8x142xbf16> to vector<8x128xbf16>
    %8 = vector.extract_strided_slice %4 {offsets = [0, 3], sizes = [8, 128], strides = [1, 1]} : vector<8x142xbf16> to vector<8x128xbf16>
    %9 = vector.extract_strided_slice %4 {offsets = [0, 4], sizes = [8, 128], strides = [1, 1]} : vector<8x142xbf16> to vector<8x128xbf16>
    %10 = vector.extract_strided_slice %4 {offsets = [0, 5], sizes = [8, 128], strides = [1, 1]} : vector<8x142xbf16> to vector<8x128xbf16>
    %11 = vector.extract_strided_slice %4 {offsets = [0, 6], sizes = [8, 128], strides = [1, 1]} : vector<8x142xbf16> to vector<8x128xbf16>
    %12 = vector.extract_strided_slice %4 {offsets = [0, 7], sizes = [8, 128], strides = [1, 1]} : vector<8x142xbf16> to vector<8x128xbf16>
    %13 = vector.extract_strided_slice %4 {offsets = [0, 8], sizes = [8, 128], strides = [1, 1]} : vector<8x142xbf16> to vector<8x128xbf16>
    %14 = vector.extract_strided_slice %4 {offsets = [0, 9], sizes = [8, 128], strides = [1, 1]} : vector<8x142xbf16> to vector<8x128xbf16>
    %15 = vector.extract_strided_slice %4 {offsets = [0, 10], sizes = [8, 128], strides = [1, 1]} : vector<8x142xbf16> to vector<8x128xbf16>
    %16 = vector.extract_strided_slice %4 {offsets = [0, 11], sizes = [8, 128], strides = [1, 1]} : vector<8x142xbf16> to vector<8x128xbf16>
    %17 = vector.extract_strided_slice %4 {offsets = [0, 12], sizes = [8, 128], strides = [1, 1]} : vector<8x142xbf16> to vector<8x128xbf16>
    %18 = vector.extract_strided_slice %4 {offsets = [0, 13], sizes = [8, 128], strides = [1, 1]} : vector<8x142xbf16> to vector<8x128xbf16>
    %19 = vector.extract_strided_slice %4 {offsets = [0, 14], sizes = [8, 128], strides = [1, 1]} : vector<8x142xbf16> to vector<8x128xbf16>
    %20 = tpu.concatenate %5, %6, %7, %8, %9, %10, %11, %12, %13, %14, %15, %16, %17, %18, %19 in 0 : vector<8x128xbf16>, vector<8x128xbf16>, vector<8x128xbf16>, vector<8x128xbf16>, vector<8x128xbf16>, vector<8x128xbf16>, vector<8x128xbf16>, vector<8x128xbf16>, vector<8x128xbf16>, vector<8x128xbf16>, vector<8x128xbf16>, vector<8x128xbf16>, vector<8x128xbf16>, vector<8x128xbf16>, vector<8x128xbf16> -> vector<120x128xbf16>
    %c0_7 = arith.constant 0 : index
    %c0_8 = arith.constant 0 : index
    %c0_9 = arith.constant 0 : index
    %21 = vector.load %arg5[%c0_7, %c0_8, %c0_9] : memref<1x4x120xbf16, #tpu.memory_space<vmem>>, vector<1x4x120xbf16>
    %22 = vector.shape_cast %21 : vector<1x4x120xbf16> to vector<4x120xbf16>
    %cst = arith.constant dense<0.000000e+00> : vector<4x128xf32>
    %23 = tpu.matmul %22, %20, %cst {dimension_numbers = #tpu.dot_dimension_numbers<[1], [0], [0], [1], [0, 0, 1, 1], [], []>} : vector<4x120xbf16>, vector<120x128xbf16>, vector<4x128xf32> -> vector<4x128xf32>
    %c0_10 = arith.constant 0 : index
    %c0_11 = arith.constant 0 : index
    %c0_12 = arith.constant 0 : index
    %24 = vector.load %arg6[%c0_10, %c0_11, %c0_12] : memref<1x4x1xf32, #tpu.memory_space<vmem>>, vector<1x4x1xf32>
    %25 = vector.shape_cast %24 : vector<1x4x1xf32> to vector<4x1xf32>
    %26 = vector.broadcast %25 : vector<4x1xf32> to vector<4x128xf32>
    %27 = arith.addf %23, %26 : vector<4x128xf32>
    %cst_13 = arith.constant 0.000000e+00 : f32
    %28 = vector.broadcast %cst_13 : f32 to vector<4x128xf32>
    %29 = arith.cmpf oge, %27, %28 : vector<4x128xf32>
    %cst_14 = arith.constant 2.000000e-01 : f32
    %30 = vector.broadcast %cst_14 : f32 to vector<4x128xf32>
    %31 = arith.mulf %30, %27 : vector<4x128xf32>
    %32 = arith.select %29, %27, %31 : vector<4x128xi1>, vector<4x128xf32>
    %c0_15 = arith.constant 0 : index
    %c0_16 = arith.constant 0 : index
    %c0_17 = arith.constant 0 : index
    %33 = vector.load %arg7[%c0_15, %c0_16, %c0_17] : memref<1x4x128xf32, #tpu.memory_space<vmem>>, vector<1x4x128xf32>
    %34 = vector.shape_cast %33 : vector<1x4x128xf32> to vector<4x128xf32>
    %35 = vector.shape_cast %32 : vector<4x128xf32> to vector<1x4x128xf32>
    tpu.vector_store %arg7[%c0_15, %c0_16, %c0_17], %35 {strides = array<i32>} : memref<1x4x128xf32, #tpu.memory_space<vmem>>, vector<1x4x128xf32>,
    %36 = arith.truncf %32 : vector<4x128xf32> to vector<4x128xbf16>
    %c0_18 = arith.constant 0 : index
    %c0_19 = arith.constant 0 : index
    %c0_20 = arith.constant 0 : index
    %37 = vector.load %arg8[%c0_18, %c0_19, %c0_20] : memref<1x4x128xbf16, #tpu.memory_space<vmem>>, vector<1x4x128xbf16>
    %38 = vector.shape_cast %37 : vector<1x4x128xbf16> to vector<4x128xbf16>
    %39 = vector.shape_cast %36 : vector<4x128xbf16> to vector<1x4x128xbf16>
    tpu.vector_store %arg8[%c0_18, %c0_19, %c0_20], %39 {strides = array<i32>} : memref<1x4x128xbf16, #tpu.memory_space<vmem>>, vector<1x4x128xbf16>,
    return
  }
  func.func @transform_0(%arg0: i32, %arg1: i32, %arg2: i32) -> (i32, i32, i32, i32) {
    %c0_i32 = arith.constant 0 : i32
    %c0_i32_0 = arith.constant 0 : i32
    return %arg0, %c0_i32, %arg1, %arg2 : i32, i32, i32, i32
  }
  func.func @transform_1(%arg0: i32, %arg1: i32, %arg2: i32) -> (i32, i32, i32, i32) {
    %c1_i32 = arith.constant 1 : i32
    %0 = arith.muli %arg0, %c1_i32 : i32
    %1 = arith.addi %0, %arg2 : i32
    %c0_i32 = arith.constant 0 : i32
    %c0_i32_0 = arith.constant 0 : i32
    %c0_i32_1 = arith.constant 0 : i32
    return %1, %c0_i32, %arg1, %c0_i32_0 : i32, i32, i32, i32
  }
  func.func @transform_2(%arg0: i32, %arg1: i32, %arg2: i32) -> (i32, i32, i32) {
    %c0_i32 = arith.constant 0 : i32
    %c0_i32_0 = arith.constant 0 : i32
    %c0_i32_1 = arith.constant 0 : i32
    return %arg1, %c0_i32, %c0_i32_0 : i32, i32, i32
  }
  func.func @transform_3(%arg0: i32, %arg1: i32, %arg2: i32) -> (i32, i32, i32) {
    %c0_i32 = arith.constant 0 : i32
    %c0_i32_0 = arith.constant 0 : i32
    %c0_i32_1 = arith.constant 0 : i32
    return %arg1, %c0_i32, %c0_i32_0 : i32, i32, i32
  }
  func.func @transform_4(%arg0: i32, %arg1: i32, %arg2: i32) -> (i32, i32, i32) {
    %c0_i32 = arith.constant 0 : i32
    return %arg0, %arg1, %arg2 : i32, i32, i32
  }
  func.func @transform_5(%arg0: i32, %arg1: i32, %arg2: i32) -> (i32, i32, i32) {
    %c0_i32 = arith.constant 0 : i32
    return %arg0, %arg1, %arg2 : i32, i32, i32
  }
}

module attributes {stable_mosaic.version = 11 : i64} {
  func.func @_conv1d_mxu_kernel(%arg0: i32, %arg1: i32, %arg2: i32, %arg3: memref<1x2x8x128xbf16, #tpu.memory_space<vmem>>, %arg4: memref<1x2x8x10xbf16, #tpu.memory_space<vmem>>, %arg5: memref<1x8x168xbf16, #tpu.memory_space<vmem>>, %arg6: memref<1x8x1xf32, #tpu.memory_space<vmem>>, %arg7: memref<1x8x128xf32, #tpu.memory_space<vmem>>, %arg8: memref<1x8x128xbf16, #tpu.memory_space<vmem>>) attributes {dimension_semantics = [#tpu.dimension_semantics<parallel>, #tpu.dimension_semantics<parallel>, #tpu.dimension_semantics<parallel>], iteration_bounds = array<i64: 2, 2, 1>, scalar_prefetch = 0 : i64, scratch_operands = 0 : i64, tpu.core_type = #tpu.core_type<tc>, window_params = [{transform_indices = @transform_0, window_bounds = array<i64: 1, 2, 8, 128>}, {transform_indices = @transform_1, window_bounds = array<i64: 1, 2, 8, 10>}, {transform_indices = @transform_2, window_bounds = array<i64: 1, 8, 168>}, {transform_indices = @transform_3, window_bounds = array<i64: 1, 8, 1>}, {transform_indices = @transform_4, window_bounds = array<i64: 1, 8, 128>}, {transform_indices = @transform_5, window_bounds = array<i64: 1, 8, 128>}]} {
    %c0 = arith.constant 0 : index
    %c0_0 = arith.constant 0 : index
    %c0_1 = arith.constant 0 : index
    %c0_2 = arith.constant 0 : index
    %0 = vector.load %arg3[%c0, %c0_0, %c0_1, %c0_2] : memref<1x2x8x128xbf16, #tpu.memory_space<vmem>>, vector<1x1x8x128xbf16>
    %1 = vector.shape_cast %0 : vector<1x1x8x128xbf16> to vector<8x128xbf16>
    %c0_3 = arith.constant 0 : index
    %c0_4 = arith.constant 0 : index
    %c0_5 = arith.constant 0 : index
    %c0_6 = arith.constant 0 : index
    %2 = vector.load %arg4[%c0_3, %c0_4, %c0_5, %c0_6] : memref<1x2x8x10xbf16, #tpu.memory_space<vmem>>, vector<1x1x8x10xbf16>
    %3 = vector.shape_cast %2 : vector<1x1x8x10xbf16> to vector<8x10xbf16>
    %4 = tpu.concatenate %1, %3 in 1 : vector<8x128xbf16>, vector<8x10xbf16> -> vector<8x138xbf16>
    %c0_7 = arith.constant 0 : index
    %c1 = arith.constant 1 : index
    %c0_8 = arith.constant 0 : index
    %c0_9 = arith.constant 0 : index
    %5 = vector.load %arg3[%c0_7, %c1, %c0_8, %c0_9] : memref<1x2x8x128xbf16, #tpu.memory_space<vmem>>, vector<1x1x8x128xbf16>
    %6 = vector.shape_cast %5 : vector<1x1x8x128xbf16> to vector<8x128xbf16>
    %c0_10 = arith.constant 0 : index
    %c1_11 = arith.constant 1 : index
    %c0_12 = arith.constant 0 : index
    %c0_13 = arith.constant 0 : index
    %7 = vector.load %arg4[%c0_10, %c1_11, %c0_12, %c0_13] : memref<1x2x8x10xbf16, #tpu.memory_space<vmem>>, vector<1x1x8x10xbf16>
    %8 = vector.shape_cast %7 : vector<1x1x8x10xbf16> to vector<8x10xbf16>
    %9 = tpu.concatenate %6, %8 in 1 : vector<8x128xbf16>, vector<8x10xbf16> -> vector<8x138xbf16>
    %10 = vector.extract_strided_slice %4 {offsets = [0, 0], sizes = [8, 128], strides = [1, 1]} : vector<8x138xbf16> to vector<8x128xbf16>
    %11 = vector.extract_strided_slice %9 {offsets = [0, 0], sizes = [8, 128], strides = [1, 1]} : vector<8x138xbf16> to vector<8x128xbf16>
    %12 = vector.extract_strided_slice %4 {offsets = [0, 1], sizes = [8, 128], strides = [1, 1]} : vector<8x138xbf16> to vector<8x128xbf16>
    %13 = vector.extract_strided_slice %9 {offsets = [0, 1], sizes = [8, 128], strides = [1, 1]} : vector<8x138xbf16> to vector<8x128xbf16>
    %14 = vector.extract_strided_slice %4 {offsets = [0, 2], sizes = [8, 128], strides = [1, 1]} : vector<8x138xbf16> to vector<8x128xbf16>
    %15 = vector.extract_strided_slice %9 {offsets = [0, 2], sizes = [8, 128], strides = [1, 1]} : vector<8x138xbf16> to vector<8x128xbf16>
    %16 = vector.extract_strided_slice %4 {offsets = [0, 3], sizes = [8, 128], strides = [1, 1]} : vector<8x138xbf16> to vector<8x128xbf16>
    %17 = vector.extract_strided_slice %9 {offsets = [0, 3], sizes = [8, 128], strides = [1, 1]} : vector<8x138xbf16> to vector<8x128xbf16>
    %18 = vector.extract_strided_slice %4 {offsets = [0, 4], sizes = [8, 128], strides = [1, 1]} : vector<8x138xbf16> to vector<8x128xbf16>
    %19 = vector.extract_strided_slice %9 {offsets = [0, 4], sizes = [8, 128], strides = [1, 1]} : vector<8x138xbf16> to vector<8x128xbf16>
    %20 = vector.extract_strided_slice %4 {offsets = [0, 5], sizes = [8, 128], strides = [1, 1]} : vector<8x138xbf16> to vector<8x128xbf16>
    %21 = vector.extract_strided_slice %9 {offsets = [0, 5], sizes = [8, 128], strides = [1, 1]} : vector<8x138xbf16> to vector<8x128xbf16>
    %22 = vector.extract_strided_slice %4 {offsets = [0, 6], sizes = [8, 128], strides = [1, 1]} : vector<8x138xbf16> to vector<8x128xbf16>
    %23 = vector.extract_strided_slice %9 {offsets = [0, 6], sizes = [8, 128], strides = [1, 1]} : vector<8x138xbf16> to vector<8x128xbf16>
    %24 = vector.extract_strided_slice %4 {offsets = [0, 7], sizes = [8, 128], strides = [1, 1]} : vector<8x138xbf16> to vector<8x128xbf16>
    %25 = vector.extract_strided_slice %9 {offsets = [0, 7], sizes = [8, 128], strides = [1, 1]} : vector<8x138xbf16> to vector<8x128xbf16>
    %26 = vector.extract_strided_slice %4 {offsets = [0, 8], sizes = [8, 128], strides = [1, 1]} : vector<8x138xbf16> to vector<8x128xbf16>
    %27 = vector.extract_strided_slice %9 {offsets = [0, 8], sizes = [8, 128], strides = [1, 1]} : vector<8x138xbf16> to vector<8x128xbf16>
    %28 = vector.extract_strided_slice %4 {offsets = [0, 9], sizes = [8, 128], strides = [1, 1]} : vector<8x138xbf16> to vector<8x128xbf16>
    %29 = vector.extract_strided_slice %9 {offsets = [0, 9], sizes = [8, 128], strides = [1, 1]} : vector<8x138xbf16> to vector<8x128xbf16>
    %30 = vector.extract_strided_slice %4 {offsets = [0, 10], sizes = [8, 128], strides = [1, 1]} : vector<8x138xbf16> to vector<8x128xbf16>
    %31 = tpu.concatenate %10, %11, %12, %13, %14, %15, %16, %17, %18, %19, %20, %21, %22, %23, %24, %25 in 0 : vector<8x128xbf16>, vector<8x128xbf16>, vector<8x128xbf16>, vector<8x128xbf16>, vector<8x128xbf16>, vector<8x128xbf16>, vector<8x128xbf16>, vector<8x128xbf16>, vector<8x128xbf16>, vector<8x128xbf16>, vector<8x128xbf16>, vector<8x128xbf16>, vector<8x128xbf16>, vector<8x128xbf16>, vector<8x128xbf16>, vector<8x128xbf16> -> vector<128x128xbf16>
    %32 = tpu.concatenate %26, %27, %28, %29, %30 in 0 : vector<8x128xbf16>, vector<8x128xbf16>, vector<8x128xbf16>, vector<8x128xbf16>, vector<8x128xbf16> -> vector<40x128xbf16>
    %33 = tpu.concatenate %31, %32 in 0 : vector<128x128xbf16>, vector<40x128xbf16> -> vector<168x128xbf16>
    %c0_14 = arith.constant 0 : index
    %c0_15 = arith.constant 0 : index
    %c0_16 = arith.constant 0 : index
    %34 = vector.load %arg5[%c0_14, %c0_15, %c0_16] : memref<1x8x168xbf16, #tpu.memory_space<vmem>>, vector<1x8x168xbf16>
    %35 = vector.shape_cast %34 : vector<1x8x168xbf16> to vector<8x168xbf16>
    %cst = arith.constant dense<0.000000e+00> : vector<8x128xf32>
    %36 = tpu.matmul %35, %33, %cst {dimension_numbers = #tpu.dot_dimension_numbers<[1], [0], [0], [1], [0, 0, 1, 1], [], []>} : vector<8x168xbf16>, vector<168x128xbf16>, vector<8x128xf32> -> vector<8x128xf32>
    %c0_17 = arith.constant 0 : index
    %c0_18 = arith.constant 0 : index
    %c0_19 = arith.constant 0 : index
    %37 = vector.load %arg6[%c0_17, %c0_18, %c0_19] : memref<1x8x1xf32, #tpu.memory_space<vmem>>, vector<1x8x1xf32>
    %38 = vector.shape_cast %37 : vector<1x8x1xf32> to vector<8x1xf32>
    %39 = vector.broadcast %38 : vector<8x1xf32> to vector<8x128xf32>
    %40 = arith.addf %36, %39 : vector<8x128xf32>
    %cst_20 = arith.constant 0.000000e+00 : f32
    %41 = vector.broadcast %cst_20 : f32 to vector<8x128xf32>
    %42 = arith.cmpf oge, %40, %41 : vector<8x128xf32>
    %cst_21 = arith.constant 2.000000e-01 : f32
    %43 = vector.broadcast %cst_21 : f32 to vector<8x128xf32>
    %44 = arith.mulf %43, %40 : vector<8x128xf32>
    %45 = arith.select %42, %40, %44 : vector<8x128xi1>, vector<8x128xf32>
    %c0_22 = arith.constant 0 : index
    %c0_23 = arith.constant 0 : index
    %c0_24 = arith.constant 0 : index
    %46 = vector.load %arg7[%c0_22, %c0_23, %c0_24] : memref<1x8x128xf32, #tpu.memory_space<vmem>>, vector<1x8x128xf32>
    %47 = vector.shape_cast %46 : vector<1x8x128xf32> to vector<8x128xf32>
    %48 = vector.shape_cast %45 : vector<8x128xf32> to vector<1x8x128xf32>
    tpu.vector_store %arg7[%c0_22, %c0_23, %c0_24], %48 {strides = array<i32>} : memref<1x8x128xf32, #tpu.memory_space<vmem>>, vector<1x8x128xf32>,
    %49 = arith.truncf %45 : vector<8x128xf32> to vector<8x128xbf16>
    %c0_25 = arith.constant 0 : index
    %c0_26 = arith.constant 0 : index
    %c0_27 = arith.constant 0 : index
    %50 = vector.load %arg8[%c0_25, %c0_26, %c0_27] : memref<1x8x128xbf16, #tpu.memory_space<vmem>>, vector<1x8x128xbf16>
    %51 = vector.shape_cast %50 : vector<1x8x128xbf16> to vector<8x128xbf16>
    %52 = vector.shape_cast %49 : vector<8x128xbf16> to vector<1x8x128xbf16>
    tpu.vector_store %arg8[%c0_25, %c0_26, %c0_27], %52 {strides = array<i32>} : memref<1x8x128xbf16, #tpu.memory_space<vmem>>, vector<1x8x128xbf16>,
    return
  }
  func.func @transform_0(%arg0: i32, %arg1: i32, %arg2: i32) -> (i32, i32, i32, i32) {
    %c0_i32 = arith.constant 0 : i32
    %c0_i32_0 = arith.constant 0 : i32
    return %arg0, %c0_i32, %arg1, %arg2 : i32, i32, i32, i32
  }
  func.func @transform_1(%arg0: i32, %arg1: i32, %arg2: i32) -> (i32, i32, i32, i32) {
    %c1_i32 = arith.constant 1 : i32
    %0 = arith.muli %arg0, %c1_i32 : i32
    %1 = arith.addi %0, %arg2 : i32
    %c0_i32 = arith.constant 0 : i32
    %c0_i32_0 = arith.constant 0 : i32
    %c0_i32_1 = arith.constant 0 : i32
    return %1, %c0_i32, %arg1, %c0_i32_0 : i32, i32, i32, i32
  }
  func.func @transform_2(%arg0: i32, %arg1: i32, %arg2: i32) -> (i32, i32, i32) {
    %c0_i32 = arith.constant 0 : i32
    %c0_i32_0 = arith.constant 0 : i32
    %c0_i32_1 = arith.constant 0 : i32
    return %arg1, %c0_i32, %c0_i32_0 : i32, i32, i32
  }
  func.func @transform_3(%arg0: i32, %arg1: i32, %arg2: i32) -> (i32, i32, i32) {
    %c0_i32 = arith.constant 0 : i32
    %c0_i32_0 = arith.constant 0 : i32
    %c0_i32_1 = arith.constant 0 : i32
    return %arg1, %c0_i32, %c0_i32_0 : i32, i32, i32
  }
  func.func @transform_4(%arg0: i32, %arg1: i32, %arg2: i32) -> (i32, i32, i32) {
    %c0_i32 = arith.constant 0 : i32
    return %arg0, %arg1, %arg2 : i32, i32, i32
  }
  func.func @transform_5(%arg0: i32, %arg1: i32, %arg2: i32) -> (i32, i32, i32) {
    %c0_i32 = arith.constant 0 : i32
    return %arg0, %arg1, %arg2 : i32, i32, i32
  }
}

module attributes {stable_mosaic.version = 11 : i64} {
  func.func @_conv1d_mxu_kernel(%arg0: i32, %arg1: i32, %arg2: i32, %arg3: memref<1x1x16x128xbf16, #tpu.memory_space<vmem>>, %arg4: memref<1x1x16x4xbf16, #tpu.memory_space<vmem>>, %arg5: memref<1x32x80xbf16, #tpu.memory_space<vmem>>, %arg6: memref<1x32x1xf32, #tpu.memory_space<vmem>>, %arg7: memref<1x32x128xf32, #tpu.memory_space<vmem>>, %arg8: memref<1x32x128xbf16, #tpu.memory_space<vmem>>) attributes {dimension_semantics = [#tpu.dimension_semantics<parallel>, #tpu.dimension_semantics<parallel>, #tpu.dimension_semantics<parallel>], iteration_bounds = array<i64: 2, 1, 1>, scalar_prefetch = 0 : i64, scratch_operands = 0 : i64, tpu.core_type = #tpu.core_type<tc>, window_params = [{transform_indices = @transform_0, window_bounds = array<i64: 1, 1, 16, 128>}, {transform_indices = @transform_1, window_bounds = array<i64: 1, 1, 16, 4>}, {transform_indices = @transform_2, window_bounds = array<i64: 1, 32, 80>}, {transform_indices = @transform_3, window_bounds = array<i64: 1, 32, 1>}, {transform_indices = @transform_4, window_bounds = array<i64: 1, 32, 128>}, {transform_indices = @transform_5, window_bounds = array<i64: 1, 32, 128>}]} {
    %c0 = arith.constant 0 : index
    %c0_0 = arith.constant 0 : index
    %c0_1 = arith.constant 0 : index
    %c0_2 = arith.constant 0 : index
    %0 = vector.load %arg3[%c0, %c0_0, %c0_1, %c0_2] : memref<1x1x16x128xbf16, #tpu.memory_space<vmem>>, vector<1x1x16x128xbf16>
    %1 = vector.shape_cast %0 : vector<1x1x16x128xbf16> to vector<16x128xbf16>
    %c0_3 = arith.constant 0 : index
    %c0_4 = arith.constant 0 : index
    %c0_5 = arith.constant 0 : index
    %c0_6 = arith.constant 0 : index
    %2 = vector.load %arg4[%c0_3, %c0_4, %c0_5, %c0_6] : memref<1x1x16x4xbf16, #tpu.memory_space<vmem>>, vector<1x1x16x4xbf16>
    %3 = vector.shape_cast %2 : vector<1x1x16x4xbf16> to vector<16x4xbf16>
    %4 = tpu.concatenate %1, %3 in 1 : vector<16x128xbf16>, vector<16x4xbf16> -> vector<16x132xbf16>
    %5 = vector.extract_strided_slice %4 {offsets = [0, 0], sizes = [16, 128], strides = [1, 1]} : vector<16x132xbf16> to vector<16x128xbf16>
    %6 = vector.extract_strided_slice %4 {offsets = [0, 1], sizes = [16, 128], strides = [1, 1]} : vector<16x132xbf16> to vector<16x128xbf16>
    %7 = vector.extract_strided_slice %4 {offsets = [0, 2], sizes = [16, 128], strides = [1, 1]} : vector<16x132xbf16> to vector<16x128xbf16>
    %8 = vector.extract_strided_slice %4 {offsets = [0, 3], sizes = [16, 128], strides = [1, 1]} : vector<16x132xbf16> to vector<16x128xbf16>
    %9 = vector.extract_strided_slice %4 {offsets = [0, 4], sizes = [16, 128], strides = [1, 1]} : vector<16x132xbf16> to vector<16x128xbf16>
    %10 = tpu.concatenate %5, %6, %7, %8, %9 in 0 : vector<16x128xbf16>, vector<16x128xbf16>, vector<16x128xbf16>, vector<16x128xbf16>, vector<16x128xbf16> -> vector<80x128xbf16>
    %c0_7 = arith.constant 0 : index
    %c0_8 = arith.constant 0 : index
    %c0_9 = arith.constant 0 : index
    %11 = vector.load %arg5[%c0_7, %c0_8, %c0_9] : memref<1x32x80xbf16, #tpu.memory_space<vmem>>, vector<1x32x80xbf16>
    %12 = vector.shape_cast %11 : vector<1x32x80xbf16> to vector<32x80xbf16>
    %cst = arith.constant dense<0.000000e+00> : vector<32x128xf32>
    %13 = tpu.matmul %12, %10, %cst {dimension_numbers = #tpu.dot_dimension_numbers<[1], [0], [0], [1], [0, 0, 1, 1], [], []>} : vector<32x80xbf16>, vector<80x128xbf16>, vector<32x128xf32> -> vector<32x128xf32>
    %c0_10 = arith.constant 0 : index
    %c0_11 = arith.constant 0 : index
    %c0_12 = arith.constant 0 : index
    %14 = vector.load %arg6[%c0_10, %c0_11, %c0_12] : memref<1x32x1xf32, #tpu.memory_space<vmem>>, vector<1x32x1xf32>
    %15 = vector.shape_cast %14 : vector<1x32x1xf32> to vector<32x1xf32>
    %16 = vector.broadcast %15 : vector<32x1xf32> to vector<32x128xf32>
    %17 = arith.addf %13, %16 : vector<32x128xf32>
    %cst_13 = arith.constant 0.000000e+00 : f32
    %18 = vector.broadcast %cst_13 : f32 to vector<32x128xf32>
    %19 = arith.cmpf oge, %17, %18 : vector<32x128xf32>
    %cst_14 = arith.constant 2.000000e-01 : f32
    %20 = vector.broadcast %cst_14 : f32 to vector<32x128xf32>
    %21 = arith.mulf %20, %17 : vector<32x128xf32>
    %22 = arith.select %19, %17, %21 : vector<32x128xi1>, vector<32x128xf32>
    %c0_15 = arith.constant 0 : index
    %c0_16 = arith.constant 0 : index
    %c0_17 = arith.constant 0 : index
    %23 = vector.load %arg7[%c0_15, %c0_16, %c0_17] : memref<1x32x128xf32, #tpu.memory_space<vmem>>, vector<1x32x128xf32>
    %24 = vector.shape_cast %23 : vector<1x32x128xf32> to vector<32x128xf32>
    %25 = vector.shape_cast %22 : vector<32x128xf32> to vector<1x32x128xf32>
    tpu.vector_store %arg7[%c0_15, %c0_16, %c0_17], %25 {strides = array<i32>} : memref<1x32x128xf32, #tpu.memory_space<vmem>>, vector<1x32x128xf32>,
    %26 = arith.truncf %22 : vector<32x128xf32> to vector<32x128xbf16>
    %c0_18 = arith.constant 0 : index
    %c0_19 = arith.constant 0 : index
    %c0_20 = arith.constant 0 : index
    %27 = vector.load %arg8[%c0_18, %c0_19, %c0_20] : memref<1x32x128xbf16, #tpu.memory_space<vmem>>, vector<1x32x128xbf16>
    %28 = vector.shape_cast %27 : vector<1x32x128xbf16> to vector<32x128xbf16>
    %29 = vector.shape_cast %26 : vector<32x128xbf16> to vector<1x32x128xbf16>
    tpu.vector_store %arg8[%c0_18, %c0_19, %c0_20], %29 {strides = array<i32>} : memref<1x32x128xbf16, #tpu.memory_space<vmem>>, vector<1x32x128xbf16>,
    return
  }
  func.func @transform_0(%arg0: i32, %arg1: i32, %arg2: i32) -> (i32, i32, i32, i32) {
    %c0_i32 = arith.constant 0 : i32
    %c0_i32_0 = arith.constant 0 : i32
    return %arg0, %c0_i32, %arg1, %arg2 : i32, i32, i32, i32
  }
  func.func @transform_1(%arg0: i32, %arg1: i32, %arg2: i32) -> (i32, i32, i32, i32) {
    %c1_i32 = arith.constant 1 : i32
    %0 = arith.muli %arg0, %c1_i32 : i32
    %1 = arith.addi %0, %arg2 : i32
    %c0_i32 = arith.constant 0 : i32
    %c0_i32_0 = arith.constant 0 : i32
    %c0_i32_1 = arith.constant 0 : i32
    return %1, %c0_i32, %arg1, %c0_i32_0 : i32, i32, i32, i32
  }
  func.func @transform_2(%arg0: i32, %arg1: i32, %arg2: i32) -> (i32, i32, i32) {
    %c0_i32 = arith.constant 0 : i32
    %c0_i32_0 = arith.constant 0 : i32
    %c0_i32_1 = arith.constant 0 : i32
    return %arg1, %c0_i32, %c0_i32_0 : i32, i32, i32
  }
  func.func @transform_3(%arg0: i32, %arg1: i32, %arg2: i32) -> (i32, i32, i32) {
    %c0_i32 = arith.constant 0 : i32
    %c0_i32_0 = arith.constant 0 : i32
    %c0_i32_1 = arith.constant 0 : i32
    return %arg1, %c0_i32, %c0_i32_0 : i32, i32, i32
  }
  func.func @transform_4(%arg0: i32, %arg1: i32, %arg2: i32) -> (i32, i32, i32) {
    %c0_i32 = arith.constant 0 : i32
    return %arg0, %arg1, %arg2 : i32, i32, i32
  }
  func.func @transform_5(%arg0: i32, %arg1: i32, %arg2: i32) -> (i32, i32, i32) {
    %c0_i32 = arith.constant 0 : i32
    return %arg0, %arg1, %arg2 : i32, i32, i32
  }
}

module attributes {stable_mosaic.version = 11 : i64} {
  func.func @_conv1d_mxu_kernel(%arg0: i32, %arg1: i32, %arg2: i32, %arg3: memref<1x1x32x128xbf16, #tpu.memory_space<vmem>>, %arg4: memref<1x1x32x2xbf16, #tpu.memory_space<vmem>>, %arg5: memref<1x1x96xbf16, #tpu.memory_space<vmem>>, %arg6: memref<1x1x1xf32, #tpu.memory_space<vmem>>, %arg7: memref<1x1x128xf32, #tpu.memory_space<vmem>>, %arg8: memref<1x1x128xbf16, #tpu.memory_space<vmem>>) attributes {dimension_semantics = [#tpu.dimension_semantics<parallel>, #tpu.dimension_semantics<parallel>, #tpu.dimension_semantics<parallel>], iteration_bounds = array<i64: 2, 1, 1>, scalar_prefetch = 0 : i64, scratch_operands = 0 : i64, tpu.core_type = #tpu.core_type<tc>, window_params = [{transform_indices = @transform_0, window_bounds = array<i64: 1, 1, 32, 128>}, {transform_indices = @transform_1, window_bounds = array<i64: 1, 1, 32, 2>}, {transform_indices = @transform_2, window_bounds = array<i64: 1, 1, 96>}, {transform_indices = @transform_3, window_bounds = array<i64: 1, 1, 1>}, {transform_indices = @transform_4, window_bounds = array<i64: 1, 1, 128>}, {transform_indices = @transform_5, window_bounds = array<i64: 1, 1, 128>}]} {
    %c0 = arith.constant 0 : index
    %c0_0 = arith.constant 0 : index
    %c0_1 = arith.constant 0 : index
    %c0_2 = arith.constant 0 : index
    %0 = vector.load %arg3[%c0, %c0_0, %c0_1, %c0_2] : memref<1x1x32x128xbf16, #tpu.memory_space<vmem>>, vector<1x1x32x128xbf16>
    %1 = vector.shape_cast %0 : vector<1x1x32x128xbf16> to vector<32x128xbf16>
    %c0_3 = arith.constant 0 : index
    %c0_4 = arith.constant 0 : index
    %c0_5 = arith.constant 0 : index
    %c0_6 = arith.constant 0 : index
    %2 = vector.load %arg4[%c0_3, %c0_4, %c0_5, %c0_6] : memref<1x1x32x2xbf16, #tpu.memory_space<vmem>>, vector<1x1x32x2xbf16>
    %3 = vector.shape_cast %2 : vector<1x1x32x2xbf16> to vector<32x2xbf16>
    %4 = tpu.concatenate %1, %3 in 1 : vector<32x128xbf16>, vector<32x2xbf16> -> vector<32x130xbf16>
    %5 = vector.extract_strided_slice %4 {offsets = [0, 0], sizes = [32, 128], strides = [1, 1]} : vector<32x130xbf16> to vector<32x128xbf16>
    %6 = vector.extract_strided_slice %4 {offsets = [0, 1], sizes = [32, 128], strides = [1, 1]} : vector<32x130xbf16> to vector<32x128xbf16>
    %7 = vector.extract_strided_slice %4 {offsets = [0, 2], sizes = [32, 128], strides = [1, 1]} : vector<32x130xbf16> to vector<32x128xbf16>
    %8 = tpu.concatenate %5, %6, %7 in 0 : vector<32x128xbf16>, vector<32x128xbf16>, vector<32x128xbf16> -> vector<96x128xbf16>
    %c0_7 = arith.constant 0 : index
    %c0_8 = arith.constant 0 : index
    %c0_9 = arith.constant 0 : index
    %9 = vector.load %arg5[%c0_7, %c0_8, %c0_9] : memref<1x1x96xbf16, #tpu.memory_space<vmem>>, vector<1x1x96xbf16>
    %10 = vector.shape_cast %9 : vector<1x1x96xbf16> to vector<1x96xbf16>
    %cst = arith.constant dense<0.000000e+00> : vector<1x128xf32>
    %11 = tpu.matmul %10, %8, %cst {dimension_numbers = #tpu.dot_dimension_numbers<[1], [0], [0], [1], [0, 0, 1, 1], [], []>} : vector<1x96xbf16>, vector<96x128xbf16>, vector<1x128xf32> -> vector<1x128xf32>
    %c0_10 = arith.constant 0 : index
    %c0_11 = arith.constant 0 : index
    %c0_12 = arith.constant 0 : index
    %12 = vector.load %arg6[%c0_10, %c0_11, %c0_12] : memref<1x1x1xf32, #tpu.memory_space<vmem>>, vector<1x1x1xf32>
    %13 = vector.shape_cast %12 : vector<1x1x1xf32> to vector<1x1xf32>
    %14 = vector.broadcast %13 : vector<1x1xf32> to vector<1x128xf32>
    %15 = arith.addf %11, %14 : vector<1x128xf32>
    %c0_13 = arith.constant 0 : index
    %c0_14 = arith.constant 0 : index
    %c0_15 = arith.constant 0 : index
    %16 = vector.load %arg7[%c0_13, %c0_14, %c0_15] : memref<1x1x128xf32, #tpu.memory_space<vmem>>, vector<1x1x128xf32>
    %17 = vector.shape_cast %16 : vector<1x1x128xf32> to vector<1x128xf32>
    %18 = vector.shape_cast %15 : vector<1x128xf32> to vector<1x1x128xf32>
    tpu.vector_store %arg7[%c0_13, %c0_14, %c0_15], %18 {strides = array<i32>} : memref<1x1x128xf32, #tpu.memory_space<vmem>>, vector<1x1x128xf32>,
    %19 = arith.truncf %15 : vector<1x128xf32> to vector<1x128xbf16>
    %c0_16 = arith.constant 0 : index
    %c0_17 = arith.constant 0 : index
    %c0_18 = arith.constant 0 : index
    %20 = vector.load %arg8[%c0_16, %c0_17, %c0_18] : memref<1x1x128xbf16, #tpu.memory_space<vmem>>, vector<1x1x128xbf16>
    %21 = vector.shape_cast %20 : vector<1x1x128xbf16> to vector<1x128xbf16>
    %22 = vector.shape_cast %19 : vector<1x128xbf16> to vector<1x1x128xbf16>
    tpu.vector_store %arg8[%c0_16, %c0_17, %c0_18], %22 {strides = array<i32>} : memref<1x1x128xbf16, #tpu.memory_space<vmem>>, vector<1x1x128xbf16>,
    return
  }
  func.func @transform_0(%arg0: i32, %arg1: i32, %arg2: i32) -> (i32, i32, i32, i32) {
    %c0_i32 = arith.constant 0 : i32
    %c0_i32_0 = arith.constant 0 : i32
    return %arg0, %c0_i32, %arg1, %arg2 : i32, i32, i32, i32
  }
  func.func @transform_1(%arg0: i32, %arg1: i32, %arg2: i32) -> (i32, i32, i32, i32) {
    %c1_i32 = arith.constant 1 : i32
    %0 = arith.muli %arg0, %c1_i32 : i32
    %1 = arith.addi %0, %arg2 : i32
    %c0_i32 = arith.constant 0 : i32
    %c0_i32_0 = arith.constant 0 : i32
    %c0_i32_1 = arith.constant 0 : i32
    return %1, %c0_i32, %arg1, %c0_i32_0 : i32, i32, i32, i32
  }
  func.func @transform_2(%arg0: i32, %arg1: i32, %arg2: i32) -> (i32, i32, i32) {
    %c0_i32 = arith.constant 0 : i32
    %c0_i32_0 = arith.constant 0 : i32
    %c0_i32_1 = arith.constant 0 : i32
    return %arg1, %c0_i32, %c0_i32_0 : i32, i32, i32
  }
  func.func @transform_3(%arg0: i32, %arg1: i32, %arg2: i32) -> (i32, i32, i32) {
    %c0_i32 = arith.constant 0 : i32
    %c0_i32_0 = arith.constant 0 : i32
    %c0_i32_1 = arith.constant 0 : i32
    return %arg1, %c0_i32, %c0_i32_0 : i32, i32, i32
  }
  func.func @transform_4(%arg0: i32, %arg1: i32, %arg2: i32) -> (i32, i32, i32) {
    %c0_i32 = arith.constant 0 : i32
    return %arg0, %arg1, %arg2 : i32, i32, i32
  }
  func.func @transform_5(%arg0: i32, %arg1: i32, %arg2: i32) -> (i32, i32, i32) {
    %c0_i32 = arith.constant 0 : i32
    return %arg0, %arg1, %arg2 : i32, i32, i32
  }
}

</mosaic_0001>

<llo_original>
// kernel: _lambda_.6
$region0: #{_lambda_.6}
  #allocation0 [shape = 'u32[]', space=smem, size = 0x4, offset = 0x4, fixed_abs, tag = 'smem constant byte address 0x4 - core index']
  #allocation1 [shape = 'u32[144,128]{1,0:T(1,128)}', space=vmem, size = 0x12000, scoped, tag = 'internal scratch']
  %s0 = inlined_call_operand.vmem [shape: bf16[2,2,8,128], index: 0, kind: input, shape index: {}]
  %s1 = inlined_call_operand.vmem [shape: bf16[2,2,8,10], index: 1, kind: input, shape index: {}]
  %s2 = inlined_call_operand.vmem [shape: bf16[1,8,168], index: 2, kind: input, shape index: {}]
  %s3 = inlined_call_operand.vmem [shape: f32[1,8,1], index: 3, kind: input, shape index: {}]
  %s4 = inlined_call_operand.hbm [shape: f32[2,8,128], index: 4, kind: output, shape index: {0}]
  %s5 = inlined_call_operand.vmem [shape: bf16[2,8,128], index: 5, kind: output, shape index: {1}]
  %6 = xla_tuple %s4, %s5
  %s7 = sld [smem:[#allocation0]]
  $region57: #{_lambda_.6} parent=0
    _
  %s9 = ssub.s32 1, %s7
  %s10 = scalar_select 0, %s9, %s7
  $region1: #{_lambda_.6} parent=0
    #allocation2 [shape = 'u8[8192]{0}', space=vmem, size = 0x2000, scoped, tag = 'output window, operand 0']
    #allocation3 [shape = 's32[2]{0}', space=sflag, size = 0x8, scoped, tag = 'scoped memory for _lambda_.6']
    %11 = vsyncpa [#allocation3], 0
    %s12 = scalar_lea.sflag [#allocation3], 1
    %13 = vsyncpa %s12, 0
    loop: start=0, step=1, limit=4
    $region2: #{_lambda_.6} parent=1 // loop_pre_header
      _
    $region3: #{_lambda_.6} parent=1 // loop_header
      %s15 = sphi 0, %s19
      %p16 = scmp.ge.s32.totalorder %s15, 4
      %s22 = sphi 0, %s41
      %s23 = sphi 0, %s37
      %s24 = sphi 0, %s33
      %s25 = sphi 0, %s22
      %s26 = sphi 0, %s23
      %s27 = sphi 0, %s24
      %s28 = sphi 0, %s25
      %s29 = sphi 0, %s26
      %s30 = sphi 0, %s27
      %s48 = sphi 0, %s50
      %s51 = sphi 0, %s48
      %s52 = sphi 0, %s51
      %s68 = sphi 0, %s52
      %s78 = sphi 0, %s80
      %s81 = sphi 0, %s78
      %s82 = sphi 0, %s81
      %s98 = sphi 0, %s82
      %s104 = sphi 0, %s106
      %s107 = sphi 0, %s104
      %s108 = sphi 0, %s107
      %s124 = sphi 0, %s108
      %s130 = sphi 0, %s132
      %s133 = sphi 0, %s130
      %s134 = sphi 0, %s133
      %s150 = sphi 0, %s134
      %s160 = sphi 0, %s162
      %s163 = sphi 0, %s160
      %s164 = sphi 0, %s163
      %s180 = sphi 0, %s164
      %s190 = sphi 0, %s192
      %s193 = sphi 0, %s190
      %s194 = sphi 0, %s193
      %s210 = sphi 0, %s194
    $region4: #{_lambda_.6} parent=1 // loop_header_branch
      %18 = sbr.rel (%p16) target = $region8
    $region5: #{_lambda_.6} parent=1 // loop_body
      %s20 = ssub.s32 %s15, 1
      %s21 = ssub.s32 %s15, 2
      %s31 = sadd.s32 1, %s24
      %p32 = scmp.ge.s32.totalorder %s31, 1
      %s33 = scalar_select %p32, 0, %s31
      %s34 = sadd.s32 1, %s23
      %s35 = scalar_select %p32, %s34, %s23
      %p36 = scmp.ge.s32.totalorder %s35, 1
      %s37 = scalar_select %p36, 0, %s35
      %s38 = sadd.s32 1, %s22
      %s39 = scalar_select %p36, %s38, %s22
      %p40 = scmp.ge.s32.totalorder %s39, 2
      %s41 = scalar_select %p40, 0, %s39
      %s42 = ssub.s32 %s22, %s41
      %s43 = ssub.s32 %s23, %s37
      %s44 = sor.u32 %s42, %s43
      %s45 = ssub.s32 %s24, %s33
      %s46 = sor.u32 %s44, %s45
      %p47 = scmp.eq.s32.totalorder %s46, 0
      %s49 = sadd.s32 %s48, 1
      %s50 = scalar_select %p47, %s48, %s49
      %p53 = pneg %p47
      %p54 = scmp.eq.s32.totalorder %s15, 1
      %p55 = por %p53, %p54
      %p56 = scmp.ne.s32.totalorder %s48, %s51
      %p57 = scmp.eq.s32.totalorder %s15, 0
      %p58 = por %p56, %p57
      %p59 = scmp.ne.s32.totalorder %s48, %s51
      %p60 = scmp.eq.s32.totalorder %s20, 1
      %p61 = por %p59, %p60
      %p62 = scmp.ne.s32.totalorder %s51, %s52
      %p63 = scmp.eq.s32.totalorder %s20, 0
      %p64 = por %p62, %p63
      %p65 = scmp.ne.s32.totalorder %s51, %s52
      %p66 = scmp.eq.s32.totalorder %s21, 1
      %p67 = por %p65, %p66
      %p69 = scmp.ne.s32.totalorder %s52, %s68
      %p70 = scmp.eq.s32.totalorder %s21, 0
      %p71 = por %p69, %p70
      %s72 = sadd.s32 %s22, %s24
      %s73 = sadd.s32 %s41, %s33
      %s74 = ssub.s32 %s72, %s73
      %s75 = ssub.s32 %s23, %s37
      %s76 = sor.u32 %s74, %s75
      %p77 = scmp.eq.s32.totalorder %s76, 0
      %s79 = sadd.s32 %s78, 1
      %s80 = scalar_select %p77, %s78, %s79
      %p83 = pneg %p77
      %p84 = scmp.eq.s32.totalorder %s15, 1
      %p85 = por %p83, %p84
      %p86 = scmp.ne.s32.totalorder %s78, %s81
      %p87 = scmp.eq.s32.totalorder %s15, 0
      %p88 = por %p86, %p87
      %p89 = scmp.ne.s32.totalorder %s78, %s81
      %p90 = scmp.eq.s32.totalorder %s20, 1
      %p91 = por %p89, %p90
      %p92 = scmp.ne.s32.totalorder %s81, %s82
      %p93 = scmp.eq.s32.totalorder %s20, 0
      %p94 = por %p92, %p93
      %p95 = scmp.ne.s32.totalorder %s81, %s82
      %p96 = scmp.eq.s32.totalorder %s21, 1
      %p97 = por %p95, %p96
      %p99 = scmp.ne.s32.totalorder %s82, %s98
      %p100 = scmp.eq.s32.totalorder %s21, 0
      %p101 = por %p99, %p100
      %s102 = ssub.s32 %s23, %s37
      %p103 = scmp.eq.s32.totalorder %s102, 0
      %s105 = sadd.s32 %s104, 1
      %s106 = scalar_select %p103, %s104, %s105
      %p109 = pneg %p103
      %p110 = scmp.eq.s32.totalorder %s15, 1
      %p111 = por %p109, %p110
      %p112 = scmp.ne.s32.totalorder %s104, %s107
      %p113 = scmp.eq.s32.totalorder %s15, 0
      %p114 = por %p112, %p113
      %p115 = scmp.ne.s32.totalorder %s104, %s107
      %p116 = scmp.eq.s32.totalorder %s20, 1
      %p117 = por %p115, %p116
      %p118 = scmp.ne.s32.totalorder %s107, %s108
      %p119 = scmp.eq.s32.totalorder %s20, 0
      %p120 = por %p118, %p119
      %p121 = scmp.ne.s32.totalorder %s107, %s108
      %p122 = scmp.eq.s32.totalorder %s21, 1
      %p123 = por %p121, %p122
      %p125 = scmp.ne.s32.totalorder %s108, %s124
      %p126 = scmp.eq.s32.totalorder %s21, 0
      %p127 = por %p125, %p126
      %s128 = ssub.s32 %s23, %s37
      %p129 = scmp.eq.s32.totalorder %s128, 0
      %s131 = sadd.s32 %s130, 1
      %s132 = scalar_select %p129, %s130, %s131
      %p135 = pneg %p129
      %p136 = scmp.eq.s32.totalorder %s15, 1
      %p137 = por %p135, %p136
      %p138 = scmp.ne.s32.totalorder %s130, %s133
      %p139 = scmp.eq.s32.totalorder %s15, 0
      %p140 = por %p138, %p139
      %p141 = scmp.ne.s32.totalorder %s130, %s133
      %p142 = scmp.eq.s32.totalorder %s20, 1
      %p143 = por %p141, %p142
      %p144 = scmp.ne.s32.totalorder %s133, %s134
      %p145 = scmp.eq.s32.totalorder %s20, 0
      %p146 = por %p144, %p145
      %p147 = scmp.ne.s32.totalorder %s133, %s134
      %p148 = scmp.eq.s32.totalorder %s21, 1
      %p149 = por %p147, %p148
      %p151 = scmp.ne.s32.totalorder %s134, %s150
      %p152 = scmp.eq.s32.totalorder %s21, 0
      %p153 = por %p151, %p152
      %s154 = ssub.s32 %s22, %s41
      %s155 = ssub.s32 %s23, %s37
      %s156 = sor.u32 %s154, %s155
      %s157 = ssub.s32 %s24, %s33
      %s158 = sor.u32 %s156, %s157
      %p159 = scmp.eq.s32.totalorder %s158, 0
      %s161 = sadd.s32 %s160, 1
      %s162 = scalar_select %p159, %s160, %s161
      %p165 = pneg %p159
      %p166 = scmp.eq.s32.totalorder %s15, 1
      %p167 = por %p165, %p166
      %p168 = scmp.ne.s32.totalorder %s160, %s163
      %p169 = scmp.eq.s32.totalorder %s15, 0
      %p170 = por %p168, %p169
      %p171 = scmp.ne.s32.totalorder %s160, %s163
      %p172 = scmp.eq.s32.totalorder %s20, 1
      %p173 = por %p171, %p172
      %p174 = scmp.ne.s32.totalorder %s163, %s164
      %p175 = scmp.eq.s32.totalorder %s20, 0
      %p176 = por %p174, %p175
      %p177 = scmp.ne.s32.totalorder %s163, %s164
      %p178 = scmp.eq.s32.totalorder %s21, 1
      %p179 = por %p177, %p178
      %p181 = scmp.ne.s32.totalorder %s164, %s180
      %p182 = scmp.eq.s32.totalorder %s21, 0
      %p183 = por %p181, %p182
      %s184 = ssub.s32 %s22, %s41
      %s185 = ssub.s32 %s23, %s37
      %s186 = sor.u32 %s184, %s185
      %s187 = ssub.s32 %s24, %s33
      %s188 = sor.u32 %s186, %s187
      %p189 = scmp.eq.s32.totalorder %s188, 0
      %s191 = sadd.s32 %s190, 1
      %s192 = scalar_select %p189, %s190, %s191
      %p195 = pneg %p189
      %p196 = scmp.eq.s32.totalorder %s15, 1
      %p197 = por %p195, %p196
      %p198 = scmp.ne.s32.totalorder %s190, %s193
      %p199 = scmp.eq.s32.totalorder %s15, 0
      %p200 = por %p198, %p199
      %p201 = scmp.ne.s32.totalorder %s190, %s193
      %p202 = scmp.eq.s32.totalorder %s20, 1
      %p203 = por %p201, %p202
      %p204 = scmp.ne.s32.totalorder %s193, %s194
      %p205 = scmp.eq.s32.totalorder %s20, 0
      %p206 = por %p204, %p205
      %p207 = scmp.ne.s32.totalorder %s193, %s194
      %p208 = scmp.eq.s32.totalorder %s21, 1
      %p209 = por %p207, %p208
      %p211 = scmp.ne.s32.totalorder %s194, %s210
      %p212 = scmp.eq.s32.totalorder %s21, 0
      %p213 = por %p211, %p212
      %p214 = scmp.le.s32.totalorder 1, %s15
      %p215 = scmp.lt.s32.totalorder %s15, 3
      %p216 = pnand %p214, %p215
      %p217 = pneg %p216
      // Predicated region
      $region9: #{_lambda_.6} parent=5 // pred_check
        _
      $region10: #{_lambda_.6} parent=5 // pred_check_branch
        %219 = sbr.rel (%p216) target = $region12
      $region11: #{_lambda_.6} parent=5 // pred_region
        %s220 = ssub.s32 %s15, 1
        // Predicated region
        $region13: #{_lambda_.6} parent=11 // pred_check
          %p221 = pneg %p120
        $region14: #{_lambda_.6} parent=11 // pred_check_branch
          %223 = sbr.rel (%p221) target = $region16
        $region15: #{_lambda_.6} parent=11 // pred_region
          %p224 = scmp.lt.s32.totalorder %s26, 0
          %s225 = scalar_select %p224, %s26, 0
          %s226 = smul.addr %s225, 2
          %s227 = smul.addr %s226, 4
          %s228 = scalar_lea.vmem %s2, %s227
        $region16: #{_lambda_.6} parent=11 // pred_fallthru
          _
        // Predicated region
        $region17: #{_lambda_.6} parent=11 // pred_check
          %p229 = pneg %p146
        $region18: #{_lambda_.6} parent=11 // pred_check_branch
          %231 = sbr.rel (%p229) target = $region20
        $region19: #{_lambda_.6} parent=11 // pred_region
          %p232 = scmp.lt.s32.totalorder %s26, 0
          %s233 = scalar_select %p232, %s26, 0
          %s234 = smul.addr %s233, 8
          %s235 = scalar_lea.vmem %s3, %s234
        $region20: #{_lambda_.6} parent=11 // pred_fallthru
          _
      $region12: #{_lambda_.6} parent=5 // pred_fallthru
        _
      %p236 = scmp.lt.s32.totalorder %s15, 2
      // Predicated region
      $region21: #{_lambda_.6} parent=5 // pred_check
        %p237 = pneg %p236
      $region22: #{_lambda_.6} parent=5 // pred_check_branch
        %239 = sbr.rel (%p237) target = $region24
      $region23: #{_lambda_.6} parent=5 // pred_region
        // Predicated region
        $region25: #{_lambda_.6} parent=23 // pred_check
          %p240 = pneg %p58
        $region26: #{_lambda_.6} parent=23 // pred_check_branch
          %242 = sbr.rel (%p240) target = $region28
        $region27: #{_lambda_.6} parent=23 // pred_region
          %p243 = scmp.lt.s32.totalorder %s22, 1
          %s244 = scalar_select %p243, %s22, 1
          %p245 = scmp.lt.s32.totalorder %s23, 0
          %s246 = scalar_select %p245, %s23, 0
          %p247 = scmp.lt.s32.totalorder %s24, 0
          %s248 = scalar_select %p247, %s24, 0
          %s249 = sadd.s32 %s248, %s246
          %s250 = smul.addr %s244, 2
          %s251 = sadd.s32 %s249, %s250
          %s252 = smul.addr %s251, 4
          %s253 = scalar_lea.vmem %s0, %s252
        $region28: #{_lambda_.6} parent=23 // pred_fallthru
          _
        // Predicated region
        $region29: #{_lambda_.6} parent=23 // pred_check
          %p254 = pneg %p88
        $region30: #{_lambda_.6} parent=23 // pred_check_branch
          %256 = sbr.rel (%p254) target = $region32
        $region31: #{_lambda_.6} parent=23 // pred_region
          %s257 = sadd.s32 %s22, %s24
          %p258 = scmp.lt.s32.totalorder %s257, 1
          %s259 = scalar_select %p258, %s257, 1
          %p260 = scmp.lt.s32.totalorder %s23, 0
          %s261 = scalar_select %p260, %s23, 0
          %s262 = smul.addr %s259, 2
          %s263 = sadd.s32 %s261, %s262
          %s264 = smul.addr %s263, 4
          %s265 = scalar_lea.vmem %s1, %s264
          %s266 = sadd.s32 %s22, %s24
        $region32: #{_lambda_.6} parent=23 // pred_fallthru
          _
      $region24: #{_lambda_.6} parent=5 // pred_fallthru
        _
      %p267 = scmp.le.s32.totalorder 1, %s15
      %p268 = scmp.lt.s32.totalorder %s15, 3
      %p269 = pnand %p267, %p268
      %p270 = pneg %p269
      // Predicated region
      $region33: #{_lambda_.6} parent=5 // pred_check
        _
      $region34: #{_lambda_.6} parent=5 // pred_check_branch
        %272 = sbr.rel (%p269) target = $region36
      $region35: #{_lambda_.6} parent=5 // pred_region
        %s273 = ssub.s32 %s15, 1
        %p274 = scmp.lt.s32.totalorder %s25, 1
        %s275 = scalar_select %p274, %s25, 1
        %p276 = scmp.lt.s32.totalorder %s26, 0
        %s277 = scalar_select %p276, %s26, 0
        %p278 = scmp.lt.s32.totalorder %s27, 0
        %s279 = scalar_select %p278, %s27, 0
        %s280 = sadd.s32 %s279, %s277
        %s281 = smul.addr %s275, 2
        %s282 = sadd.s32 %s280, %s281
        %s283 = smul.addr %s282, 4
        %s284 = scalar_lea.vmem %s0, %s283
        %p285 = pneg %p64
        %p286 = pneg %p61
        %s287 = sadd.s32 %s25, %s27
        %p288 = scmp.lt.s32.totalorder %s287, 1
        %s289 = scalar_select %p288, %s287, 1
        %p290 = scmp.lt.s32.totalorder %s26, 0
        %s291 = scalar_select %p290, %s26, 0
        %s292 = smul.addr %s289, 2
        %s293 = sadd.s32 %s291, %s292
        %s294 = smul.addr %s293, 4
        %s295 = scalar_lea.vmem %s1, %s294
        %p296 = pneg %p94
        %p297 = pneg %p91
        %p298 = scmp.lt.s32.totalorder %s26, 0
        %s299 = scalar_select %p298, %s26, 0
        %s300 = smul.addr %s299, 2
        %s301 = smul.addr %s300, 4
        %s302 = scalar_lea.vmem %s2, %s301
        %p303 = pneg %p120
        %p304 = pneg %p117
        %p305 = scmp.lt.s32.totalorder %s26, 0
        %s306 = scalar_select %p305, %s26, 0
        %s307 = smul.addr %s306, 8
        %s308 = scalar_lea.vmem %s3, %s307
        %p309 = pneg %p146
        %p310 = pneg %p143
        %p311 = pneg %p176
        %p312 = pneg %p173
        %s313 = sand.u32 %s163, 1
        %s314 = scalar_lea.sflag [#allocation3], %s313
        %s315 = sand.u32 %s163, 1
        %s316 = smul.addr %s315, 8
        %s317 = scalar_lea.vmem [#allocation2], %s316
        %p318 = pneg %p206
        %p319 = pneg %p203
        %p320 = scmp.lt.s32.totalorder %s25, 1
        %s321 = scalar_select %p320, %s25, 1
        %p322 = scmp.lt.s32.totalorder %s26, 0
        %s323 = scalar_select %p322, %s26, 0
        %p324 = scmp.lt.s32.totalorder %s27, 0
        %s325 = scalar_select %p324, %s27, 0
        %s326 = sadd.s32 %s325, %s323
        %s327 = sadd.s32 %s326, %s321
        %s328 = smul.addr %s327, 4
        %s329 = scalar_lea.vmem %s5, %s328
        %p330 = scmp.lt.s32.totalorder %s25, 1
        %s331 = scalar_select %p330, %s25, 1
        %p332 = scmp.lt.s32.totalorder %s26, 0
        %s333 = scalar_select %p332, %s26, 0
        %p334 = scmp.lt.s32.totalorder %s27, 0
        %s335 = scalar_select %p334, %s27, 0
        %s336 = sadd.s32 %s335, %s333
        %s337 = smul.addr %s331, 2
        %s338 = sadd.s32 %s336, %s337
        %s339 = smul.addr %s338, 4
        %s340 = scalar_lea.vmem %s0, %s339
        %s341 = sadd.s32 %s25, %s27
        %p342 = scmp.lt.s32.totalorder %s341, 1
        %s343 = scalar_select %p342, %s341, 1
        %p344 = scmp.lt.s32.totalorder %s26, 0
        %s345 = scalar_select %p344, %s26, 0
        %s346 = smul.addr %s343, 2
        %s347 = sadd.s32 %s345, %s346
        %s348 = smul.addr %s347, 4
        %s349 = scalar_lea.vmem %s1, %s348
        %s350 = sadd.s32 %s25, %s27
        %p351 = scmp.lt.s32.totalorder %s26, 0
        %s352 = scalar_select %p351, %s26, 0
        %s353 = smul.addr %s352, 2
        %s354 = smul.addr %s353, 4
        %s355 = scalar_lea.vmem %s2, %s354
        %p356 = scmp.lt.s32.totalorder %s26, 0
        %s357 = scalar_select %p356, %s26, 0
        %s358 = smul.addr %s357, 8
        %s359 = scalar_lea.vmem %s3, %s358
        %p360 = scmp.lt.s32.totalorder %s25, 1
        %s361 = scalar_select %p360, %s25, 1
        %p362 = scmp.lt.s32.totalorder %s26, 0
        %s363 = scalar_select %p362, %s26, 0
        %p364 = scmp.lt.s32.totalorder %s27, 0
        %s365 = scalar_select %p364, %s27, 0
        %s366 = sadd.s32 %s365, %s363
        %s367 = sadd.s32 %s366, %s361
        %s368 = smul.addr %s367, 4
        %s369 = scalar_lea.vmem %s5, %s368
        %v371 = vld [vmem:[%s340] sm:$0xf]
        %v372 = vld [vmem:[%s349] sm:$0xf]
        %s373 = scalar_lea.vmem %s340, 4
        %v374 = vld [vmem:[%s373] sm:$0xf]
        %s375 = scalar_lea.vmem %s349, 4
        %v376 = vld [vmem:[%s375] sm:$0xf]
        %v378 = vrot.slane %v374, 4
        %381 = vrot.lane.b32.xlu0 %v371, 127
        %v382 = vpop.permute.xlu0 %381
        %383 = vrot.lane.b32.xlu0 %v372, 127
        %v384 = vpop.permute.xlu0 %383
        %vm385 = vcmask 1039360
        %v386 = vsel %vm385, %v382, %v384
        %v388 = vrot.slane %v376, 4
        %389 = vrot.lane.b32.xlu0 %v378, 127
        %v390 = vpop.permute.xlu0 %389
        %391 = vrot.lane.b32.xlu0 %v388, 127
        %v392 = vpop.permute.xlu0 %391
        %v393 = vsel %vm385, %v390, %v392
        %394 = vrot.lane.b32.xlu0 %v371, 126
        %v395 = vpop.permute.xlu0 %394
        %396 = vrot.lane.b32.xlu0 %v372, 126
        %v397 = vpop.permute.xlu0 %396
        %vm398 = vcmask 1031168
        %v399 = vsel %vm398, %v395, %v397
        %400 = vrot.lane.b32.xlu0 %v378, 126
        %v401 = vpop.permute.xlu0 %400
        %402 = vrot.lane.b32.xlu0 %v388, 126
        %v403 = vpop.permute.xlu0 %402
        %v404 = vsel %vm398, %v401, %v403
        %405 = vrot.lane.b32.xlu0 %v371, 125
        %v406 = vpop.permute.xlu0 %405
        %407 = vrot.lane.b32.xlu0 %v372, 125
        %v408 = vpop.permute.xlu0 %407
        %vm409 = vcmask 1022976
        %v410 = vsel %vm409, %v406, %v408
        %411 = vrot.lane.b32.xlu0 %v378, 125
        %v412 = vpop.permute.xlu0 %411
        %413 = vrot.lane.b32.xlu0 %v388, 125
        %v414 = vpop.permute.xlu0 %413
        %v415 = vsel %vm409, %v412, %v414
        %416 = vrot.lane.b32.xlu0 %v371, 124
        %v417 = vpop.permute.xlu0 %416
        %418 = vrot.lane.b32.xlu0 %v372, 124
        %v419 = vpop.permute.xlu0 %418
        %vm420 = vcmask 1014784
        %v421 = vsel %vm420, %v417, %v419
        %422 = vrot.lane.b32.xlu0 %v378, 124
        %v423 = vpop.permute.xlu0 %422
        %424 = vrot.lane.b32.xlu0 %v388, 124
        %v425 = vpop.permute.xlu0 %424
        %v426 = vsel %vm420, %v423, %v425
        %427 = vrot.lane.b32.xlu0 %v371, 123
        %v428 = vpop.permute.xlu0 %427
        %429 = vrot.lane.b32.xlu0 %v372, 123
        %v430 = vpop.permute.xlu0 %429
        %vm431 = vcmask 1006592
        %v432 = vsel %vm431, %v428, %v430
        %433 = vrot.lane.b32.xlu0 %v378, 123
        %v434 = vpop.permute.xlu0 %433
        %435 = vrot.lane.b32.xlu0 %v388, 123
        %v436 = vpop.permute.xlu0 %435
        %v437 = vsel %vm431, %v434, %v436
        %438 = vrot.lane.b32.xlu0 %v371, 122
        %v439 = vpop.permute.xlu0 %438
        %440 = vrot.lane.b32.xlu0 %v372, 122
        %v441 = vpop.permute.xlu0 %440
        %vm442 = vcmask 998400
        %v443 = vsel %vm442, %v439, %v441
        %444 = vrot.lane.b32.xlu0 %v378, 122
        %v445 = vpop.permute.xlu0 %444
        %446 = vrot.lane.b32.xlu0 %v388, 122
        %v447 = vpop.permute.xlu0 %446
        %v448 = vsel %vm442, %v445, %v447
        %449 = vrot.lane.b32.xlu0 %v371, 121
        %v450 = vpop.permute.xlu0 %449
        %451 = vrot.lane.b32.xlu0 %v372, 121
        %v452 = vpop.permute.xlu0 %451
        %vm453 = vcmask 990208
        %v454 = vsel %vm453, %v450, %v452
        %455 = vrot.lane.b32.xlu0 %v378, 121
        %v456 = vpop.permute.xlu0 %455
        %457 = vrot.lane.b32.xlu0 %v388, 121
        %v458 = vpop.permute.xlu0 %457
        %v459 = vsel %vm453, %v456, %v458
        %vm460 = vcmask 1043456
        %v463 = vsel %vm460, %v371, %v378
        %v467 = vsel %vm460, %v386, %v393
        %v471 = vsel %vm460, %v399, %v404
        %v475 = vsel %vm460, %v410, %v415
        %v479 = vsel %vm460, %v421, %v426
        %v483 = vsel %vm460, %v432, %v437
        %v487 = vsel %vm460, %v443, %v448
        %v491 = vsel %vm460, %v454, %v459
        %v495 = vsel %vm460, %v372, %v388
        %v498 = vsel %vm460, %v384, %v392
        %503 = vrot.lane.b32.xlu0 %v463, 120
        %v504 = vpop.permute.xlu0 %503
        %505 = vrot.lane.b32.xlu0 %v495, 120
        %v506 = vpop.permute.xlu0 %505
        %507 = vrot.lane.b32.xlu0 %v467, 120
        %v508 = vpop.permute.xlu0 %507
        %509 = vrot.lane.b32.xlu0 %v498, 120
        %v510 = vpop.permute.xlu0 %509
        %511 = vrot.lane.b32.xlu0 %v399, 120
        %v512 = vpop.permute.xlu0 %511
        %513 = vrot.lane.b32.xlu0 %v397, 120
        %v514 = vpop.permute.xlu0 %513
        %vm515 = vcmask 982016
        %v516 = vsel %vm515, %v504, %v506
        %v517 = vsel %vm515, %v508, %v510
        %v518 = vsel %vm515, %v512, %v514
        %v521 = vld [vmem:[%s355] sm:$0xff]
        %v522 = vld [vmem:[%s359] sm:$0xff]
        %524 = vset.pattern.permute.xlu0 0
        %525 = vperm.xlu0 %524, %v522
        %v526 = vpop.permute.xlu0 %525
        %v529 = vunpack.c.l.b16 %v521
        %v530 = vunpack.c.h.b16 %v521
        %v531 = vpack.c.b16 %v529, %v529
        %v532 = vpack.c.b16 %v530, %v530
        %vm534 = vcmask 326656
        %v536 = vsel %vm534, %v532, 0
        %v539 = vsel %vm460, %v518, 0
        %541 = vmatprep.subr.bf16.mxu0 0
        %542 = vmatpush1.bf16.msra.mxu0 %v463
        %543 = vmatprep.subr.bf16.mxu0 0
        %544 = vmatpush1.bf16.msra.mxu0 %v467
        %545 = vmatprep.subr.bf16.mxu0 0
        %546 = vmatpush1.bf16.msra.mxu0 %v471
        %547 = vmatprep.subr.bf16.mxu0 0
        %548 = vmatpush1.bf16.msra.mxu0 %v475
        %549 = vmatprep.subr.bf16.mxu0 0
        %550 = vmatpush1.bf16.msra.mxu0 %v479
        %551 = vmatprep.subr.bf16.mxu0 0
        %552 = vmatpush1.bf16.msra.mxu0 %v483
        %553 = vmatprep.subr.bf16.mxu0 0
        %554 = vmatpush1.bf16.msra.mxu0 %v487
        %555 = vmatprep.subr.bf16.mxu0 0
        %556 = vmatpush1.bf16.msra.mxu0 %v491
        %557 = vmatprep.subr.bf16.mxu0 0
        %558 = vmatpush1.bf16.msra.mxu0 %v516
        %559 = vmatprep.subr.bf16.mxu0 0
        %560 = vmatpush1.bf16.msra.mxu0 %v517
        %561 = vmatprep.subr.bf16.mxu0 0
        %562 = vmatpush1.bf16.msra.mxu0 %v539
        %563 = vmatprep.subr.bf16.mxu0 0
        %564 = vmatpush1.bf16.msra.mxu0 0
        %565 = vmatprep.subr.bf16.mxu0 0
        %566 = vmatpush1.bf16.msra.mxu0 0
        %567 = vmatprep.subr.bf16.mxu0 0
        %568 = vmatpush1.bf16.msra.mxu0 0
        %569 = vmatprep.subr.bf16.mxu0 0
        %570 = vmatpush1.bf16.msra.mxu0 0
        %571 = vmatprep.subr.bf16.mxu0 0
        %572 = vmatpush1.bf16.msra.mxu0 0
        %573 = vmatprep.mubr.bf16.mxu0 %v536
        %574 = vmatmul.mubr.bf16.gmra.mrb[0].mxu0 %v531
        %v575 = vpop.f32.mrb[0].mxu0
        %v576 = vadd.f32 %v526, %v575
        %v577 = vpop.f32.mrb[0].mxu0
        %v578 = vpop.f32.mrb[0].mxu0
        %v579 = vpop.f32.mrb[0].mxu0
        %580 = vdwg.mxu0
        %vm581 = vcmp.ge.f32.partialorder %v576, 0.0
        %v582 = vmul.f32 %v576, 0.2
        %v583 = vsel %vm581, %v576, %v582
        %584 = vst [vmem:[%s317] sm:$0xff] %v583
        %v585 = vpack.c.bf16 %v583, %v583
        %586 = vst [vmem:[%s369] sm:$0xf] %v585
        %s587 = sand.u32 %s163, 1
        %s588 = scalar_lea.sflag [#allocation3], %s587
        %s589 = sand.u32 %s163, 1
        %s590 = smul.addr %s589, 8
        %s591 = scalar_lea.vmem [#allocation2], %s590
        %p592 = scmp.lt.s32.totalorder %s25, 1
        %s593 = scalar_select %p592, %s25, 1
        %p594 = scmp.lt.s32.totalorder %s26, 0
        %s595 = scalar_select %p594, %s26, 0
        %p596 = scmp.lt.s32.totalorder %s27, 0
        %s597 = scalar_select %p596, %s27, 0
        %s598 = sadd.s32 %s597, %s595
        %s599 = sadd.s32 %s598, %s593
        %s600 = smul.addr %s599, 4
        %s601 = scalar_lea.vmem %s5, %s600
        // Predicated region
        $region37: #{_lambda_.6} parent=35 // pred_check
          %p602 = pneg %p173
        $region38: #{_lambda_.6} parent=35 // pred_check_branch
          %604 = sbr.rel (%p602) target = $region40
        $region39: #{_lambda_.6} parent=35 // pred_region
          %s606 = ssub.s32 128, 128
          %607 = vsyncadd %s588, %s606
          %s608 = sadd.s32 %s27, %s26
          %s609 = sadd.s32 %s608, %s25
          %s610 = smul.addr %s609, 128
          %s611 = scalar_lea.hbm %s4, %s610
          %s613 = sshll.u32 %s591, 4
          %s614 = int_to_ptr.vmem [resolvable:$true] %s613
          %616 = dma.vmem_to_hbm [thread:$0]  %s614, 128, %s611, %s588
        $region40: #{_lambda_.6} parent=35 // pred_fallthru
          _
        // Predicated region
        $region41: #{_lambda_.6} parent=35 // pred_check
          %p617 = pneg %p203
        $region42: #{_lambda_.6} parent=35 // pred_check_branch
          %619 = sbr.rel (%p617) target = $region44
        $region43: #{_lambda_.6} parent=35 // pred_region
          _
        $region44: #{_lambda_.6} parent=35 // pred_fallthru
          _
      $region36: #{_lambda_.6} parent=5 // pred_fallthru
        _
      %p620 = scmp.le.s32.totalorder 2, %s15
      // Predicated region
      $region45: #{_lambda_.6} parent=5 // pred_check
        %p621 = pneg %p620
      $region46: #{_lambda_.6} parent=5 // pred_check_branch
        %623 = sbr.rel (%p621) target = $region48
      $region47: #{_lambda_.6} parent=5 // pred_region
        %s624 = ssub.s32 %s15, 2
        // Predicated region
        $region49: #{_lambda_.6} parent=47 // pred_check
          %p625 = pneg %p179
        $region50: #{_lambda_.6} parent=47 // pred_check_branch
          %627 = sbr.rel (%p625) target = $region52
        $region51: #{_lambda_.6} parent=47 // pred_region
          %s628 = sand.u32 %s164, 1
          %s629 = scalar_lea.sflag [#allocation3], %s628
          %s630 = sand.u32 %s164, 1
          %s631 = smul.addr %s630, 8
          %s632 = scalar_lea.vmem [#allocation2], %s631
          %633 = dma.done %s629, 128
        $region52: #{_lambda_.6} parent=47 // pred_fallthru
          _
        // Predicated region
        $region53: #{_lambda_.6} parent=47 // pred_check
          %p634 = pneg %p209
        $region54: #{_lambda_.6} parent=47 // pred_check_branch
          %636 = sbr.rel (%p634) target = $region56
        $region55: #{_lambda_.6} parent=47 // pred_region
          %p637 = scmp.lt.s32.totalorder %s28, 1
          %s638 = scalar_select %p637, %s28, 1
          %p639 = scmp.lt.s32.totalorder %s29, 0
          %s640 = scalar_select %p639, %s29, 0
          %p641 = scmp.lt.s32.totalorder %s30, 0
          %s642 = scalar_select %p641, %s30, 0
          %s643 = sadd.s32 %s642, %s640
          %s644 = sadd.s32 %s643, %s638
          %s645 = smul.addr %s644, 4
          %s646 = scalar_lea.vmem %s5, %s645
        $region56: #{_lambda_.6} parent=47 // pred_fallthru
          _
      $region48: #{_lambda_.6} parent=5 // pred_fallthru
        _
    $region6: #{_lambda_.6} parent=1 // loop_footer
      %s19 = sadd.s32 1, %s15
    $region7: #{_lambda_.6} parent=1 // loop_footer_branch
      %14 = sbr.rel target = $region3
    $region8: #{_lambda_.6} parent=1 // loop_exit
      _
    %647 = vsyncpa [#allocation3], 1
    %s648 = scalar_lea.sflag [#allocation3], 1
    %649 = vsyncpa %s648, 1

// kernel: _lambda_.5
$region0: #{_lambda_.5}
  #allocation0 [shape = 'u32[]', space=smem, size = 0x4, offset = 0x4, fixed_abs, tag = 'smem constant byte address 0x4 - core index']
  #allocation1 [shape = 'u32[144,128]{1,0:T(1,128)}', space=vmem, size = 0x12000, scoped, tag = 'internal scratch']
  %s0 = inlined_call_operand.vmem [shape: bf16[2,1,8,128], index: 0, kind: input, shape index: {}]
  %s1 = inlined_call_operand.vmem [shape: bf16[2,1,8,14], index: 1, kind: input, shape index: {}]
  %s2 = inlined_call_operand.vmem [shape: bf16[1,4,120], index: 2, kind: input, shape index: {}]
  %s3 = inlined_call_operand.vmem [shape: f32[1,4,1], index: 3, kind: input, shape index: {}]
  %s4 = inlined_call_operand.hbm [shape: f32[2,4,128], index: 4, kind: output, shape index: {0}]
  %s5 = inlined_call_operand.vmem [shape: bf16[2,4,128], index: 5, kind: output, shape index: {1}]
  %6 = xla_tuple %s4, %s5
  %s7 = sld [smem:[#allocation0]]
  $region57: #{_lambda_.5} parent=0
    _
  %s9 = ssub.s32 1, %s7
  %s10 = scalar_select 0, %s9, %s7
  $region1: #{_lambda_.5} parent=0
    #allocation2 [shape = 'u8[4096]{0}', space=vmem, size = 0x1000, scoped, tag = 'output window, operand 0']
    #allocation3 [shape = 's32[2]{0}', space=sflag, size = 0x8, scoped, tag = 'scoped memory for _lambda_.5']
    %11 = vsyncpa [#allocation3], 0
    %s12 = scalar_lea.sflag [#allocation3], 1
    %13 = vsyncpa %s12, 0
    loop: start=0, step=1, limit=4
    $region2: #{_lambda_.5} parent=1 // loop_pre_header
      _
    $region3: #{_lambda_.5} parent=1 // loop_header
      %s15 = sphi 0, %s19
      %p16 = scmp.ge.s32.totalorder %s15, 4
      %s22 = sphi 0, %s41
      %s23 = sphi 0, %s37
      %s24 = sphi 0, %s33
      %s25 = sphi 0, %s22
      %s26 = sphi 0, %s23
      %s27 = sphi 0, %s24
      %s28 = sphi 0, %s25
      %s29 = sphi 0, %s26
      %s30 = sphi 0, %s27
      %s48 = sphi 0, %s50
      %s51 = sphi 0, %s48
      %s52 = sphi 0, %s51
      %s68 = sphi 0, %s52
      %s78 = sphi 0, %s80
      %s81 = sphi 0, %s78
      %s82 = sphi 0, %s81
      %s98 = sphi 0, %s82
      %s104 = sphi 0, %s106
      %s107 = sphi 0, %s104
      %s108 = sphi 0, %s107
      %s124 = sphi 0, %s108
      %s130 = sphi 0, %s132
      %s133 = sphi 0, %s130
      %s134 = sphi 0, %s133
      %s150 = sphi 0, %s134
      %s160 = sphi 0, %s162
      %s163 = sphi 0, %s160
      %s164 = sphi 0, %s163
      %s180 = sphi 0, %s164
      %s190 = sphi 0, %s192
      %s193 = sphi 0, %s190
      %s194 = sphi 0, %s193
      %s210 = sphi 0, %s194
    $region4: #{_lambda_.5} parent=1 // loop_header_branch
      %18 = sbr.rel (%p16) target = $region8
    $region5: #{_lambda_.5} parent=1 // loop_body
      %s20 = ssub.s32 %s15, 1
      %s21 = ssub.s32 %s15, 2
      %s31 = sadd.s32 1, %s24
      %p32 = scmp.ge.s32.totalorder %s31, 1
      %s33 = scalar_select %p32, 0, %s31
      %s34 = sadd.s32 1, %s23
      %s35 = scalar_select %p32, %s34, %s23
      %p36 = scmp.ge.s32.totalorder %s35, 1
      %s37 = scalar_select %p36, 0, %s35
      %s38 = sadd.s32 1, %s22
      %s39 = scalar_select %p36, %s38, %s22
      %p40 = scmp.ge.s32.totalorder %s39, 2
      %s41 = scalar_select %p40, 0, %s39
      %s42 = ssub.s32 %s22, %s41
      %s43 = ssub.s32 %s23, %s37
      %s44 = sor.u32 %s42, %s43
      %s45 = ssub.s32 %s24, %s33
      %s46 = sor.u32 %s44, %s45
      %p47 = scmp.eq.s32.totalorder %s46, 0
      %s49 = sadd.s32 %s48, 1
      %s50 = scalar_select %p47, %s48, %s49
      %p53 = pneg %p47
      %p54 = scmp.eq.s32.totalorder %s15, 1
      %p55 = por %p53, %p54
      %p56 = scmp.ne.s32.totalorder %s48, %s51
      %p57 = scmp.eq.s32.totalorder %s15, 0
      %p58 = por %p56, %p57
      %p59 = scmp.ne.s32.totalorder %s48, %s51
      %p60 = scmp.eq.s32.totalorder %s20, 1
      %p61 = por %p59, %p60
      %p62 = scmp.ne.s32.totalorder %s51, %s52
      %p63 = scmp.eq.s32.totalorder %s20, 0
      %p64 = por %p62, %p63
      %p65 = scmp.ne.s32.totalorder %s51, %s52
      %p66 = scmp.eq.s32.totalorder %s21, 1
      %p67 = por %p65, %p66
      %p69 = scmp.ne.s32.totalorder %s52, %s68
      %p70 = scmp.eq.s32.totalorder %s21, 0
      %p71 = por %p69, %p70
      %s72 = sadd.s32 %s22, %s24
      %s73 = sadd.s32 %s41, %s33
      %s74 = ssub.s32 %s72, %s73
      %s75 = ssub.s32 %s23, %s37
      %s76 = sor.u32 %s74, %s75
      %p77 = scmp.eq.s32.totalorder %s76, 0
      %s79 = sadd.s32 %s78, 1
      %s80 = scalar_select %p77, %s78, %s79
      %p83 = pneg %p77
      %p84 = scmp.eq.s32.totalorder %s15, 1
      %p85 = por %p83, %p84
      %p86 = scmp.ne.s32.totalorder %s78, %s81
      %p87 = scmp.eq.s32.totalorder %s15, 0
      %p88 = por %p86, %p87
      %p89 = scmp.ne.s32.totalorder %s78, %s81
      %p90 = scmp.eq.s32.totalorder %s20, 1
      %p91 = por %p89, %p90
      %p92 = scmp.ne.s32.totalorder %s81, %s82
      %p93 = scmp.eq.s32.totalorder %s20, 0
      %p94 = por %p92, %p93
      %p95 = scmp.ne.s32.totalorder %s81, %s82
      %p96 = scmp.eq.s32.totalorder %s21, 1
      %p97 = por %p95, %p96
      %p99 = scmp.ne.s32.totalorder %s82, %s98
      %p100 = scmp.eq.s32.totalorder %s21, 0
      %p101 = por %p99, %p100
      %s102 = ssub.s32 %s23, %s37
      %p103 = scmp.eq.s32.totalorder %s102, 0
      %s105 = sadd.s32 %s104, 1
      %s106 = scalar_select %p103, %s104, %s105
      %p109 = pneg %p103
      %p110 = scmp.eq.s32.totalorder %s15, 1
      %p111 = por %p109, %p110
      %p112 = scmp.ne.s32.totalorder %s104, %s107
      %p113 = scmp.eq.s32.totalorder %s15, 0
      %p114 = por %p112, %p113
      %p115 = scmp.ne.s32.totalorder %s104, %s107
      %p116 = scmp.eq.s32.totalorder %s20, 1
      %p117 = por %p115, %p116
      %p118 = scmp.ne.s32.totalorder %s107, %s108
      %p119 = scmp.eq.s32.totalorder %s20, 0
      %p120 = por %p118, %p119
      %p121 = scmp.ne.s32.totalorder %s107, %s108
      %p122 = scmp.eq.s32.totalorder %s21, 1
      %p123 = por %p121, %p122
      %p125 = scmp.ne.s32.totalorder %s108, %s124
      %p126 = scmp.eq.s32.totalorder %s21, 0
      %p127 = por %p125, %p126
      %s128 = ssub.s32 %s23, %s37
      %p129 = scmp.eq.s32.totalorder %s128, 0
      %s131 = sadd.s32 %s130, 1
      %s132 = scalar_select %p129, %s130, %s131
      %p135 = pneg %p129
      %p136 = scmp.eq.s32.totalorder %s15, 1
      %p137 = por %p135, %p136
      %p138 = scmp.ne.s32.totalorder %s130, %s133
      %p139 = scmp.eq.s32.totalorder %s15, 0
      %p140 = por %p138, %p139
      %p141 = scmp.ne.s32.totalorder %s130, %s133
      %p142 = scmp.eq.s32.totalorder %s20, 1
      %p143 = por %p141, %p142
      %p144 = scmp.ne.s32.totalorder %s133, %s134
      %p145 = scmp.eq.s32.totalorder %s20, 0
      %p146 = por %p144, %p145
      %p147 = scmp.ne.s32.totalorder %s133, %s134
      %p148 = scmp.eq.s32.totalorder %s21, 1
      %p149 = por %p147, %p148
      %p151 = scmp.ne.s32.totalorder %s134, %s150
      %p152 = scmp.eq.s32.totalorder %s21, 0
      %p153 = por %p151, %p152
      %s154 = ssub.s32 %s22, %s41
      %s155 = ssub.s32 %s23, %s37
      %s156 = sor.u32 %s154, %s155
      %s157 = ssub.s32 %s24, %s33
      %s158 = sor.u32 %s156, %s157
      %p159 = scmp.eq.s32.totalorder %s158, 0
      %s161 = sadd.s32 %s160, 1
      %s162 = scalar_select %p159, %s160, %s161
      %p165 = pneg %p159
      %p166 = scmp.eq.s32.totalorder %s15, 1
      %p167 = por %p165, %p166
      %p168 = scmp.ne.s32.totalorder %s160, %s163
      %p169 = scmp.eq.s32.totalorder %s15, 0
      %p170 = por %p168, %p169
      %p171 = scmp.ne.s32.totalorder %s160, %s163
      %p172 = scmp.eq.s32.totalorder %s20, 1
      %p173 = por %p171, %p172
      %p174 = scmp.ne.s32.totalorder %s163, %s164
      %p175 = scmp.eq.s32.totalorder %s20, 0
      %p176 = por %p174, %p175
      %p177 = scmp.ne.s32.totalorder %s163, %s164
      %p178 = scmp.eq.s32.totalorder %s21, 1
      %p179 = por %p177, %p178
      %p181 = scmp.ne.s32.totalorder %s164, %s180
      %p182 = scmp.eq.s32.totalorder %s21, 0
      %p183 = por %p181, %p182
      %s184 = ssub.s32 %s22, %s41
      %s185 = ssub.s32 %s23, %s37
      %s186 = sor.u32 %s184, %s185
      %s187 = ssub.s32 %s24, %s33
      %s188 = sor.u32 %s186, %s187
      %p189 = scmp.eq.s32.totalorder %s188, 0
      %s191 = sadd.s32 %s190, 1
      %s192 = scalar_select %p189, %s190, %s191
      %p195 = pneg %p189
      %p196 = scmp.eq.s32.totalorder %s15, 1
      %p197 = por %p195, %p196
      %p198 = scmp.ne.s32.totalorder %s190, %s193
      %p199 = scmp.eq.s32.totalorder %s15, 0
      %p200 = por %p198, %p199
      %p201 = scmp.ne.s32.totalorder %s190, %s193
      %p202 = scmp.eq.s32.totalorder %s20, 1
      %p203 = por %p201, %p202
      %p204 = scmp.ne.s32.totalorder %s193, %s194
      %p205 = scmp.eq.s32.totalorder %s20, 0
      %p206 = por %p204, %p205
      %p207 = scmp.ne.s32.totalorder %s193, %s194
      %p208 = scmp.eq.s32.totalorder %s21, 1
      %p209 = por %p207, %p208
      %p211 = scmp.ne.s32.totalorder %s194, %s210
      %p212 = scmp.eq.s32.totalorder %s21, 0
      %p213 = por %p211, %p212
      %p214 = scmp.le.s32.totalorder 1, %s15
      %p215 = scmp.lt.s32.totalorder %s15, 3
      %p216 = pnand %p214, %p215
      %p217 = pneg %p216
      // Predicated region
      $region9: #{_lambda_.5} parent=5 // pred_check
        _
      $region10: #{_lambda_.5} parent=5 // pred_check_branch
        %219 = sbr.rel (%p216) target = $region12
      $region11: #{_lambda_.5} parent=5 // pred_region
        %s220 = ssub.s32 %s15, 1
        // Predicated region
        $region13: #{_lambda_.5} parent=11 // pred_check
          %p221 = pneg %p120
        $region14: #{_lambda_.5} parent=11 // pred_check_branch
          %223 = sbr.rel (%p221) target = $region16
        $region15: #{_lambda_.5} parent=11 // pred_region
          %p224 = scmp.lt.s32.totalorder %s26, 0
          %s225 = scalar_select %p224, %s26, 0
          %s226 = smul.addr %s225, 2
          %s227 = scalar_lea.vmem %s2, %s226
        $region16: #{_lambda_.5} parent=11 // pred_fallthru
          _
        // Predicated region
        $region17: #{_lambda_.5} parent=11 // pred_check
          %p228 = pneg %p146
        $region18: #{_lambda_.5} parent=11 // pred_check_branch
          %230 = sbr.rel (%p228) target = $region20
        $region19: #{_lambda_.5} parent=11 // pred_region
          %p231 = scmp.lt.s32.totalorder %s26, 0
          %s232 = scalar_select %p231, %s26, 0
          %s233 = smul.addr %s232, 4
          %s234 = scalar_lea.vmem %s3, %s233
        $region20: #{_lambda_.5} parent=11 // pred_fallthru
          _
      $region12: #{_lambda_.5} parent=5 // pred_fallthru
        _
      %p235 = scmp.lt.s32.totalorder %s15, 2
      // Predicated region
      $region21: #{_lambda_.5} parent=5 // pred_check
        %p236 = pneg %p235
      $region22: #{_lambda_.5} parent=5 // pred_check_branch
        %238 = sbr.rel (%p236) target = $region24
      $region23: #{_lambda_.5} parent=5 // pred_region
        // Predicated region
        $region25: #{_lambda_.5} parent=23 // pred_check
          %p239 = pneg %p58
        $region26: #{_lambda_.5} parent=23 // pred_check_branch
          %241 = sbr.rel (%p239) target = $region28
        $region27: #{_lambda_.5} parent=23 // pred_region
          %p242 = scmp.lt.s32.totalorder %s22, 1
          %s243 = scalar_select %p242, %s22, 1
          %p244 = scmp.lt.s32.totalorder %s23, 0
          %s245 = scalar_select %p244, %s23, 0
          %p246 = scmp.lt.s32.totalorder %s24, 0
          %s247 = scalar_select %p246, %s24, 0
          %s248 = sadd.s32 %s247, %s245
          %s249 = sadd.s32 %s248, %s243
          %s250 = smul.addr %s249, 4
          %s251 = scalar_lea.vmem %s0, %s250
        $region28: #{_lambda_.5} parent=23 // pred_fallthru
          _
        // Predicated region
        $region29: #{_lambda_.5} parent=23 // pred_check
          %p252 = pneg %p88
        $region30: #{_lambda_.5} parent=23 // pred_check_branch
          %254 = sbr.rel (%p252) target = $region32
        $region31: #{_lambda_.5} parent=23 // pred_region
          %s255 = sadd.s32 %s22, %s24
          %p256 = scmp.lt.s32.totalorder %s255, 1
          %s257 = scalar_select %p256, %s255, 1
          %p258 = scmp.lt.s32.totalorder %s23, 0
          %s259 = scalar_select %p258, %s23, 0
          %s260 = sadd.s32 %s259, %s257
          %s261 = smul.addr %s260, 4
          %s262 = scalar_lea.vmem %s1, %s261
          %s263 = sadd.s32 %s22, %s24
        $region32: #{_lambda_.5} parent=23 // pred_fallthru
          _
      $region24: #{_lambda_.5} parent=5 // pred_fallthru
        _
      %p264 = scmp.le.s32.totalorder 1, %s15
      %p265 = scmp.lt.s32.totalorder %s15, 3
      %p266 = pnand %p264, %p265
      %p267 = pneg %p266
      // Predicated region
      $region33: #{_lambda_.5} parent=5 // pred_check
        _
      $region34: #{_lambda_.5} parent=5 // pred_check_branch
        %269 = sbr.rel (%p266) target = $region36
      $region35: #{_lambda_.5} parent=5 // pred_region
        %s270 = ssub.s32 %s15, 1
        %p271 = scmp.lt.s32.totalorder %s25, 1
        %s272 = scalar_select %p271, %s25, 1
        %p273 = scmp.lt.s32.totalorder %s26, 0
        %s274 = scalar_select %p273, %s26, 0
        %p275 = scmp.lt.s32.totalorder %s27, 0
        %s276 = scalar_select %p275, %s27, 0
        %s277 = sadd.s32 %s276, %s274
        %s278 = sadd.s32 %s277, %s272
        %s279 = smul.addr %s278, 4
        %s280 = scalar_lea.vmem %s0, %s279
        %p281 = pneg %p64
        %p282 = pneg %p61
        %s283 = sadd.s32 %s25, %s27
        %p284 = scmp.lt.s32.totalorder %s283, 1
        %s285 = scalar_select %p284, %s283, 1
        %p286 = scmp.lt.s32.totalorder %s26, 0
        %s287 = scalar_select %p286, %s26, 0
        %s288 = sadd.s32 %s287, %s285
        %s289 = smul.addr %s288, 4
        %s290 = scalar_lea.vmem %s1, %s289
        %p291 = pneg %p94
        %p292 = pneg %p91
        %p293 = scmp.lt.s32.totalorder %s26, 0
        %s294 = scalar_select %p293, %s26, 0
        %s295 = smul.addr %s294, 2
        %s296 = scalar_lea.vmem %s2, %s295
        %p297 = pneg %p120
        %p298 = pneg %p117
        %p299 = scmp.lt.s32.totalorder %s26, 0
        %s300 = scalar_select %p299, %s26, 0
        %s301 = smul.addr %s300, 4
        %s302 = scalar_lea.vmem %s3, %s301
        %p303 = pneg %p146
        %p304 = pneg %p143
        %p305 = pneg %p176
        %p306 = pneg %p173
        %s307 = sand.u32 %s163, 1
        %s308 = scalar_lea.sflag [#allocation3], %s307
        %s309 = sand.u32 %s163, 1
        %s310 = smul.addr %s309, 4
        %s311 = scalar_lea.vmem [#allocation2], %s310
        %p312 = pneg %p206
        %p313 = pneg %p203
        %p314 = scmp.lt.s32.totalorder %s25, 1
        %s315 = scalar_select %p314, %s25, 1
        %p316 = scmp.lt.s32.totalorder %s26, 0
        %s317 = scalar_select %p316, %s26, 0
        %p318 = scmp.lt.s32.totalorder %s27, 0
        %s319 = scalar_select %p318, %s27, 0
        %s320 = sadd.s32 %s319, %s317
        %s321 = sadd.s32 %s320, %s315
        %s322 = smul.addr %s321, 2
        %s323 = scalar_lea.vmem %s5, %s322
        %p324 = scmp.lt.s32.totalorder %s25, 1
        %s325 = scalar_select %p324, %s25, 1
        %p326 = scmp.lt.s32.totalorder %s26, 0
        %s327 = scalar_select %p326, %s26, 0
        %p328 = scmp.lt.s32.totalorder %s27, 0
        %s329 = scalar_select %p328, %s27, 0
        %s330 = sadd.s32 %s329, %s327
        %s331 = sadd.s32 %s330, %s325
        %s332 = smul.addr %s331, 4
        %s333 = scalar_lea.vmem %s0, %s332
        %s334 = sadd.s32 %s25, %s27
        %p335 = scmp.lt.s32.totalorder %s334, 1
        %s336 = scalar_select %p335, %s334, 1
        %p337 = scmp.lt.s32.totalorder %s26, 0
        %s338 = scalar_select %p337, %s26, 0
        %s339 = sadd.s32 %s338, %s336
        %s340 = smul.addr %s339, 4
        %s341 = scalar_lea.vmem %s1, %s340
        %s342 = sadd.s32 %s25, %s27
        %p343 = scmp.lt.s32.totalorder %s26, 0
        %s344 = scalar_select %p343, %s26, 0
        %s345 = smul.addr %s344, 2
        %s346 = scalar_lea.vmem %s2, %s345
        %p347 = scmp.lt.s32.totalorder %s26, 0
        %s348 = scalar_select %p347, %s26, 0
        %s349 = smul.addr %s348, 4
        %s350 = scalar_lea.vmem %s3, %s349
        %p351 = scmp.lt.s32.totalorder %s25, 1
        %s352 = scalar_select %p351, %s25, 1
        %p353 = scmp.lt.s32.totalorder %s26, 0
        %s354 = scalar_select %p353, %s26, 0
        %p355 = scmp.lt.s32.totalorder %s27, 0
        %s356 = scalar_select %p355, %s27, 0
        %s357 = sadd.s32 %s356, %s354
        %s358 = sadd.s32 %s357, %s352
        %s359 = smul.addr %s358, 2
        %s360 = scalar_lea.vmem %s5, %s359
        %v362 = vld [vmem:[%s333] sm:$0xf]
        %v363 = vld [vmem:[%s341] sm:$0xf]
        %v366 = vrot.slane %v362, 4
        %v367 = vrot.slane %v363, 4
        %368 = vrot.lane.b32.xlu0 %v366, 127
        %v369 = vpop.permute.xlu0 %368
        %370 = vrot.lane.b32.xlu0 %v367, 127
        %v371 = vpop.permute.xlu0 %370
        %vm372 = vcmask 1039360
        %v373 = vsel %vm372, %v369, %v371
        %374 = vrot.lane.b32.xlu0 %v362, 126
        %v375 = vpop.permute.xlu0 %374
        %376 = vrot.lane.b32.xlu0 %v363, 126
        %v377 = vpop.permute.xlu0 %376
        %vm378 = vcmask 1031168
        %v379 = vsel %vm378, %v375, %v377
        %380 = vrot.lane.b32.xlu0 %v366, 125
        %v381 = vpop.permute.xlu0 %380
        %382 = vrot.lane.b32.xlu0 %v367, 125
        %v383 = vpop.permute.xlu0 %382
        %vm384 = vcmask 1022976
        %v385 = vsel %vm384, %v381, %v383
        %386 = vrot.lane.b32.xlu0 %v362, 124
        %v387 = vpop.permute.xlu0 %386
        %388 = vrot.lane.b32.xlu0 %v363, 124
        %v389 = vpop.permute.xlu0 %388
        %vm390 = vcmask 1014784
        %v391 = vsel %vm390, %v387, %v389
        %392 = vrot.lane.b32.xlu0 %v366, 123
        %v393 = vpop.permute.xlu0 %392
        %394 = vrot.lane.b32.xlu0 %v367, 123
        %v395 = vpop.permute.xlu0 %394
        %vm396 = vcmask 1006592
        %v397 = vsel %vm396, %v393, %v395
        %398 = vrot.lane.b32.xlu0 %v362, 122
        %v399 = vpop.permute.xlu0 %398
        %400 = vrot.lane.b32.xlu0 %v363, 122
        %v401 = vpop.permute.xlu0 %400
        %vm402 = vcmask 998400
        %v403 = vsel %vm402, %v399, %v401
        %404 = vrot.lane.b32.xlu0 %v366, 121
        %v405 = vpop.permute.xlu0 %404
        %406 = vrot.lane.b32.xlu0 %v367, 121
        %v407 = vpop.permute.xlu0 %406
        %vm408 = vcmask 990208
        %v409 = vsel %vm408, %v405, %v407
        %410 = vrot.lane.b32.xlu0 %v362, 120
        %v411 = vpop.permute.xlu0 %410
        %412 = vrot.lane.b32.xlu0 %v363, 120
        %v413 = vpop.permute.xlu0 %412
        %vm414 = vcmask 982016
        %v415 = vsel %vm414, %v411, %v413
        %416 = vrot.lane.b32.xlu0 %v366, 119
        %v417 = vpop.permute.xlu0 %416
        %418 = vrot.lane.b32.xlu0 %v367, 119
        %v419 = vpop.permute.xlu0 %418
        %vm420 = vcmask 973824
        %v421 = vsel %vm420, %v417, %v419
        %422 = vrot.lane.b32.xlu0 %v362, 118
        %v423 = vpop.permute.xlu0 %422
        %424 = vrot.lane.b32.xlu0 %v363, 118
        %v425 = vpop.permute.xlu0 %424
        %vm426 = vcmask 965632
        %v427 = vsel %vm426, %v423, %v425
        %428 = vrot.lane.b32.xlu0 %v366, 117
        %v429 = vpop.permute.xlu0 %428
        %430 = vrot.lane.b32.xlu0 %v367, 117
        %v431 = vpop.permute.xlu0 %430
        %vm432 = vcmask 957440
        %v433 = vsel %vm432, %v429, %v431
        %434 = vrot.lane.b32.xlu0 %v362, 116
        %v435 = vpop.permute.xlu0 %434
        %436 = vrot.lane.b32.xlu0 %v363, 116
        %v437 = vpop.permute.xlu0 %436
        %vm438 = vcmask 949248
        %v439 = vsel %vm438, %v435, %v437
        %440 = vrot.lane.b32.xlu0 %v366, 115
        %v441 = vpop.permute.xlu0 %440
        %442 = vrot.lane.b32.xlu0 %v367, 115
        %v443 = vpop.permute.xlu0 %442
        %vm444 = vcmask 941056
        %v445 = vsel %vm444, %v441, %v443
        %446 = vrot.lane.b32.xlu0 %v362, 114
        %v447 = vpop.permute.xlu0 %446
        %448 = vrot.lane.b32.xlu0 %v363, 114
        %v449 = vpop.permute.xlu0 %448
        %vm450 = vcmask 932864
        %v451 = vsel %vm450, %v447, %v449
        %vm452 = vcmask 1043456
        %v455 = vsel %vm452, %v362, %v373
        %v459 = vsel %vm452, %v379, %v385
        %v463 = vsel %vm452, %v391, %v397
        %v467 = vsel %vm452, %v403, %v409
        %v471 = vsel %vm452, %v415, %v421
        %v475 = vsel %vm452, %v427, %v433
        %v479 = vsel %vm452, %v439, %v445
        %v481 = vld [vmem:[%s346] sm:$0x3]
        %v482 = vld [vmem:[%s350] sm:$0xf]
        %484 = vset.pattern.permute.xlu0 0
        %485 = vperm.xlu0 %484, %v482
        %v486 = vpop.permute.xlu0 %485
        %vm488 = vcmask 982016
        %v490 = vsel %vm488, %v481, 0
        %v493 = vsel %vm452, %v451, 0
        %495 = vmatprep.subr.bf16.mxu0 0
        %496 = vmatpush1.bf16.msra.mxu0 %v455
        %497 = vmatprep.subr.bf16.mxu0 0
        %498 = vmatpush1.bf16.msra.mxu0 %v459
        %499 = vmatprep.subr.bf16.mxu0 0
        %500 = vmatpush1.bf16.msra.mxu0 %v463
        %501 = vmatprep.subr.bf16.mxu0 0
        %502 = vmatpush1.bf16.msra.mxu0 %v467
        %503 = vmatprep.subr.bf16.mxu0 0
        %504 = vmatpush1.bf16.msra.mxu0 %v471
        %505 = vmatprep.subr.bf16.mxu0 0
        %506 = vmatpush1.bf16.msra.mxu0 %v475
        %507 = vmatprep.subr.bf16.mxu0 0
        %508 = vmatpush1.bf16.msra.mxu0 %v479
        %509 = vmatprep.subr.bf16.mxu0 0
        %510 = vmatpush1.bf16.msra.mxu0 %v493
        %511 = vmatprep.subr.bf16.mxu0 0
        %512 = vmatpush1.bf16.msra.mxu0 0
        %513 = vmatprep.subr.bf16.mxu0 0
        %514 = vmatpush1.bf16.msra.mxu0 0
        %515 = vmatprep.subr.bf16.mxu0 0
        %516 = vmatpush1.bf16.msra.mxu0 0
        %517 = vmatprep.subr.bf16.mxu0 0
        %518 = vmatpush1.bf16.msra.mxu0 0
        %519 = vmatprep.subr.bf16.mxu0 0
        %520 = vmatpush1.bf16.msra.mxu0 0
        %521 = vmatprep.subr.bf16.mxu0 0
        %522 = vmatpush1.bf16.msra.mxu0 0
        %523 = vmatprep.subr.bf16.mxu0 0
        %524 = vmatpush1.bf16.msra.mxu0 0
        %525 = vmatprep.subr.bf16.mxu0 0
        %526 = vmatpush1.bf16.msra.mxu0 0
        %527 = vmatprep.mubr.bf16.mxu0 0
        %528 = vmatmul.mubr.bf16.gmra.mrb[0].mxu0 %v490
        %v529 = vpop.f32.mrb[0].mxu0
        %v530 = vadd.f32 %v486, %v529
        %v531 = vpop.f32.mrb[0].mxu0
        %v532 = vpop.f32.mrb[0].mxu0
        %v533 = vpop.f32.mrb[0].mxu0
        %534 = vdwg.mxu0
        %vm535 = vcmp.ge.f32.partialorder %v530, 0.0
        %v536 = vmul.f32 %v530, 0.2
        %v537 = vsel %vm535, %v530, %v536
        %538 = vst [vmem:[%s311] sm:$0xf] %v537
        %v539 = vpack.c.bf16 %v537, %v537
        %540 = vst [vmem:[%s360] sm:$0x3] %v539
        %s541 = sand.u32 %s163, 1
        %s542 = scalar_lea.sflag [#allocation3], %s541
        %s543 = sand.u32 %s163, 1
        %s544 = smul.addr %s543, 4
        %s545 = scalar_lea.vmem [#allocation2], %s544
        %p546 = scmp.lt.s32.totalorder %s25, 1
        %s547 = scalar_select %p546, %s25, 1
        %p548 = scmp.lt.s32.totalorder %s26, 0
        %s549 = scalar_select %p548, %s26, 0
        %p550 = scmp.lt.s32.totalorder %s27, 0
        %s551 = scalar_select %p550, %s27, 0
        %s552 = sadd.s32 %s551, %s549
        %s553 = sadd.s32 %s552, %s547
        %s554 = smul.addr %s553, 2
        %s555 = scalar_lea.vmem %s5, %s554
        // Predicated region
        $region37: #{_lambda_.5} parent=35 // pred_check
          %p556 = pneg %p173
        $region38: #{_lambda_.5} parent=35 // pred_check_branch
          %558 = sbr.rel (%p556) target = $region40
        $region39: #{_lambda_.5} parent=35 // pred_region
          %s560 = ssub.s32 64, 64
          %561 = vsyncadd %s542, %s560
          %s562 = sadd.s32 %s27, %s26
          %s563 = sadd.s32 %s562, %s25
          %s564 = smul.addr %s563, 64
          %s565 = scalar_lea.hbm %s4, %s564
          %s567 = sshll.u32 %s545, 4
          %s568 = int_to_ptr.vmem [resolvable:$true] %s567
          %570 = dma.vmem_to_hbm [thread:$0]  %s568, 64, %s565, %s542
        $region40: #{_lambda_.5} parent=35 // pred_fallthru
          _
        // Predicated region
        $region41: #{_lambda_.5} parent=35 // pred_check
          %p571 = pneg %p203
        $region42: #{_lambda_.5} parent=35 // pred_check_branch
          %573 = sbr.rel (%p571) target = $region44
        $region43: #{_lambda_.5} parent=35 // pred_region
          _
        $region44: #{_lambda_.5} parent=35 // pred_fallthru
          _
      $region36: #{_lambda_.5} parent=5 // pred_fallthru
        _
      %p574 = scmp.le.s32.totalorder 2, %s15
      // Predicated region
      $region45: #{_lambda_.5} parent=5 // pred_check
        %p575 = pneg %p574
      $region46: #{_lambda_.5} parent=5 // pred_check_branch
        %577 = sbr.rel (%p575) target = $region48
      $region47: #{_lambda_.5} parent=5 // pred_region
        %s578 = ssub.s32 %s15, 2
        // Predicated region
        $region49: #{_lambda_.5} parent=47 // pred_check
          %p579 = pneg %p179
        $region50: #{_lambda_.5} parent=47 // pred_check_branch
          %581 = sbr.rel (%p579) target = $region52
        $region51: #{_lambda_.5} parent=47 // pred_region
          %s582 = sand.u32 %s164, 1
          %s583 = scalar_lea.sflag [#allocation3], %s582
          %s584 = sand.u32 %s164, 1
          %s585 = smul.addr %s584, 4
          %s586 = scalar_lea.vmem [#allocation2], %s585
          %587 = dma.done %s583, 64
        $region52: #{_lambda_.5} parent=47 // pred_fallthru
          _
        // Predicated region
        $region53: #{_lambda_.5} parent=47 // pred_check
          %p588 = pneg %p209
        $region54: #{_lambda_.5} parent=47 // pred_check_branch
          %590 = sbr.rel (%p588) target = $region56
        $region55: #{_lambda_.5} parent=47 // pred_region
          %p591 = scmp.lt.s32.totalorder %s28, 1
          %s592 = scalar_select %p591, %s28, 1
          %p593 = scmp.lt.s32.totalorder %s29, 0
          %s594 = scalar_select %p593, %s29, 0
          %p595 = scmp.lt.s32.totalorder %s30, 0
          %s596 = scalar_select %p595, %s30, 0
          %s597 = sadd.s32 %s596, %s594
          %s598 = sadd.s32 %s597, %s592
          %s599 = smul.addr %s598, 2
          %s600 = scalar_lea.vmem %s5, %s599
        $region56: #{_lambda_.5} parent=47 // pred_fallthru
          _
      $region48: #{_lambda_.5} parent=5 // pred_fallthru
        _
    $region6: #{_lambda_.5} parent=1 // loop_footer
      %s19 = sadd.s32 1, %s15
    $region7: #{_lambda_.5} parent=1 // loop_footer_branch
      %14 = sbr.rel target = $region3
    $region8: #{_lambda_.5} parent=1 // loop_exit
      _
    %601 = vsyncpa [#allocation3], 1
    %s602 = scalar_lea.sflag [#allocation3], 1
    %603 = vsyncpa %s602, 1

// kernel: _lambda_.7
$region0: #{_lambda_.7}
  #allocation0 [shape = 'u32[]', space=smem, size = 0x4, offset = 0x4, fixed_abs, tag = 'smem constant byte address 0x4 - core index']
  #allocation1 [shape = 'u32[144,128]{1,0:T(1,128)}', space=vmem, size = 0x12000, scoped, tag = 'internal scratch']
  %s0 = inlined_call_operand.vmem [shape: bf16[2,2,16,128], index: 0, kind: input, shape index: {}]
  %s1 = inlined_call_operand.vmem [shape: bf16[2,2,16,10], index: 1, kind: input, shape index: {}]
  %s2 = inlined_call_operand.vmem [shape: bf16[2,8,168], index: 2, kind: input, shape index: {}]
  %s3 = inlined_call_operand.vmem [shape: f32[2,8,1], index: 3, kind: input, shape index: {}]
  %s4 = inlined_call_operand.hbm [shape: f32[2,16,128], index: 4, kind: output, shape index: {0}]
  %s5 = inlined_call_operand.vmem [shape: bf16[2,16,128], index: 5, kind: output, shape index: {1}]
  %6 = xla_tuple %s4, %s5
  %s7 = sld [smem:[#allocation0]]
  $region139: #{_lambda_.7} parent=0
    _
  %s9 = ssub.s32 1, %s7
  %s10 = scalar_select 0, %s9, %s7
  $region1: #{_lambda_.7} parent=0
    #allocation2 [shape = 'u8[8192]{0}', space=vmem, size = 0x2000, scoped, tag = 'input window, operand 0']
    #allocation3 [shape = 'u8[8192]{0}', space=vmem, size = 0x2000, scoped, tag = 'input window, operand 1']
    #allocation4 [shape = 'u8[8192]{0}', space=vmem, size = 0x2000, scoped, tag = 'output window, operand 0']
    #allocation5 [shape = 's32[2]{0}', space=sflag, size = 0x8, scoped, tag = 'scoped memory for _lambda_.7']
    %11 = vsyncpa [#allocation5], 0
    %s12 = scalar_lea.sflag [#allocation5], 1
    %13 = vsyncpa %s12, 0
    loop: start=0, step=1, limit=6
    $region2: #{_lambda_.7} parent=1 // loop_pre_header
      _
    $region3: #{_lambda_.7} parent=1 // loop_header
      %s15 = sphi 0, %s19
      %p16 = scmp.ge.s32.totalorder %s15, 6
      %s22 = sphi 0, %s41
      %s23 = sphi 0, %s37
      %s24 = sphi 0, %s33
      %s25 = sphi 0, %s22
      %s26 = sphi 0, %s23
      %s27 = sphi 0, %s24
      %s28 = sphi 0, %s25
      %s29 = sphi 0, %s26
      %s30 = sphi 0, %s27
      %s48 = sphi 0, %s50
      %s51 = sphi 0, %s48
      %s52 = sphi 0, %s51
      %s68 = sphi 0, %s52
      %s78 = sphi 0, %s80
      %s81 = sphi 0, %s78
      %s82 = sphi 0, %s81
      %s98 = sphi 0, %s82
      %s104 = sphi 0, %s106
      %s107 = sphi 0, %s104
      %s108 = sphi 0, %s107
      %s124 = sphi 0, %s108
      %s130 = sphi 0, %s132
      %s133 = sphi 0, %s130
      %s134 = sphi 0, %s133
      %s150 = sphi 0, %s134
      %s160 = sphi 0, %s162
      %s163 = sphi 0, %s160
      %s164 = sphi 0, %s163
      %s180 = sphi 0, %s164
      %s190 = sphi 0, %s192
      %s193 = sphi 0, %s190
      %s194 = sphi 0, %s193
      %s210 = sphi 0, %s194
    $region4: #{_lambda_.7} parent=1 // loop_header_branch
      %18 = sbr.rel (%p16) target = $region8
    $region5: #{_lambda_.7} parent=1 // loop_body
      %s20 = ssub.s32 %s15, 1
      %s21 = ssub.s32 %s15, 2
      %s31 = sadd.s32 1, %s24
      %p32 = scmp.ge.s32.totalorder %s31, 1
      %s33 = scalar_select %p32, 0, %s31
      %s34 = sadd.s32 1, %s23
      %s35 = scalar_select %p32, %s34, %s23
      %p36 = scmp.ge.s32.totalorder %s35, 2
      %s37 = scalar_select %p36, 0, %s35
      %s38 = sadd.s32 1, %s22
      %s39 = scalar_select %p36, %s38, %s22
      %p40 = scmp.ge.s32.totalorder %s39, 2
      %s41 = scalar_select %p40, 0, %s39
      %s42 = ssub.s32 %s22, %s41
      %s43 = ssub.s32 %s23, %s37
      %s44 = sor.u32 %s42, %s43
      %s45 = ssub.s32 %s24, %s33
      %s46 = sor.u32 %s44, %s45
      %p47 = scmp.eq.s32.totalorder %s46, 0
      %s49 = sadd.s32 %s48, 1
      %s50 = scalar_select %p47, %s48, %s49
      %p53 = pneg %p47
      %p54 = scmp.eq.s32.totalorder %s15, 3
      %p55 = por %p53, %p54
      %p56 = scmp.ne.s32.totalorder %s48, %s51
      %p57 = scmp.eq.s32.totalorder %s15, 0
      %p58 = por %p56, %p57
      %p59 = scmp.ne.s32.totalorder %s48, %s51
      %p60 = scmp.eq.s32.totalorder %s20, 3
      %p61 = por %p59, %p60
      %p62 = scmp.ne.s32.totalorder %s51, %s52
      %p63 = scmp.eq.s32.totalorder %s20, 0
      %p64 = por %p62, %p63
      %p65 = scmp.ne.s32.totalorder %s51, %s52
      %p66 = scmp.eq.s32.totalorder %s21, 3
      %p67 = por %p65, %p66
      %p69 = scmp.ne.s32.totalorder %s52, %s68
      %p70 = scmp.eq.s32.totalorder %s21, 0
      %p71 = por %p69, %p70
      %s72 = sadd.s32 %s22, %s24
      %s73 = sadd.s32 %s41, %s33
      %s74 = ssub.s32 %s72, %s73
      %s75 = ssub.s32 %s23, %s37
      %s76 = sor.u32 %s74, %s75
      %p77 = scmp.eq.s32.totalorder %s76, 0
      %s79 = sadd.s32 %s78, 1
      %s80 = scalar_select %p77, %s78, %s79
      %p83 = pneg %p77
      %p84 = scmp.eq.s32.totalorder %s15, 3
      %p85 = por %p83, %p84
      %p86 = scmp.ne.s32.totalorder %s78, %s81
      %p87 = scmp.eq.s32.totalorder %s15, 0
      %p88 = por %p86, %p87
      %p89 = scmp.ne.s32.totalorder %s78, %s81
      %p90 = scmp.eq.s32.totalorder %s20, 3
      %p91 = por %p89, %p90
      %p92 = scmp.ne.s32.totalorder %s81, %s82
      %p93 = scmp.eq.s32.totalorder %s20, 0
      %p94 = por %p92, %p93
      %p95 = scmp.ne.s32.totalorder %s81, %s82
      %p96 = scmp.eq.s32.totalorder %s21, 3
      %p97 = por %p95, %p96
      %p99 = scmp.ne.s32.totalorder %s82, %s98
      %p100 = scmp.eq.s32.totalorder %s21, 0
      %p101 = por %p99, %p100
      %s102 = ssub.s32 %s23, %s37
      %p103 = scmp.eq.s32.totalorder %s102, 0
      %s105 = sadd.s32 %s104, 1
      %s106 = scalar_select %p103, %s104, %s105
      %p109 = pneg %p103
      %p110 = scmp.eq.s32.totalorder %s15, 3
      %p111 = por %p109, %p110
      %p112 = scmp.ne.s32.totalorder %s104, %s107
      %p113 = scmp.eq.s32.totalorder %s15, 0
      %p114 = por %p112, %p113
      %p115 = scmp.ne.s32.totalorder %s104, %s107
      %p116 = scmp.eq.s32.totalorder %s20, 3
      %p117 = por %p115, %p116
      %p118 = scmp.ne.s32.totalorder %s107, %s108
      %p119 = scmp.eq.s32.totalorder %s20, 0
      %p120 = por %p118, %p119
      %p121 = scmp.ne.s32.totalorder %s107, %s108
      %p122 = scmp.eq.s32.totalorder %s21, 3
      %p123 = por %p121, %p122
      %p125 = scmp.ne.s32.totalorder %s108, %s124
      %p126 = scmp.eq.s32.totalorder %s21, 0
      %p127 = por %p125, %p126
      %s128 = ssub.s32 %s23, %s37
      %p129 = scmp.eq.s32.totalorder %s128, 0
      %s131 = sadd.s32 %s130, 1
      %s132 = scalar_select %p129, %s130, %s131
      %p135 = pneg %p129
      %p136 = scmp.eq.s32.totalorder %s15, 3
      %p137 = por %p135, %p136
      %p138 = scmp.ne.s32.totalorder %s130, %s133
      %p139 = scmp.eq.s32.totalorder %s15, 0
      %p140 = por %p138, %p139
      %p141 = scmp.ne.s32.totalorder %s130, %s133
      %p142 = scmp.eq.s32.totalorder %s20, 3
      %p143 = por %p141, %p142
      %p144 = scmp.ne.s32.totalorder %s133, %s134
      %p145 = scmp.eq.s32.totalorder %s20, 0
      %p146 = por %p144, %p145
      %p147 = scmp.ne.s32.totalorder %s133, %s134
      %p148 = scmp.eq.s32.totalorder %s21, 3
      %p149 = por %p147, %p148
      %p151 = scmp.ne.s32.totalorder %s134, %s150
      %p152 = scmp.eq.s32.totalorder %s21, 0
      %p153 = por %p151, %p152
      %s154 = ssub.s32 %s22, %s41
      %s155 = ssub.s32 %s23, %s37
      %s156 = sor.u32 %s154, %s155
      %s157 = ssub.s32 %s24, %s33
      %s158 = sor.u32 %s156, %s157
      %p159 = scmp.eq.s32.totalorder %s158, 0
      %s161 = sadd.s32 %s160, 1
      %s162 = scalar_select %p159, %s160, %s161
      %p165 = pneg %p159
      %p166 = scmp.eq.s32.totalorder %s15, 3
      %p167 = por %p165, %p166
      %p168 = scmp.ne.s32.totalorder %s160, %s163
      %p169 = scmp.eq.s32.totalorder %s15, 0
      %p170 = por %p168, %p169
      %p171 = scmp.ne.s32.totalorder %s160, %s163
      %p172 = scmp.eq.s32.totalorder %s20, 3
      %p173 = por %p171, %p172
      %p174 = scmp.ne.s32.totalorder %s163, %s164
      %p175 = scmp.eq.s32.totalorder %s20, 0
      %p176 = por %p174, %p175
      %p177 = scmp.ne.s32.totalorder %s163, %s164
      %p178 = scmp.eq.s32.totalorder %s21, 3
      %p179 = por %p177, %p178
      %p181 = scmp.ne.s32.totalorder %s164, %s180
      %p182 = scmp.eq.s32.totalorder %s21, 0
      %p183 = por %p181, %p182
      %s184 = ssub.s32 %s22, %s41
      %s185 = ssub.s32 %s23, %s37
      %s186 = sor.u32 %s184, %s185
      %s187 = ssub.s32 %s24, %s33
      %s188 = sor.u32 %s186, %s187
      %p189 = scmp.eq.s32.totalorder %s188, 0
      %s191 = sadd.s32 %s190, 1
      %s192 = scalar_select %p189, %s190, %s191
      %p195 = pneg %p189
      %p196 = scmp.eq.s32.totalorder %s15, 3
      %p197 = por %p195, %p196
      %p198 = scmp.ne.s32.totalorder %s190, %s193
      %p199 = scmp.eq.s32.totalorder %s15, 0
      %p200 = por %p198, %p199
      %p201 = scmp.ne.s32.totalorder %s190, %s193
      %p202 = scmp.eq.s32.totalorder %s20, 3
      %p203 = por %p201, %p202
      %p204 = scmp.ne.s32.totalorder %s193, %s194
      %p205 = scmp.eq.s32.totalorder %s20, 0
      %p206 = por %p204, %p205
      %p207 = scmp.ne.s32.totalorder %s193, %s194
      %p208 = scmp.eq.s32.totalorder %s21, 3
      %p209 = por %p207, %p208
      %p211 = scmp.ne.s32.totalorder %s194, %s210
      %p212 = scmp.eq.s32.totalorder %s21, 0
      %p213 = por %p211, %p212
      %p214 = scmp.le.s32.totalorder 1, %s15
      %p215 = scmp.lt.s32.totalorder %s15, 5
      %p216 = pnand %p214, %p215
      %p217 = pneg %p216
      // Predicated region
      $region9: #{_lambda_.7} parent=5 // pred_check
        _
      $region10: #{_lambda_.7} parent=5 // pred_check_branch
        %219 = sbr.rel (%p216) target = $region12
      $region11: #{_lambda_.7} parent=5 // pred_region
        %s220 = ssub.s32 %s15, 1
      $region12: #{_lambda_.7} parent=5 // pred_fallthru
        _
      %p221 = scmp.lt.s32.totalorder %s15, 4
      // Predicated region
      $region13: #{_lambda_.7} parent=5 // pred_check
        %p222 = pneg %p221
      $region14: #{_lambda_.7} parent=5 // pred_check_branch
        %224 = sbr.rel (%p222) target = $region16
      $region15: #{_lambda_.7} parent=5 // pred_region
        // Predicated region
        $region17: #{_lambda_.7} parent=15 // pred_check
          %p225 = pneg %p58
        $region18: #{_lambda_.7} parent=15 // pred_check_branch
          %227 = sbr.rel (%p225) target = $region20
        $region19: #{_lambda_.7} parent=15 // pred_region
          %s228 = sand.u32 %s48, 1
          %s229 = sand.u32 %s48, 1
          %s230 = smul.addr %s229, 8
          %s231 = scalar_lea.vmem [#allocation2], %s230
          %s232 = sadd.s32 %s24, %s23
          %s233 = smul.addr %s22, 4
          %s234 = sadd.s32 %s232, %s233
          %s235 = smul.addr %s234, 4
          %s236 = scalar_lea.vmem %s0, %s235
          // Predicated region
          $region21: #{_lambda_.7} parent=19 // pred_check
            _
          $region22: #{_lambda_.7} parent=19 // pred_check_branch
            %238 = sbr.rel (0) target = $region24
          $region23: #{_lambda_.7} parent=19 // pred_region
            // Predicated region
            $region25: #{_lambda_.7} parent=23 // pred_check
              _
            $region26: #{_lambda_.7} parent=23 // pred_check_branch
              %240 = sbr.rel target = $region28
            $region27: #{_lambda_.7} parent=23 // pred_region
              // Predicated region
              $region40: #{_lambda_.7} parent=27 // pred_check
                _
              $region41: #{_lambda_.7} parent=27 // pred_check_branch
                %257 = sbr.rel (0) target = $region43
              $region42: #{_lambda_.7} parent=27 // pred_region
                loop: start=0, step=1, limit=1
                $region44: #{_lambda_.7} parent=42 // loop_pre_header
                  _
                $region45: #{_lambda_.7} parent=42 // loop_header
                  %s259 = sphi 0, %s263
                  %p260 = scmp.ge.s32.totalorder %s259, 1
                  %s264 = sphi %s236, %s236
                  %s265 = sphi %s231, %s231
                $region46: #{_lambda_.7} parent=42 // loop_header_branch
                  %262 = sbr.rel (%p260) target = $region50
                $region47: #{_lambda_.7} parent=42 // loop_body
                  _
                $region48: #{_lambda_.7} parent=42 // loop_footer
                  %s263 = sadd.s32 1, %s259
                $region49: #{_lambda_.7} parent=42 // loop_footer_branch
                  %258 = sbr.rel target = $region45
                $region50: #{_lambda_.7} parent=42 // loop_exit
                  _
                loop: start=0, step=1, limit=1
                $region51: #{_lambda_.7} parent=42 // loop_pre_header
                  _
                $region52: #{_lambda_.7} parent=42 // loop_header
                  %s268 = sphi 0, %s272
                  %p269 = scmp.ge.s32.totalorder %s268, 1
                  %s273 = sphi %s236, %s236
                  %s274 = sphi %s231, %s231
                $region53: #{_lambda_.7} parent=42 // loop_header_branch
                  %271 = sbr.rel (%p269) target = $region57
                $region54: #{_lambda_.7} parent=42 // loop_body
                  %v275 = vld [vmem:[%s273] sm:$0xf]
                  %276 = vst [vmem:[%s274] sm:$0xf] %v275
                  %v277 = vld [vmem:[%s273 + $0x8] sm:$0xf]
                  %278 = vst [vmem:[%s274 + $0x4] sm:$0xf] %v277
                $region55: #{_lambda_.7} parent=42 // loop_footer
                  %s272 = sadd.s32 1, %s268
                $region56: #{_lambda_.7} parent=42 // loop_footer_branch
                  %267 = sbr.rel target = $region52
                $region57: #{_lambda_.7} parent=42 // loop_exit
                  _
              $region43: #{_lambda_.7} parent=27 // pred_fallthru
                _
            $region28: #{_lambda_.7} parent=23 // pred_fallthru
              _
            // Predicated region
            $region29: #{_lambda_.7} parent=23 // pred_check
              _
            $region30: #{_lambda_.7} parent=23 // pred_check_branch
              %242 = sbr.rel (0) target = $region32
            $region31: #{_lambda_.7} parent=23 // pred_region
              loop: start=0, step=1, limit=1
              $region33: #{_lambda_.7} parent=31 // loop_pre_header
                _
              $region34: #{_lambda_.7} parent=31 // loop_header
                %s245 = sphi 0, %s249
                %p246 = scmp.ge.s32.totalorder %s245, 1
                %s250 = sphi %s236, %s236
                %s251 = sphi %s231, %s231
              $region35: #{_lambda_.7} parent=31 // loop_header_branch
                %248 = sbr.rel (%p246) target = $region39
              $region36: #{_lambda_.7} parent=31 // loop_body
                %v252 = vld [vmem:[%s250] sm:$0xf]
                %253 = vst [vmem:[%s251] sm:$0xf] %v252
                %v254 = vld [vmem:[%s250 + $0x8] sm:$0xf]
                %255 = vst [vmem:[%s251 + $0x4] sm:$0xf] %v254
              $region37: #{_lambda_.7} parent=31 // loop_footer
                %s249 = sadd.s32 1, %s245
              $region38: #{_lambda_.7} parent=31 // loop_footer_branch
                %244 = sbr.rel target = $region34
              $region39: #{_lambda_.7} parent=31 // loop_exit
                _
            $region32: #{_lambda_.7} parent=23 // pred_fallthru
              _
          $region24: #{_lambda_.7} parent=19 // pred_fallthru
            _
          %279 = vnop
        $region20: #{_lambda_.7} parent=15 // pred_fallthru
          _
        // Predicated region
        $region58: #{_lambda_.7} parent=15 // pred_check
          %p280 = pneg %p88
        $region59: #{_lambda_.7} parent=15 // pred_check_branch
          %282 = sbr.rel (%p280) target = $region61
        $region60: #{_lambda_.7} parent=15 // pred_region
          %s283 = sand.u32 %s78, 1
          %s284 = sand.u32 %s78, 1
          %s285 = smul.addr %s284, 8
          %s286 = scalar_lea.vmem [#allocation3], %s285
          %s287 = sadd.s32 %s22, %s24
          %s288 = smul.addr %s287, 4
          %s289 = sadd.s32 %s23, %s288
          %s290 = smul.addr %s289, 4
          %s291 = scalar_lea.vmem %s1, %s290
          // Predicated region
          $region62: #{_lambda_.7} parent=60 // pred_check
            _
          $region63: #{_lambda_.7} parent=60 // pred_check_branch
            %293 = sbr.rel (0) target = $region65
          $region64: #{_lambda_.7} parent=60 // pred_region
            // Predicated region
            $region66: #{_lambda_.7} parent=64 // pred_check
              _
            $region67: #{_lambda_.7} parent=64 // pred_check_branch
              %295 = sbr.rel target = $region69
            $region68: #{_lambda_.7} parent=64 // pred_region
              // Predicated region
              $region81: #{_lambda_.7} parent=68 // pred_check
                _
              $region82: #{_lambda_.7} parent=68 // pred_check_branch
                %312 = sbr.rel (0) target = $region84
              $region83: #{_lambda_.7} parent=68 // pred_region
                loop: start=0, step=1, limit=1
                $region85: #{_lambda_.7} parent=83 // loop_pre_header
                  _
                $region86: #{_lambda_.7} parent=83 // loop_header
                  %s314 = sphi 0, %s318
                  %p315 = scmp.ge.s32.totalorder %s314, 1
                  %s319 = sphi %s291, %s291
                  %s320 = sphi %s286, %s286
                $region87: #{_lambda_.7} parent=83 // loop_header_branch
                  %317 = sbr.rel (%p315) target = $region91
                $region88: #{_lambda_.7} parent=83 // loop_body
                  _
                $region89: #{_lambda_.7} parent=83 // loop_footer
                  %s318 = sadd.s32 1, %s314
                $region90: #{_lambda_.7} parent=83 // loop_footer_branch
                  %313 = sbr.rel target = $region86
                $region91: #{_lambda_.7} parent=83 // loop_exit
                  _
                loop: start=0, step=1, limit=1
                $region92: #{_lambda_.7} parent=83 // loop_pre_header
                  _
                $region93: #{_lambda_.7} parent=83 // loop_header
                  %s323 = sphi 0, %s327
                  %p324 = scmp.ge.s32.totalorder %s323, 1
                  %s328 = sphi %s291, %s291
                  %s329 = sphi %s286, %s286
                $region94: #{_lambda_.7} parent=83 // loop_header_branch
                  %326 = sbr.rel (%p324) target = $region98
                $region95: #{_lambda_.7} parent=83 // loop_body
                  %v330 = vld [vmem:[%s328] sm:$0xf]
                  %331 = vst [vmem:[%s329] sm:$0xf] %v330
                  %v332 = vld [vmem:[%s328 + $0x8] sm:$0xf]
                  %333 = vst [vmem:[%s329 + $0x4] sm:$0xf] %v332
                $region96: #{_lambda_.7} parent=83 // loop_footer
                  %s327 = sadd.s32 1, %s323
                $region97: #{_lambda_.7} parent=83 // loop_footer_branch
                  %322 = sbr.rel target = $region93
                $region98: #{_lambda_.7} parent=83 // loop_exit
                  _
              $region84: #{_lambda_.7} parent=68 // pred_fallthru
                _
            $region69: #{_lambda_.7} parent=64 // pred_fallthru
              _
            // Predicated region
            $region70: #{_lambda_.7} parent=64 // pred_check
              _
            $region71: #{_lambda_.7} parent=64 // pred_check_branch
              %297 = sbr.rel (0) target = $region73
            $region72: #{_lambda_.7} parent=64 // pred_region
              loop: start=0, step=1, limit=1
              $region74: #{_lambda_.7} parent=72 // loop_pre_header
                _
              $region75: #{_lambda_.7} parent=72 // loop_header
                %s300 = sphi 0, %s304
                %p301 = scmp.ge.s32.totalorder %s300, 1
                %s305 = sphi %s291, %s291
                %s306 = sphi %s286, %s286
              $region76: #{_lambda_.7} parent=72 // loop_header_branch
                %303 = sbr.rel (%p301) target = $region80
              $region77: #{_lambda_.7} parent=72 // loop_body
                %v307 = vld [vmem:[%s305] sm:$0xf]
                %308 = vst [vmem:[%s306] sm:$0xf] %v307
                %v309 = vld [vmem:[%s305 + $0x8] sm:$0xf]
                %310 = vst [vmem:[%s306 + $0x4] sm:$0xf] %v309
              $region78: #{_lambda_.7} parent=72 // loop_footer
                %s304 = sadd.s32 1, %s300
              $region79: #{_lambda_.7} parent=72 // loop_footer_branch
                %299 = sbr.rel target = $region75
              $region80: #{_lambda_.7} parent=72 // loop_exit
                _
            $region73: #{_lambda_.7} parent=64 // pred_fallthru
              _
          $region65: #{_lambda_.7} parent=60 // pred_fallthru
            _
          %334 = vnop
        $region61: #{_lambda_.7} parent=15 // pred_fallthru
          _
        // Predicated region
        $region99: #{_lambda_.7} parent=15 // pred_check
          %p335 = pneg %p114
        $region100: #{_lambda_.7} parent=15 // pred_check_branch
          %337 = sbr.rel (%p335) target = $region102
        $region101: #{_lambda_.7} parent=15 // pred_region
          %p338 = scmp.lt.s32.totalorder %s23, 1
          %s339 = scalar_select %p338, %s23, 1
          %s340 = smul.addr %s339, 2
          %s341 = smul.addr %s340, 4
          %s342 = scalar_lea.vmem %s2, %s341
        $region102: #{_lambda_.7} parent=15 // pred_fallthru
          _
        // Predicated region
        $region103: #{_lambda_.7} parent=15 // pred_check
          %p343 = pneg %p140
        $region104: #{_lambda_.7} parent=15 // pred_check_branch
          %345 = sbr.rel (%p343) target = $region106
        $region105: #{_lambda_.7} parent=15 // pred_region
          %p346 = scmp.lt.s32.totalorder %s23, 1
          %s347 = scalar_select %p346, %s23, 1
          %s348 = smul.addr %s347, 8
          %s349 = scalar_lea.vmem %s3, %s348
        $region106: #{_lambda_.7} parent=15 // pred_fallthru
          _
      $region16: #{_lambda_.7} parent=5 // pred_fallthru
        _
      %p350 = scmp.le.s32.totalorder 1, %s15
      %p351 = scmp.lt.s32.totalorder %s15, 5
      %p352 = pnand %p350, %p351
      %p353 = pneg %p352
      // Predicated region
      $region107: #{_lambda_.7} parent=5 // pred_check
        _
      $region108: #{_lambda_.7} parent=5 // pred_check_branch
        %355 = sbr.rel (%p352) target = $region110
      $region109: #{_lambda_.7} parent=5 // pred_region
        %s356 = ssub.s32 %s15, 1
        %s357 = sand.u32 %s51, 1
        %s358 = sand.u32 %s51, 1
        %s359 = smul.addr %s358, 8
        %s360 = scalar_lea.vmem [#allocation2], %s359
        // Predicated region
        $region111: #{_lambda_.7} parent=109 // pred_check
          %p361 = pneg %p64
        $region112: #{_lambda_.7} parent=109 // pred_check_branch
          %363 = sbr.rel (%p361) target = $region114
        $region113: #{_lambda_.7} parent=109 // pred_region
          _
        $region114: #{_lambda_.7} parent=109 // pred_fallthru
          _
        %s364 = sand.u32 %s81, 1
        %s365 = sand.u32 %s81, 1
        %s366 = smul.addr %s365, 8
        %s367 = scalar_lea.vmem [#allocation3], %s366
        // Predicated region
        $region115: #{_lambda_.7} parent=109 // pred_check
          %p368 = pneg %p94
        $region116: #{_lambda_.7} parent=109 // pred_check_branch
          %370 = sbr.rel (%p368) target = $region118
        $region117: #{_lambda_.7} parent=109 // pred_region
          _
        $region118: #{_lambda_.7} parent=109 // pred_fallthru
          _
        %s371 = sand.u32 %s51, 1
        %s372 = sand.u32 %s51, 1
        %s373 = smul.addr %s372, 8
        %s374 = scalar_lea.vmem [#allocation2], %s373
        %p375 = pneg %p64
        %p376 = pneg %p61
        %s377 = sand.u32 %s81, 1
        %s378 = sand.u32 %s81, 1
        %s379 = smul.addr %s378, 8
        %s380 = scalar_lea.vmem [#allocation3], %s379
        %p381 = pneg %p94
        %p382 = pneg %p91
        %p383 = scmp.lt.s32.totalorder %s26, 1
        %s384 = scalar_select %p383, %s26, 1
        %s385 = smul.addr %s384, 2
        %s386 = smul.addr %s385, 4
        %s387 = scalar_lea.vmem %s2, %s386
        %p388 = pneg %p120
        %p389 = pneg %p117
        %p390 = scmp.lt.s32.totalorder %s26, 1
        %s391 = scalar_select %p390, %s26, 1
        %s392 = smul.addr %s391, 8
        %s393 = scalar_lea.vmem %s3, %s392
        %p394 = pneg %p146
        %p395 = pneg %p143
        %p396 = pneg %p176
        %p397 = pneg %p173
        %s398 = sand.u32 %s163, 1
        %s399 = scalar_lea.sflag [#allocation5], %s398
        %s400 = sand.u32 %s163, 1
        %s401 = smul.addr %s400, 8
        %s402 = scalar_lea.vmem [#allocation4], %s401
        %p403 = pneg %p206
        %p404 = pneg %p203
        %p405 = scmp.lt.s32.totalorder %s25, 1
        %s406 = scalar_select %p405, %s25, 1
        %p407 = scmp.lt.s32.totalorder %s26, 1
        %s408 = scalar_select %p407, %s26, 1
        %p409 = scmp.lt.s32.totalorder %s27, 0
        %s410 = scalar_select %p409, %s27, 0
        %s411 = sadd.s32 %s410, %s408
        %s412 = smul.addr %s406, 2
        %s413 = sadd.s32 %s411, %s412
        %s414 = smul.addr %s413, 4
        %s415 = scalar_lea.vmem %s5, %s414
        %s416 = sadd.s32 %s25, %s27
        %p417 = scmp.lt.s32.totalorder %s26, 1
        %s418 = scalar_select %p417, %s26, 1
        %s419 = smul.addr %s418, 2
        %s420 = smul.addr %s419, 4
        %s421 = scalar_lea.vmem %s2, %s420
        %p422 = scmp.lt.s32.totalorder %s26, 1
        %s423 = scalar_select %p422, %s26, 1
        %s424 = smul.addr %s423, 8
        %s425 = scalar_lea.vmem %s3, %s424
        %p426 = scmp.lt.s32.totalorder %s25, 1
        %s427 = scalar_select %p426, %s25, 1
        %p428 = scmp.lt.s32.totalorder %s26, 1
        %s429 = scalar_select %p428, %s26, 1
        %p430 = scmp.lt.s32.totalorder %s27, 0
        %s431 = scalar_select %p430, %s27, 0
        %s432 = sadd.s32 %s431, %s429
        %s433 = smul.addr %s427, 2
        %s434 = sadd.s32 %s432, %s433
        %s435 = smul.addr %s434, 4
        %s436 = scalar_lea.vmem %s5, %s435
        %v438 = vld [vmem:[%s360] sm:$0xf]
        %v439 = vld [vmem:[%s367] sm:$0xf]
        %s440 = scalar_lea.vmem %s360, 4 [#allocation2]
        %v441 = vld [vmem:[%s440] sm:$0xf]
        %s442 = scalar_lea.vmem %s367, 4 [#allocation3]
        %v443 = vld [vmem:[%s442] sm:$0xf]
        %v445 = vrot.slane %v441, 4
        %448 = vrot.lane.b32.xlu0 %v438, 127
        %v449 = vpop.permute.xlu0 %448
        %450 = vrot.lane.b32.xlu0 %v439, 127
        %v451 = vpop.permute.xlu0 %450
        %vm452 = vcmask 1039360
        %v453 = vsel %vm452, %v449, %v451
        %v455 = vrot.slane %v443, 4
        %456 = vrot.lane.b32.xlu0 %v445, 127
        %v457 = vpop.permute.xlu0 %456
        %458 = vrot.lane.b32.xlu0 %v455, 127
        %v459 = vpop.permute.xlu0 %458
        %v460 = vsel %vm452, %v457, %v459
        %461 = vrot.lane.b32.xlu0 %v438, 126
        %v462 = vpop.permute.xlu0 %461
        %463 = vrot.lane.b32.xlu0 %v439, 126
        %v464 = vpop.permute.xlu0 %463
        %vm465 = vcmask 1031168
        %v466 = vsel %vm465, %v462, %v464
        %467 = vrot.lane.b32.xlu0 %v445, 126
        %v468 = vpop.permute.xlu0 %467
        %469 = vrot.lane.b32.xlu0 %v455, 126
        %v470 = vpop.permute.xlu0 %469
        %v471 = vsel %vm465, %v468, %v470
        %472 = vrot.lane.b32.xlu0 %v438, 125
        %v473 = vpop.permute.xlu0 %472
        %474 = vrot.lane.b32.xlu0 %v439, 125
        %v475 = vpop.permute.xlu0 %474
        %vm476 = vcmask 1022976
        %v477 = vsel %vm476, %v473, %v475
        %478 = vrot.lane.b32.xlu0 %v445, 125
        %v479 = vpop.permute.xlu0 %478
        %480 = vrot.lane.b32.xlu0 %v455, 125
        %v481 = vpop.permute.xlu0 %480
        %v482 = vsel %vm476, %v479, %v481
        %483 = vrot.lane.b32.xlu0 %v438, 124
        %v484 = vpop.permute.xlu0 %483
        %485 = vrot.lane.b32.xlu0 %v439, 124
        %v486 = vpop.permute.xlu0 %485
        %vm487 = vcmask 1014784
        %v488 = vsel %vm487, %v484, %v486
        %489 = vrot.lane.b32.xlu0 %v445, 124
        %v490 = vpop.permute.xlu0 %489
        %491 = vrot.lane.b32.xlu0 %v455, 124
        %v492 = vpop.permute.xlu0 %491
        %v493 = vsel %vm487, %v490, %v492
        %494 = vrot.lane.b32.xlu0 %v438, 123
        %v495 = vpop.permute.xlu0 %494
        %496 = vrot.lane.b32.xlu0 %v439, 123
        %v497 = vpop.permute.xlu0 %496
        %vm498 = vcmask 1006592
        %v499 = vsel %vm498, %v495, %v497
        %500 = vrot.lane.b32.xlu0 %v445, 123
        %v501 = vpop.permute.xlu0 %500
        %502 = vrot.lane.b32.xlu0 %v455, 123
        %v503 = vpop.permute.xlu0 %502
        %v504 = vsel %vm498, %v501, %v503
        %505 = vrot.lane.b32.xlu0 %v438, 122
        %v506 = vpop.permute.xlu0 %505
        %507 = vrot.lane.b32.xlu0 %v439, 122
        %v508 = vpop.permute.xlu0 %507
        %vm509 = vcmask 998400
        %v510 = vsel %vm509, %v506, %v508
        %511 = vrot.lane.b32.xlu0 %v445, 122
        %v512 = vpop.permute.xlu0 %511
        %513 = vrot.lane.b32.xlu0 %v455, 122
        %v514 = vpop.permute.xlu0 %513
        %v515 = vsel %vm509, %v512, %v514
        %516 = vrot.lane.b32.xlu0 %v438, 121
        %v517 = vpop.permute.xlu0 %516
        %518 = vrot.lane.b32.xlu0 %v439, 121
        %v519 = vpop.permute.xlu0 %518
        %vm520 = vcmask 990208
        %v521 = vsel %vm520, %v517, %v519
        %522 = vrot.lane.b32.xlu0 %v445, 121
        %v523 = vpop.permute.xlu0 %522
        %524 = vrot.lane.b32.xlu0 %v455, 121
        %v525 = vpop.permute.xlu0 %524
        %v526 = vsel %vm520, %v523, %v525
        %vm527 = vcmask 1043456
        %v530 = vsel %vm527, %v438, %v445
        %v534 = vsel %vm527, %v453, %v460
        %v538 = vsel %vm527, %v466, %v471
        %v542 = vsel %vm527, %v477, %v482
        %v546 = vsel %vm527, %v488, %v493
        %v550 = vsel %vm527, %v499, %v504
        %v554 = vsel %vm527, %v510, %v515
        %v558 = vsel %vm527, %v521, %v526
        %v562 = vsel %vm527, %v439, %v455
        %v565 = vsel %vm527, %v451, %v459
        %570 = vrot.lane.b32.xlu0 %v530, 120
        %v571 = vpop.permute.xlu0 %570
        %572 = vrot.lane.b32.xlu0 %v562, 120
        %v573 = vpop.permute.xlu0 %572
        %574 = vrot.lane.b32.xlu0 %v534, 120
        %v575 = vpop.permute.xlu0 %574
        %576 = vrot.lane.b32.xlu0 %v565, 120
        %v577 = vpop.permute.xlu0 %576
        %578 = vrot.lane.b32.xlu0 %v466, 120
        %v579 = vpop.permute.xlu0 %578
        %580 = vrot.lane.b32.xlu0 %v464, 120
        %v581 = vpop.permute.xlu0 %580
        %vm582 = vcmask 982016
        %v583 = vsel %vm582, %v571, %v573
        %v584 = vsel %vm582, %v575, %v577
        %v585 = vsel %vm582, %v579, %v581
        %v588 = vld [vmem:[%s421] sm:$0xff]
        %v589 = vld [vmem:[%s425] sm:$0xff]
        %591 = vset.pattern.permute.xlu0 0
        %592 = vperm.xlu0 %591, %v589
        %v593 = vpop.permute.xlu0 %592
        %v596 = vunpack.c.l.b16 %v588
        %v597 = vunpack.c.h.b16 %v588
        %v598 = vpack.c.b16 %v596, %v596
        %v599 = vpack.c.b16 %v597, %v597
        %vm601 = vcmask 326656
        %v603 = vsel %vm601, %v599, 0
        %v606 = vsel %vm527, %v585, 0
        %608 = vmatprep.subr.bf16.mxu0 0
        %609 = vmatpush1.bf16.msra.mxu0 %v530
        %610 = vmatprep.subr.bf16.mxu0 0
        %611 = vmatpush1.bf16.msra.mxu0 %v534
        %612 = vmatprep.subr.bf16.mxu0 0
        %613 = vmatpush1.bf16.msra.mxu0 %v538
        %614 = vmatprep.subr.bf16.mxu0 0
        %615 = vmatpush1.bf16.msra.mxu0 %v542
        %616 = vmatprep.subr.bf16.mxu0 0
        %617 = vmatpush1.bf16.msra.mxu0 %v546
        %618 = vmatprep.subr.bf16.mxu0 0
        %619 = vmatpush1.bf16.msra.mxu0 %v550
        %620 = vmatprep.subr.bf16.mxu0 0
        %621 = vmatpush1.bf16.msra.mxu0 %v554
        %622 = vmatprep.subr.bf16.mxu0 0
        %623 = vmatpush1.bf16.msra.mxu0 %v558
        %624 = vmatprep.subr.bf16.mxu0 0
        %625 = vmatpush1.bf16.msra.mxu0 %v583
        %626 = vmatprep.subr.bf16.mxu0 0
        %627 = vmatpush1.bf16.msra.mxu0 %v584
        %628 = vmatprep.subr.bf16.mxu0 0
        %629 = vmatpush1.bf16.msra.mxu0 %v606
        %630 = vmatprep.subr.bf16.mxu0 0
        %631 = vmatpush1.bf16.msra.mxu0 0
        %632 = vmatprep.subr.bf16.mxu0 0
        %633 = vmatpush1.bf16.msra.mxu0 0
        %634 = vmatprep.subr.bf16.mxu0 0
        %635 = vmatpush1.bf16.msra.mxu0 0
        %636 = vmatprep.subr.bf16.mxu0 0
        %637 = vmatpush1.bf16.msra.mxu0 0
        %638 = vmatprep.subr.bf16.mxu0 0
        %639 = vmatpush1.bf16.msra.mxu0 0
        %640 = vmatprep.mubr.bf16.mxu0 %v603
        %641 = vmatmul.mubr.bf16.gmra.mrb[0].mxu0 %v598
        %v642 = vpop.f32.mrb[0].mxu0
        %v643 = vadd.f32 %v593, %v642
        %v644 = vpop.f32.mrb[0].mxu0
        %v645 = vpop.f32.mrb[0].mxu0
        %v646 = vpop.f32.mrb[0].mxu0
        %647 = vdwg.mxu0
        %vm648 = vcmp.ge.f32.partialorder %v643, 0.0
        %v649 = vmul.f32 %v643, 0.2
        %v650 = vsel %vm648, %v643, %v649
        %651 = vst [vmem:[%s402] sm:$0xff] %v650
        %v652 = vpack.c.bf16 %v650, %v650
        %653 = vst [vmem:[%s436] sm:$0xf] %v652
        %s654 = sand.u32 %s163, 1
        %s655 = scalar_lea.sflag [#allocation5], %s654
        %s656 = sand.u32 %s163, 1
        %s657 = smul.addr %s656, 8
        %s658 = scalar_lea.vmem [#allocation4], %s657
        %p659 = scmp.lt.s32.totalorder %s25, 1
        %s660 = scalar_select %p659, %s25, 1
        %p661 = scmp.lt.s32.totalorder %s26, 1
        %s662 = scalar_select %p661, %s26, 1
        %p663 = scmp.lt.s32.totalorder %s27, 0
        %s664 = scalar_select %p663, %s27, 0
        %s665 = sadd.s32 %s664, %s662
        %s666 = smul.addr %s660, 2
        %s667 = sadd.s32 %s665, %s666
        %s668 = smul.addr %s667, 4
        %s669 = scalar_lea.vmem %s5, %s668
        // Predicated region
        $region119: #{_lambda_.7} parent=109 // pred_check
          %p670 = pneg %p173
        $region120: #{_lambda_.7} parent=109 // pred_check_branch
          %672 = sbr.rel (%p670) target = $region122
        $region121: #{_lambda_.7} parent=109 // pred_region
          %s674 = ssub.s32 128, 128
          %675 = vsyncadd %s655, %s674
          %s676 = sadd.s32 %s27, %s26
          %s677 = smul.addr %s25, 2
          %s678 = sadd.s32 %s676, %s677
          %s679 = smul.addr %s678, 128
          %s680 = scalar_lea.hbm %s4, %s679
          %s682 = sshll.u32 %s658, 4
          %s683 = int_to_ptr.vmem [resolvable:$true] %s682
          %685 = dma.vmem_to_hbm [thread:$0]  %s683, 128, %s680, %s655
        $region122: #{_lambda_.7} parent=109 // pred_fallthru
          _
        // Predicated region
        $region123: #{_lambda_.7} parent=109 // pred_check
          %p686 = pneg %p203
        $region124: #{_lambda_.7} parent=109 // pred_check_branch
          %688 = sbr.rel (%p686) target = $region126
        $region125: #{_lambda_.7} parent=109 // pred_region
          _
        $region126: #{_lambda_.7} parent=109 // pred_fallthru
          _
      $region110: #{_lambda_.7} parent=5 // pred_fallthru
        _
      %p689 = scmp.le.s32.totalorder 2, %s15
      // Predicated region
      $region127: #{_lambda_.7} parent=5 // pred_check
        %p690 = pneg %p689
      $region128: #{_lambda_.7} parent=5 // pred_check_branch
        %692 = sbr.rel (%p690) target = $region130
      $region129: #{_lambda_.7} parent=5 // pred_region
        %s693 = ssub.s32 %s15, 2
        // Predicated region
        $region131: #{_lambda_.7} parent=129 // pred_check
          %p694 = pneg %p179
        $region132: #{_lambda_.7} parent=129 // pred_check_branch
          %696 = sbr.rel (%p694) target = $region134
        $region133: #{_lambda_.7} parent=129 // pred_region
          %s697 = sand.u32 %s164, 1
          %s698 = scalar_lea.sflag [#allocation5], %s697
          %s699 = sand.u32 %s164, 1
          %s700 = smul.addr %s699, 8
          %s701 = scalar_lea.vmem [#allocation4], %s700
          %702 = dma.done %s698, 128
        $region134: #{_lambda_.7} parent=129 // pred_fallthru
          _
        // Predicated region
        $region135: #{_lambda_.7} parent=129 // pred_check
          %p703 = pneg %p209
        $region136: #{_lambda_.7} parent=129 // pred_check_branch
          %705 = sbr.rel (%p703) target = $region138
        $region137: #{_lambda_.7} parent=129 // pred_region
          %p706 = scmp.lt.s32.totalorder %s28, 1
          %s707 = scalar_select %p706, %s28, 1
          %p708 = scmp.lt.s32.totalorder %s29, 1
          %s709 = scalar_select %p708, %s29, 1
          %p710 = scmp.lt.s32.totalorder %s30, 0
          %s711 = scalar_select %p710, %s30, 0
          %s712 = sadd.s32 %s711, %s709
          %s713 = smul.addr %s707, 2
          %s714 = sadd.s32 %s712, %s713
          %s715 = smul.addr %s714, 4
          %s716 = scalar_lea.vmem %s5, %s715
        $region138: #{_lambda_.7} parent=129 // pred_fallthru
          _
      $region130: #{_lambda_.7} parent=5 // pred_fallthru
        _
    $region6: #{_lambda_.7} parent=1 // loop_footer
      %s19 = sadd.s32 1, %s15
    $region7: #{_lambda_.7} parent=1 // loop_footer_branch
      %14 = sbr.rel target = $region3
    $region8: #{_lambda_.7} parent=1 // loop_exit
      _
    %717 = vsyncpa [#allocation5], 1
    %s718 = scalar_lea.sflag [#allocation5], 1
    %719 = vsyncpa %s718, 1

// kernel: _lambda_.8
$region0: #{_lambda_.8}
  #allocation0 [shape = 'u32[]', space=smem, size = 0x4, offset = 0x4, fixed_abs, tag = 'smem constant byte address 0x4 - core index']
  #allocation1 [shape = 'u32[144,128]{1,0:T(1,128)}', space=vmem, size = 0x12000, scoped, tag = 'internal scratch']
  %s0 = inlined_call_operand.vmem [shape: bf16[2,1,16,128], index: 0, kind: input, shape index: {}]
  %s1 = inlined_call_operand.vmem [shape: bf16[2,1,16,4], index: 1, kind: input, shape index: {}]
  %s2 = inlined_call_operand.vmem [shape: bf16[1,32,80], index: 2, kind: input, shape index: {}]
  %s3 = inlined_call_operand.vmem [shape: f32[1,32,1], index: 3, kind: input, shape index: {}]
  %s4 = inlined_call_operand.vmem [shape: f32[2,32,128], index: 4, kind: output, shape index: {0}]
  %s5 = inlined_call_operand.vmem [shape: bf16[2,32,128], index: 5, kind: output, shape index: {1}]
  %6 = xla_tuple %s4, %s5
  %s7 = sld [smem:[#allocation0]]
  $region57: #{_lambda_.8} parent=0
    _
  %s9 = ssub.s32 1, %s7
  %s10 = scalar_select 0, %s9, %s7
  loop: start=0, step=1, limit=4
  $region2: #{_lambda_.8} parent=0 // loop_pre_header
    _
  $region3: #{_lambda_.8} parent=0 // loop_header
    %s12 = sphi 0, %s16
    %p13 = scmp.ge.s32.totalorder %s12, 4
    %s19 = sphi 0, %s38
    %s20 = sphi 0, %s34
    %s21 = sphi 0, %s30
    %s22 = sphi 0, %s19
    %s23 = sphi 0, %s20
    %s24 = sphi 0, %s21
    %s25 = sphi 0, %s22
    %s26 = sphi 0, %s23
    %s27 = sphi 0, %s24
    %s45 = sphi 0, %s47
    %s48 = sphi 0, %s45
    %s49 = sphi 0, %s48
    %s65 = sphi 0, %s49
    %s75 = sphi 0, %s77
    %s78 = sphi 0, %s75
    %s79 = sphi 0, %s78
    %s95 = sphi 0, %s79
    %s101 = sphi 0, %s103
    %s104 = sphi 0, %s101
    %s105 = sphi 0, %s104
    %s121 = sphi 0, %s105
    %s127 = sphi 0, %s129
    %s130 = sphi 0, %s127
    %s131 = sphi 0, %s130
    %s147 = sphi 0, %s131
    %s157 = sphi 0, %s159
    %s160 = sphi 0, %s157
    %s161 = sphi 0, %s160
    %s177 = sphi 0, %s161
    %s187 = sphi 0, %s189
    %s190 = sphi 0, %s187
    %s191 = sphi 0, %s190
    %s207 = sphi 0, %s191
  $region4: #{_lambda_.8} parent=0 // loop_header_branch
    %15 = sbr.rel (%p13) target = $region8
  $region5: #{_lambda_.8} parent=0 // loop_body
    %s17 = ssub.s32 %s12, 1
    %s18 = ssub.s32 %s12, 2
    %s28 = sadd.s32 1, %s21
    %p29 = scmp.ge.s32.totalorder %s28, 1
    %s30 = scalar_select %p29, 0, %s28
    %s31 = sadd.s32 1, %s20
    %s32 = scalar_select %p29, %s31, %s20
    %p33 = scmp.ge.s32.totalorder %s32, 1
    %s34 = scalar_select %p33, 0, %s32
    %s35 = sadd.s32 1, %s19
    %s36 = scalar_select %p33, %s35, %s19
    %p37 = scmp.ge.s32.totalorder %s36, 2
    %s38 = scalar_select %p37, 0, %s36
    %s39 = ssub.s32 %s19, %s38
    %s40 = ssub.s32 %s20, %s34
    %s41 = sor.u32 %s39, %s40
    %s42 = ssub.s32 %s21, %s30
    %s43 = sor.u32 %s41, %s42
    %p44 = scmp.eq.s32.totalorder %s43, 0
    %s46 = sadd.s32 %s45, 1
    %s47 = scalar_select %p44, %s45, %s46
    %p50 = pneg %p44
    %p51 = scmp.eq.s32.totalorder %s12, 1
    %p52 = por %p50, %p51
    %p53 = scmp.ne.s32.totalorder %s45, %s48
    %p54 = scmp.eq.s32.totalorder %s12, 0
    %p55 = por %p53, %p54
    %p56 = scmp.ne.s32.totalorder %s45, %s48
    %p57 = scmp.eq.s32.totalorder %s17, 1
    %p58 = por %p56, %p57
    %p59 = scmp.ne.s32.totalorder %s48, %s49
    %p60 = scmp.eq.s32.totalorder %s17, 0
    %p61 = por %p59, %p60
    %p62 = scmp.ne.s32.totalorder %s48, %s49
    %p63 = scmp.eq.s32.totalorder %s18, 1
    %p64 = por %p62, %p63
    %p66 = scmp.ne.s32.totalorder %s49, %s65
    %p67 = scmp.eq.s32.totalorder %s18, 0
    %p68 = por %p66, %p67
    %s69 = sadd.s32 %s19, %s21
    %s70 = sadd.s32 %s38, %s30
    %s71 = ssub.s32 %s69, %s70
    %s72 = ssub.s32 %s20, %s34
    %s73 = sor.u32 %s71, %s72
    %p74 = scmp.eq.s32.totalorder %s73, 0
    %s76 = sadd.s32 %s75, 1
    %s77 = scalar_select %p74, %s75, %s76
    %p80 = pneg %p74
    %p81 = scmp.eq.s32.totalorder %s12, 1
    %p82 = por %p80, %p81
    %p83 = scmp.ne.s32.totalorder %s75, %s78
    %p84 = scmp.eq.s32.totalorder %s12, 0
    %p85 = por %p83, %p84
    %p86 = scmp.ne.s32.totalorder %s75, %s78
    %p87 = scmp.eq.s32.totalorder %s17, 1
    %p88 = por %p86, %p87
    %p89 = scmp.ne.s32.totalorder %s78, %s79
    %p90 = scmp.eq.s32.totalorder %s17, 0
    %p91 = por %p89, %p90
    %p92 = scmp.ne.s32.totalorder %s78, %s79
    %p93 = scmp.eq.s32.totalorder %s18, 1
    %p94 = por %p92, %p93
    %p96 = scmp.ne.s32.totalorder %s79, %s95
    %p97 = scmp.eq.s32.totalorder %s18, 0
    %p98 = por %p96, %p97
    %s99 = ssub.s32 %s20, %s34
    %p100 = scmp.eq.s32.totalorder %s99, 0
    %s102 = sadd.s32 %s101, 1
    %s103 = scalar_select %p100, %s101, %s102
    %p106 = pneg %p100
    %p107 = scmp.eq.s32.totalorder %s12, 1
    %p108 = por %p106, %p107
    %p109 = scmp.ne.s32.totalorder %s101, %s104
    %p110 = scmp.eq.s32.totalorder %s12, 0
    %p111 = por %p109, %p110
    %p112 = scmp.ne.s32.totalorder %s101, %s104
    %p113 = scmp.eq.s32.totalorder %s17, 1
    %p114 = por %p112, %p113
    %p115 = scmp.ne.s32.totalorder %s104, %s105
    %p116 = scmp.eq.s32.totalorder %s17, 0
    %p117 = por %p115, %p116
    %p118 = scmp.ne.s32.totalorder %s104, %s105
    %p119 = scmp.eq.s32.totalorder %s18, 1
    %p120 = por %p118, %p119
    %p122 = scmp.ne.s32.totalorder %s105, %s121
    %p123 = scmp.eq.s32.totalorder %s18, 0
    %p124 = por %p122, %p123
    %s125 = ssub.s32 %s20, %s34
    %p126 = scmp.eq.s32.totalorder %s125, 0
    %s128 = sadd.s32 %s127, 1
    %s129 = scalar_select %p126, %s127, %s128
    %p132 = pneg %p126
    %p133 = scmp.eq.s32.totalorder %s12, 1
    %p134 = por %p132, %p133
    %p135 = scmp.ne.s32.totalorder %s127, %s130
    %p136 = scmp.eq.s32.totalorder %s12, 0
    %p137 = por %p135, %p136
    %p138 = scmp.ne.s32.totalorder %s127, %s130
    %p139 = scmp.eq.s32.totalorder %s17, 1
    %p140 = por %p138, %p139
    %p141 = scmp.ne.s32.totalorder %s130, %s131
    %p142 = scmp.eq.s32.totalorder %s17, 0
    %p143 = por %p141, %p142
    %p144 = scmp.ne.s32.totalorder %s130, %s131
    %p145 = scmp.eq.s32.totalorder %s18, 1
    %p146 = por %p144, %p145
    %p148 = scmp.ne.s32.totalorder %s131, %s147
    %p149 = scmp.eq.s32.totalorder %s18, 0
    %p150 = por %p148, %p149
    %s151 = ssub.s32 %s19, %s38
    %s152 = ssub.s32 %s20, %s34
    %s153 = sor.u32 %s151, %s152
    %s154 = ssub.s32 %s21, %s30
    %s155 = sor.u32 %s153, %s154
    %p156 = scmp.eq.s32.totalorder %s155, 0
    %s158 = sadd.s32 %s157, 1
    %s159 = scalar_select %p156, %s157, %s158
    %p162 = pneg %p156
    %p163 = scmp.eq.s32.totalorder %s12, 1
    %p164 = por %p162, %p163
    %p165 = scmp.ne.s32.totalorder %s157, %s160
    %p166 = scmp.eq.s32.totalorder %s12, 0
    %p167 = por %p165, %p166
    %p168 = scmp.ne.s32.totalorder %s157, %s160
    %p169 = scmp.eq.s32.totalorder %s17, 1
    %p170 = por %p168, %p169
    %p171 = scmp.ne.s32.totalorder %s160, %s161
    %p172 = scmp.eq.s32.totalorder %s17, 0
    %p173 = por %p171, %p172
    %p174 = scmp.ne.s32.totalorder %s160, %s161
    %p175 = scmp.eq.s32.totalorder %s18, 1
    %p176 = por %p174, %p175
    %p178 = scmp.ne.s32.totalorder %s161, %s177
    %p179 = scmp.eq.s32.totalorder %s18, 0
    %p180 = por %p178, %p179
    %s181 = ssub.s32 %s19, %s38
    %s182 = ssub.s32 %s20, %s34
    %s183 = sor.u32 %s181, %s182
    %s184 = ssub.s32 %s21, %s30
    %s185 = sor.u32 %s183, %s184
    %p186 = scmp.eq.s32.totalorder %s185, 0
    %s188 = sadd.s32 %s187, 1
    %s189 = scalar_select %p186, %s187, %s188
    %p192 = pneg %p186
    %p193 = scmp.eq.s32.totalorder %s12, 1
    %p194 = por %p192, %p193
    %p195 = scmp.ne.s32.totalorder %s187, %s190
    %p196 = scmp.eq.s32.totalorder %s12, 0
    %p197 = por %p195, %p196
    %p198 = scmp.ne.s32.totalorder %s187, %s190
    %p199 = scmp.eq.s32.totalorder %s17, 1
    %p200 = por %p198, %p199
    %p201 = scmp.ne.s32.totalorder %s190, %s191
    %p202 = scmp.eq.s32.totalorder %s17, 0
    %p203 = por %p201, %p202
    %p204 = scmp.ne.s32.totalorder %s190, %s191
    %p205 = scmp.eq.s32.totalorder %s18, 1
    %p206 = por %p204, %p205
    %p208 = scmp.ne.s32.totalorder %s191, %s207
    %p209 = scmp.eq.s32.totalorder %s18, 0
    %p210 = por %p208, %p209
    %p211 = scmp.le.s32.totalorder 1, %s12
    %p212 = scmp.lt.s32.totalorder %s12, 3
    %p213 = pnand %p211, %p212
    %p214 = pneg %p213
    // Predicated region
    $region9: #{_lambda_.8} parent=5 // pred_check
      _
    $region10: #{_lambda_.8} parent=5 // pred_check_branch
      %216 = sbr.rel (%p213) target = $region12
    $region11: #{_lambda_.8} parent=5 // pred_region
      %s217 = ssub.s32 %s12, 1
      // Predicated region
      $region13: #{_lambda_.8} parent=11 // pred_check
        %p218 = pneg %p117
      $region14: #{_lambda_.8} parent=11 // pred_check_branch
        %220 = sbr.rel (%p218) target = $region16
      $region15: #{_lambda_.8} parent=11 // pred_region
        %p221 = scmp.lt.s32.totalorder %s23, 0
        %s222 = scalar_select %p221, %s23, 0
        %s223 = smul.addr %s222, 4
        %s224 = smul.addr %s223, 4
        %s225 = scalar_lea.vmem %s2, %s224
      $region16: #{_lambda_.8} parent=11 // pred_fallthru
        _
      // Predicated region
      $region17: #{_lambda_.8} parent=11 // pred_check
        %p226 = pneg %p143
      $region18: #{_lambda_.8} parent=11 // pred_check_branch
        %228 = sbr.rel (%p226) target = $region20
      $region19: #{_lambda_.8} parent=11 // pred_region
        %p229 = scmp.lt.s32.totalorder %s23, 0
        %s230 = scalar_select %p229, %s23, 0
        %s231 = smul.addr %s230, 4
        %s232 = smul.addr %s231, 8
        %s233 = scalar_lea.vmem %s3, %s232
      $region20: #{_lambda_.8} parent=11 // pred_fallthru
        _
    $region12: #{_lambda_.8} parent=5 // pred_fallthru
      _
    %p234 = scmp.lt.s32.totalorder %s12, 2
    // Predicated region
    $region21: #{_lambda_.8} parent=5 // pred_check
      %p235 = pneg %p234
    $region22: #{_lambda_.8} parent=5 // pred_check_branch
      %237 = sbr.rel (%p235) target = $region24
    $region23: #{_lambda_.8} parent=5 // pred_region
      // Predicated region
      $region25: #{_lambda_.8} parent=23 // pred_check
        %p238 = pneg %p55
      $region26: #{_lambda_.8} parent=23 // pred_check_branch
        %240 = sbr.rel (%p238) target = $region28
      $region27: #{_lambda_.8} parent=23 // pred_region
        %s241 = smul.u32 2, %s20
        %p242 = scmp.lt.s32.totalorder %s19, 1
        %s243 = scalar_select %p242, %s19, 1
        %p244 = scmp.lt.s32.totalorder %s241, 1
        %s245 = scalar_select %p244, %s241, 1
        %p246 = scmp.lt.s32.totalorder %s21, 0
        %s247 = scalar_select %p246, %s21, 0
        %s248 = sadd.s32 %s247, %s245
        %s249 = smul.addr %s243, 2
        %s250 = sadd.s32 %s248, %s249
        %s251 = smul.addr %s250, 4
        %s252 = scalar_lea.vmem %s0, %s251
        %s253 = smul.u32 2, %s20
      $region28: #{_lambda_.8} parent=23 // pred_fallthru
        _
      // Predicated region
      $region29: #{_lambda_.8} parent=23 // pred_check
        %p254 = pneg %p85
      $region30: #{_lambda_.8} parent=23 // pred_check_branch
        %256 = sbr.rel (%p254) target = $region32
      $region31: #{_lambda_.8} parent=23 // pred_region
        %s257 = sadd.s32 %s19, %s21
        %s258 = smul.u32 2, %s20
        %p259 = scmp.lt.s32.totalorder %s257, 1
        %s260 = scalar_select %p259, %s257, 1
        %p261 = scmp.lt.s32.totalorder %s258, 1
        %s262 = scalar_select %p261, %s258, 1
        %s263 = smul.addr %s260, 2
        %s264 = sadd.s32 %s262, %s263
        %s265 = smul.addr %s264, 4
        %s266 = scalar_lea.vmem %s1, %s265
        %s267 = sadd.s32 %s19, %s21
        %s268 = smul.u32 2, %s20
      $region32: #{_lambda_.8} parent=23 // pred_fallthru
        _
    $region24: #{_lambda_.8} parent=5 // pred_fallthru
      _
    %p269 = scmp.le.s32.totalorder 1, %s12
    %p270 = scmp.lt.s32.totalorder %s12, 3
    %p271 = pnand %p269, %p270
    %p272 = pneg %p271
    // Predicated region
    $region33: #{_lambda_.8} parent=5 // pred_check
      _
    $region34: #{_lambda_.8} parent=5 // pred_check_branch
      %274 = sbr.rel (%p271) target = $region36
    $region35: #{_lambda_.8} parent=5 // pred_region
      %s275 = ssub.s32 %s12, 1
      %s276 = smul.u32 2, %s23
      %p277 = scmp.lt.s32.totalorder %s22, 1
      %s278 = scalar_select %p277, %s22, 1
      %p279 = scmp.lt.s32.totalorder %s276, 1
      %s280 = scalar_select %p279, %s276, 1
      %p281 = scmp.lt.s32.totalorder %s24, 0
      %s282 = scalar_select %p281, %s24, 0
      %s283 = sadd.s32 %s282, %s280
      %s284 = smul.addr %s278, 2
      %s285 = sadd.s32 %s283, %s284
      %s286 = smul.addr %s285, 4
      %s287 = scalar_lea.vmem %s0, %s286
      %p288 = pneg %p61
      %p289 = pneg %p58
      %s290 = sadd.s32 %s22, %s24
      %s291 = smul.u32 2, %s23
      %p292 = scmp.lt.s32.totalorder %s290, 1
      %s293 = scalar_select %p292, %s290, 1
      %p294 = scmp.lt.s32.totalorder %s291, 1
      %s295 = scalar_select %p294, %s291, 1
      %s296 = smul.addr %s293, 2
      %s297 = sadd.s32 %s295, %s296
      %s298 = smul.addr %s297, 4
      %s299 = scalar_lea.vmem %s1, %s298
      %p300 = pneg %p91
      %p301 = pneg %p88
      %p302 = scmp.lt.s32.totalorder %s23, 0
      %s303 = scalar_select %p302, %s23, 0
      %s304 = smul.addr %s303, 4
      %s305 = smul.addr %s304, 4
      %s306 = scalar_lea.vmem %s2, %s305
      %p307 = pneg %p117
      %p308 = pneg %p114
      %p309 = scmp.lt.s32.totalorder %s23, 0
      %s310 = scalar_select %p309, %s23, 0
      %s311 = smul.addr %s310, 4
      %s312 = smul.addr %s311, 8
      %s313 = scalar_lea.vmem %s3, %s312
      %p314 = pneg %p143
      %p315 = pneg %p140
      %p316 = pneg %p173
      %p317 = pneg %p170
      %s318 = smul.u32 4, %s23
      %p319 = scmp.lt.s32.totalorder %s22, 1
      %s320 = scalar_select %p319, %s22, 1
      %p321 = scmp.lt.s32.totalorder %s318, 3
      %s322 = scalar_select %p321, %s318, 3
      %p323 = scmp.lt.s32.totalorder %s24, 0
      %s324 = scalar_select %p323, %s24, 0
      %s325 = sadd.s32 %s324, %s322
      %s326 = smul.addr %s320, 4
      %s327 = sadd.s32 %s325, %s326
      %s328 = smul.addr %s327, 8
      %s329 = scalar_lea.vmem %s4, %s328
      %p330 = pneg %p203
      %p331 = pneg %p200
      %s332 = smul.u32 4, %s23
      %p333 = scmp.lt.s32.totalorder %s22, 1
      %s334 = scalar_select %p333, %s22, 1
      %p335 = scmp.lt.s32.totalorder %s332, 3
      %s336 = scalar_select %p335, %s332, 3
      %p337 = scmp.lt.s32.totalorder %s24, 0
      %s338 = scalar_select %p337, %s24, 0
      %s339 = sadd.s32 %s338, %s336
      %s340 = smul.addr %s334, 4
      %s341 = sadd.s32 %s339, %s340
      %s342 = smul.addr %s341, 4
      %s343 = scalar_lea.vmem %s5, %s342
      %s344 = smul.u32 2, %s23
      %p345 = scmp.lt.s32.totalorder %s22, 1
      %s346 = scalar_select %p345, %s22, 1
      %p347 = scmp.lt.s32.totalorder %s344, 1
      %s348 = scalar_select %p347, %s344, 1
      %p349 = scmp.lt.s32.totalorder %s24, 0
      %s350 = scalar_select %p349, %s24, 0
      %s351 = sadd.s32 %s350, %s348
      %s352 = smul.addr %s346, 2
      %s353 = sadd.s32 %s351, %s352
      %s354 = smul.addr %s353, 4
      %s355 = scalar_lea.vmem %s0, %s354
      %s356 = smul.u32 2, %s23
      %s357 = sadd.s32 %s22, %s24
      %s358 = smul.u32 2, %s23
      %p359 = scmp.lt.s32.totalorder %s357, 1
      %s360 = scalar_select %p359, %s357, 1
      %p361 = scmp.lt.s32.totalorder %s358, 1
      %s362 = scalar_select %p361, %s358, 1
      %s363 = smul.addr %s360, 2
      %s364 = sadd.s32 %s362, %s363
      %s365 = smul.addr %s364, 4
      %s366 = scalar_lea.vmem %s1, %s365
      %s367 = sadd.s32 %s22, %s24
      %s368 = smul.u32 2, %s23
      %p369 = scmp.lt.s32.totalorder %s23, 0
      %s370 = scalar_select %p369, %s23, 0
      %s371 = smul.addr %s370, 4
      %s372 = smul.addr %s371, 4
      %s373 = scalar_lea.vmem %s2, %s372
      %p374 = scmp.lt.s32.totalorder %s23, 0
      %s375 = scalar_select %p374, %s23, 0
      %s376 = smul.addr %s375, 4
      %s377 = smul.addr %s376, 8
      %s378 = scalar_lea.vmem %s3, %s377
      %s379 = smul.u32 4, %s23
      %p380 = scmp.lt.s32.totalorder %s22, 1
      %s381 = scalar_select %p380, %s22, 1
      %p382 = scmp.lt.s32.totalorder %s379, 3
      %s383 = scalar_select %p382, %s379, 3
      %p384 = scmp.lt.s32.totalorder %s24, 0
      %s385 = scalar_select %p384, %s24, 0
      %s386 = sadd.s32 %s385, %s383
      %s387 = smul.addr %s381, 4
      %s388 = sadd.s32 %s386, %s387
      %s389 = smul.addr %s388, 8
      %s390 = scalar_lea.vmem %s4, %s389
      %s391 = smul.u32 4, %s23
      %s392 = smul.u32 4, %s23
      %p393 = scmp.lt.s32.totalorder %s22, 1
      %s394 = scalar_select %p393, %s22, 1
      %p395 = scmp.lt.s32.totalorder %s392, 3
      %s396 = scalar_select %p395, %s392, 3
      %p397 = scmp.lt.s32.totalorder %s24, 0
      %s398 = scalar_select %p397, %s24, 0
      %s399 = sadd.s32 %s398, %s396
      %s400 = smul.addr %s394, 4
      %s401 = sadd.s32 %s399, %s400
      %s402 = smul.addr %s401, 4
      %s403 = scalar_lea.vmem %s5, %s402
      %s404 = smul.u32 4, %s23
      %v406 = vld [vmem:[%s355] sm:$0xf]
      %v407 = vld [vmem:[%s355 + $0x4] sm:$0xf]
      %v408 = vld [vmem:[%s366] sm:$0xf]
      %v409 = vld [vmem:[%s366 + $0x4] sm:$0xf]
      %v412 = vunpack.c.l.b16 %v406
      %v413 = vunpack.c.l.b16 %v407
      %v414 = vpack.c.b16 %v413, %v412
      %v418 = vunpack.c.l.b16 %v408
      %v419 = vunpack.c.l.b16 %v409
      %v420 = vpack.c.b16 %v419, %v418
      %421 = vrot.lane.b32.xlu0 %v414, 127
      %v422 = vpop.permute.xlu0 %421
      %423 = vrot.lane.b32.xlu0 %v420, 127
      %v424 = vpop.permute.xlu0 %423
      %vm425 = vcmask 1039360
      %v426 = vsel %vm425, %v422, %v424
      %428 = vrot.lane.b32.xlu0 %v414, 126
      %v429 = vpop.permute.xlu0 %428
      %430 = vrot.lane.b32.xlu0 %v420, 126
      %v431 = vpop.permute.xlu0 %430
      %vm432 = vcmask 1031168
      %v433 = vsel %vm432, %v429, %v431
      %435 = vrot.lane.b32.xlu0 %v414, 125
      %v436 = vpop.permute.xlu0 %435
      %437 = vrot.lane.b32.xlu0 %v420, 125
      %v438 = vpop.permute.xlu0 %437
      %vm439 = vcmask 1022976
      %v440 = vsel %vm439, %v436, %v438
      %442 = vrot.lane.b32.xlu0 %v414, 124
      %v443 = vpop.permute.xlu0 %442
      %444 = vrot.lane.b32.xlu0 %v420, 124
      %v445 = vpop.permute.xlu0 %444
      %vm446 = vcmask 1014784
      %v447 = vsel %vm446, %v443, %v445
      %v449 = vld [vmem:[%s373] sm:$0xf]
      %v450 = vld [vmem:[%s373 + $0x4] sm:$0xf]
      %v451 = vld [vmem:[%s373 + $0x8] sm:$0xf]
      %v452 = vld [vmem:[%s373 + $0xc] sm:$0xf]
      %v453 = vld [vmem:[%s378] sm:$0xff]
      %v454 = vld [vmem:[%s378 + $0x8] sm:$0xff]
      %v455 = vld [vmem:[%s378 + $0x10] sm:$0xff]
      %v456 = vld [vmem:[%s378 + $0x18] sm:$0xff]
      %458 = vset.pattern.permute.xlu0 0
      %459 = vperm.xlu0 %458, %v453
      %v460 = vpop.permute.xlu0 %459
      %463 = vset.pattern.permute.xlu0 0
      %464 = vperm.xlu0 %463, %v454
      %v465 = vpop.permute.xlu0 %464
      %468 = vset.pattern.permute.xlu0 0
      %469 = vperm.xlu0 %468, %v455
      %v470 = vpop.permute.xlu0 %469
      %473 = vset.pattern.permute.xlu0 0
      %474 = vperm.xlu0 %473, %v456
      %v475 = vpop.permute.xlu0 %474
      %v481 = vunpack.c.l.b16 %v449
      %v482 = vunpack.c.l.b16 %v450
      %v483 = vunpack.c.l.b16 %v451
      %v484 = vunpack.c.l.b16 %v452
      %v485 = vpack.c.b16 %v482, %v481
      %v486 = vpack.c.b16 %v484, %v483
      %vm487 = vcmask 654336
      %v489 = vsel %vm487, %v485, 0
      %v492 = vsel %vm487, %v486, 0
      %494 = vmatprep.subr.bf16.mxu0 0
      %495 = vmatpush1.bf16.msra.mxu0 %v414
      %496 = vmatprep.subr.bf16.mxu0 0
      %497 = vmatpush1.bf16.msra.mxu0 %v426
      %498 = vmatprep.subr.bf16.mxu0 0
      %499 = vmatpush1.bf16.msra.mxu0 %v433
      %500 = vmatprep.subr.bf16.mxu0 0
      %501 = vmatpush1.bf16.msra.mxu0 %v440
      %502 = vmatprep.subr.bf16.mxu0 0
      %503 = vmatpush1.bf16.msra.mxu0 %v447
      %504 = vmatprep.subr.bf16.mxu0 0
      %505 = vmatpush1.bf16.msra.mxu0 0
      %506 = vmatprep.subr.bf16.mxu0 0
      %507 = vmatpush1.bf16.msra.mxu0 0
      %508 = vmatprep.subr.bf16.mxu0 0
      %509 = vmatpush1.bf16.msra.mxu0 0
      %510 = vmatprep.subr.bf16.mxu0 0
      %511 = vmatpush1.bf16.msra.mxu0 0
      %512 = vmatprep.subr.bf16.mxu0 0
      %513 = vmatpush1.bf16.msra.mxu0 0
      %514 = vmatprep.subr.bf16.mxu0 0
      %515 = vmatpush1.bf16.msra.mxu0 0
      %516 = vmatprep.subr.bf16.mxu0 0
      %517 = vmatpush1.bf16.msra.mxu0 0
      %518 = vmatprep.subr.bf16.mxu0 0
      %519 = vmatpush1.bf16.msra.mxu0 0
      %520 = vmatprep.subr.bf16.mxu0 0
      %521 = vmatpush1.bf16.msra.mxu0 0
      %522 = vmatprep.subr.bf16.mxu0 0
      %523 = vmatpush1.bf16.msra.mxu0 0
      %524 = vmatprep.subr.bf16.mxu0 0
      %525 = vmatpush1.bf16.msra.mxu0 0
      %526 = vmatprep.mubr.bf16.mxu0 0
      %527 = vmatmul.mubr.bf16.gmra.mrb[0].mxu0 %v489
      %v528 = vpop.f32.mrb[0].mxu0
      %v529 = vadd.f32 %v460, %v528
      %v530 = vpop.f32.mrb[0].mxu0
      %v531 = vpop.f32.mrb[0].mxu0
      %v532 = vadd.f32 %v465, %v531
      %v533 = vpop.f32.mrb[0].mxu0
      %534 = vmatprep.mubr.bf16.mxu0 0
      %535 = vmatmul.mubr.bf16.gmra.mrb[0].mxu0 %v492
      %v536 = vpop.f32.mrb[0].mxu0
      %v537 = vadd.f32 %v470, %v536
      %v538 = vpop.f32.mrb[0].mxu0
      %v539 = vpop.f32.mrb[0].mxu0
      %v540 = vadd.f32 %v475, %v539
      %v541 = vpop.f32.mrb[0].mxu0
      %542 = vdwg.mxu0
      %vm543 = vcmp.ge.f32.partialorder %v529, 0.0
      %vm544 = vcmp.ge.f32.partialorder %v532, 0.0
      %vm545 = vcmp.ge.f32.partialorder %v537, 0.0
      %vm546 = vcmp.ge.f32.partialorder %v540, 0.0
      %v547 = vmul.f32 %v529, 0.2
      %v548 = vmul.f32 %v532, 0.2
      %v549 = vmul.f32 %v537, 0.2
      %v550 = vmul.f32 %v540, 0.2
      %v551 = vsel %vm543, %v529, %v547
      %v552 = vsel %vm544, %v532, %v548
      %v553 = vsel %vm545, %v537, %v549
      %v554 = vsel %vm546, %v540, %v550
      %555 = vst [vmem:[%s390] sm:$0xff] %v551
      %556 = vst [vmem:[%s390 + $0x8] sm:$0xff] %v552
      %557 = vst [vmem:[%s390 + $0x10] sm:$0xff] %v553
      %558 = vst [vmem:[%s390 + $0x18] sm:$0xff] %v554
      %v559 = vpack.c.bf16 %v552, %v551
      %v560 = vpack.c.bf16 %v554, %v553
      %v563 = vunpack.c.l.b16 %v559
      %v564 = vunpack.c.h.b16 %v559
      %v565 = vunpack.c.l.b16 %v560
      %v566 = vunpack.c.h.b16 %v560
      %v567 = vpack.c.b16 %v563, %v563
      %v568 = vpack.c.b16 %v564, %v564
      %v569 = vpack.c.b16 %v565, %v565
      %v570 = vpack.c.b16 %v566, %v566
      %575 = vst [vmem:[%s403] sm:$0xf] %v567
      %576 = vst [vmem:[%s403 + $0x4] sm:$0xf] %v568
      %577 = vst [vmem:[%s403 + $0x8] sm:$0xf] %v569
      %578 = vst [vmem:[%s403 + $0xc] sm:$0xf] %v570
      %s579 = smul.u32 4, %s23
      %p580 = scmp.lt.s32.totalorder %s22, 1
      %s581 = scalar_select %p580, %s22, 1
      %p582 = scmp.lt.s32.totalorder %s579, 3
      %s583 = scalar_select %p582, %s579, 3
      %p584 = scmp.lt.s32.totalorder %s24, 0
      %s585 = scalar_select %p584, %s24, 0
      %s586 = sadd.s32 %s585, %s583
      %s587 = smul.addr %s581, 4
      %s588 = sadd.s32 %s586, %s587
      %s589 = smul.addr %s588, 8
      %s590 = scalar_lea.vmem %s4, %s589
      %s591 = smul.u32 4, %s23
      %p592 = scmp.lt.s32.totalorder %s22, 1
      %s593 = scalar_select %p592, %s22, 1
      %p594 = scmp.lt.s32.totalorder %s591, 3
      %s595 = scalar_select %p594, %s591, 3
      %p596 = scmp.lt.s32.totalorder %s24, 0
      %s597 = scalar_select %p596, %s24, 0
      %s598 = sadd.s32 %s597, %s595
      %s599 = smul.addr %s593, 4
      %s600 = sadd.s32 %s598, %s599
      %s601 = smul.addr %s600, 4
      %s602 = scalar_lea.vmem %s5, %s601
      // Predicated region
      $region37: #{_lambda_.8} parent=35 // pred_check
        %p603 = pneg %p170
      $region38: #{_lambda_.8} parent=35 // pred_check_branch
        %605 = sbr.rel (%p603) target = $region40
      $region39: #{_lambda_.8} parent=35 // pred_region
        %s606 = smul.u32 4, %s23
      $region40: #{_lambda_.8} parent=35 // pred_fallthru
        _
      // Predicated region
      $region41: #{_lambda_.8} parent=35 // pred_check
        %p607 = pneg %p200
      $region42: #{_lambda_.8} parent=35 // pred_check_branch
        %609 = sbr.rel (%p607) target = $region44
      $region43: #{_lambda_.8} parent=35 // pred_region
        %s610 = smul.u32 4, %s23
      $region44: #{_lambda_.8} parent=35 // pred_fallthru
        _
    $region36: #{_lambda_.8} parent=5 // pred_fallthru
      _
    %p611 = scmp.le.s32.totalorder 2, %s12
    // Predicated region
    $region45: #{_lambda_.8} parent=5 // pred_check
      %p612 = pneg %p611
    $region46: #{_lambda_.8} parent=5 // pred_check_branch
      %614 = sbr.rel (%p612) target = $region48
    $region47: #{_lambda_.8} parent=5 // pred_region
      %s615 = ssub.s32 %s12, 2
      // Predicated region
      $region49: #{_lambda_.8} parent=47 // pred_check
        %p616 = pneg %p176
      $region50: #{_lambda_.8} parent=47 // pred_check_branch
        %618 = sbr.rel (%p616) target = $region52
      $region51: #{_lambda_.8} parent=47 // pred_region
        %s619 = smul.u32 4, %s26
        %p620 = scmp.lt.s32.totalorder %s25, 1
        %s621 = scalar_select %p620, %s25, 1
        %p622 = scmp.lt.s32.totalorder %s619, 3
        %s623 = scalar_select %p622, %s619, 3
        %p624 = scmp.lt.s32.totalorder %s27, 0
        %s625 = scalar_select %p624, %s27, 0
        %s626 = sadd.s32 %s625, %s623
        %s627 = smul.addr %s621, 4
        %s628 = sadd.s32 %s626, %s627
        %s629 = smul.addr %s628, 8
        %s630 = scalar_lea.vmem %s4, %s629
      $region52: #{_lambda_.8} parent=47 // pred_fallthru
        _
      // Predicated region
      $region53: #{_lambda_.8} parent=47 // pred_check
        %p631 = pneg %p206
      $region54: #{_lambda_.8} parent=47 // pred_check_branch
        %633 = sbr.rel (%p631) target = $region56
      $region55: #{_lambda_.8} parent=47 // pred_region
        %s634 = smul.u32 4, %s26
        %p635 = scmp.lt.s32.totalorder %s25, 1
        %s636 = scalar_select %p635, %s25, 1
        %p637 = scmp.lt.s32.totalorder %s634, 3
        %s638 = scalar_select %p637, %s634, 3
        %p639 = scmp.lt.s32.totalorder %s27, 0
        %s640 = scalar_select %p639, %s27, 0
        %s641 = sadd.s32 %s640, %s638
        %s642 = smul.addr %s636, 4
        %s643 = sadd.s32 %s641, %s642
        %s644 = smul.addr %s643, 4
        %s645 = scalar_lea.vmem %s5, %s644
      $region56: #{_lambda_.8} parent=47 // pred_fallthru
        _
    $region48: #{_lambda_.8} parent=5 // pred_fallthru
      _
  $region6: #{_lambda_.8} parent=0 // loop_footer
    %s16 = sadd.s32 1, %s12
  $region7: #{_lambda_.8} parent=0 // loop_footer_branch
    %11 = sbr.rel target = $region3
  $region8: #{_lambda_.8} parent=0 // loop_exit
    _

// kernel: _lambda_.9
$region0: #{_lambda_.9}
  #allocation0 [shape = 'u32[]', space=smem, size = 0x4, offset = 0x4, fixed_abs, tag = 'smem constant byte address 0x4 - core index']
  #allocation1 [shape = 'u32[144,128]{1,0:T(1,128)}', space=vmem, size = 0x12000, scoped, tag = 'internal scratch']
  #allocation2 [shape = 'f32[1,1,1]{2,1,0:T(1,128)S(1)}', space=vmem, size = 0x200, scoped, tag = 'scoped memory for _lambda_.9']
  %s0 = inlined_call_operand.vmem [shape: bf16[2,1,32,128], index: 0, kind: input, shape index: {}]
  %s1 = inlined_call_operand.vmem [shape: bf16[2,1,32,2], index: 1, kind: input, shape index: {}]
  %s2 = inlined_call_operand.vmem [shape: bf16[1,1,96], index: 2, kind: input, shape index: {}]
  %s3 = inlined_call_operand.<no memory space> [shape: f32[1,1,1], index: 3, kind: input, shape index: {}]
  %s4 = inlined_call_operand.vmem [shape: f32[2,1,128], index: 4, kind: output, shape index: {0}]
  %s5 = inlined_call_operand.hbm [shape: bf16[2,1,128], index: 5, kind: output, shape index: {1}]
  %6 = xla_tuple %s4, %s5
  %s7 = sld [smem:[#allocation0]]
  $region57: #{_lambda_.9} parent=0
    _
  %s9 = ssub.s32 1, %s7
  %s10 = scalar_select 0, %s9, %s7
  %v11 = vstv %s3
  %12 = vst [vmem:[#allocation2] sm:$0x1] %v11
  $region1: #{_lambda_.9} parent=0
    #allocation3 [shape = 'u8[1024]{0}', space=vmem, size = 0x400, scoped, tag = 'output window, operand 1']
    #allocation4 [shape = 's32[2]{0}', space=sflag, size = 0x8, scoped, tag = 'scoped memory for _lambda_.9']
    %13 = vsyncpa [#allocation4], 0
    %s14 = scalar_lea.sflag [#allocation4], 1
    %15 = vsyncpa %s14, 0
    loop: start=0, step=1, limit=4
    $region2: #{_lambda_.9} parent=1 // loop_pre_header
      _
    $region3: #{_lambda_.9} parent=1 // loop_header
      %s17 = sphi 0, %s21
      %p18 = scmp.ge.s32.totalorder %s17, 4
      %s24 = sphi 0, %s43
      %s25 = sphi 0, %s39
      %s26 = sphi 0, %s35
      %s27 = sphi 0, %s24
      %s28 = sphi 0, %s25
      %s29 = sphi 0, %s26
      %s30 = sphi 0, %s27
      %s31 = sphi 0, %s28
      %s32 = sphi 0, %s29
      %s50 = sphi 0, %s52
      %s53 = sphi 0, %s50
      %s54 = sphi 0, %s53
      %s70 = sphi 0, %s54
      %s80 = sphi 0, %s82
      %s83 = sphi 0, %s80
      %s84 = sphi 0, %s83
      %s100 = sphi 0, %s84
      %s106 = sphi 0, %s108
      %s109 = sphi 0, %s106
      %s110 = sphi 0, %s109
      %s126 = sphi 0, %s110
      %s132 = sphi 0, %s134
      %s135 = sphi 0, %s132
      %s136 = sphi 0, %s135
      %s152 = sphi 0, %s136
      %s162 = sphi 0, %s164
      %s165 = sphi 0, %s162
      %s166 = sphi 0, %s165
      %s182 = sphi 0, %s166
      %s192 = sphi 0, %s194
      %s195 = sphi 0, %s192
      %s196 = sphi 0, %s195
      %s212 = sphi 0, %s196
    $region4: #{_lambda_.9} parent=1 // loop_header_branch
      %20 = sbr.rel (%p18) target = $region8
    $region5: #{_lambda_.9} parent=1 // loop_body
      %s22 = ssub.s32 %s17, 1
      %s23 = ssub.s32 %s17, 2
      %s33 = sadd.s32 1, %s26
      %p34 = scmp.ge.s32.totalorder %s33, 1
      %s35 = scalar_select %p34, 0, %s33
      %s36 = sadd.s32 1, %s25
      %s37 = scalar_select %p34, %s36, %s25
      %p38 = scmp.ge.s32.totalorder %s37, 1
      %s39 = scalar_select %p38, 0, %s37
      %s40 = sadd.s32 1, %s24
      %s41 = scalar_select %p38, %s40, %s24
      %p42 = scmp.ge.s32.totalorder %s41, 2
      %s43 = scalar_select %p42, 0, %s41
      %s44 = ssub.s32 %s24, %s43
      %s45 = ssub.s32 %s25, %s39
      %s46 = sor.u32 %s44, %s45
      %s47 = ssub.s32 %s26, %s35
      %s48 = sor.u32 %s46, %s47
      %p49 = scmp.eq.s32.totalorder %s48, 0
      %s51 = sadd.s32 %s50, 1
      %s52 = scalar_select %p49, %s50, %s51
      %p55 = pneg %p49
      %p56 = scmp.eq.s32.totalorder %s17, 1
      %p57 = por %p55, %p56
      %p58 = scmp.ne.s32.totalorder %s50, %s53
      %p59 = scmp.eq.s32.totalorder %s17, 0
      %p60 = por %p58, %p59
      %p61 = scmp.ne.s32.totalorder %s50, %s53
      %p62 = scmp.eq.s32.totalorder %s22, 1
      %p63 = por %p61, %p62
      %p64 = scmp.ne.s32.totalorder %s53, %s54
      %p65 = scmp.eq.s32.totalorder %s22, 0
      %p66 = por %p64, %p65
      %p67 = scmp.ne.s32.totalorder %s53, %s54
      %p68 = scmp.eq.s32.totalorder %s23, 1
      %p69 = por %p67, %p68
      %p71 = scmp.ne.s32.totalorder %s54, %s70
      %p72 = scmp.eq.s32.totalorder %s23, 0
      %p73 = por %p71, %p72
      %s74 = sadd.s32 %s24, %s26
      %s75 = sadd.s32 %s43, %s35
      %s76 = ssub.s32 %s74, %s75
      %s77 = ssub.s32 %s25, %s39
      %s78 = sor.u32 %s76, %s77
      %p79 = scmp.eq.s32.totalorder %s78, 0
      %s81 = sadd.s32 %s80, 1
      %s82 = scalar_select %p79, %s80, %s81
      %p85 = pneg %p79
      %p86 = scmp.eq.s32.totalorder %s17, 1
      %p87 = por %p85, %p86
      %p88 = scmp.ne.s32.totalorder %s80, %s83
      %p89 = scmp.eq.s32.totalorder %s17, 0
      %p90 = por %p88, %p89
      %p91 = scmp.ne.s32.totalorder %s80, %s83
      %p92 = scmp.eq.s32.totalorder %s22, 1
      %p93 = por %p91, %p92
      %p94 = scmp.ne.s32.totalorder %s83, %s84
      %p95 = scmp.eq.s32.totalorder %s22, 0
      %p96 = por %p94, %p95
      %p97 = scmp.ne.s32.totalorder %s83, %s84
      %p98 = scmp.eq.s32.totalorder %s23, 1
      %p99 = por %p97, %p98
      %p101 = scmp.ne.s32.totalorder %s84, %s100
      %p102 = scmp.eq.s32.totalorder %s23, 0
      %p103 = por %p101, %p102
      %s104 = ssub.s32 %s25, %s39
      %p105 = scmp.eq.s32.totalorder %s104, 0
      %s107 = sadd.s32 %s106, 1
      %s108 = scalar_select %p105, %s106, %s107
      %p111 = pneg %p105
      %p112 = scmp.eq.s32.totalorder %s17, 1
      %p113 = por %p111, %p112
      %p114 = scmp.ne.s32.totalorder %s106, %s109
      %p115 = scmp.eq.s32.totalorder %s17, 0
      %p116 = por %p114, %p115
      %p117 = scmp.ne.s32.totalorder %s106, %s109
      %p118 = scmp.eq.s32.totalorder %s22, 1
      %p119 = por %p117, %p118
      %p120 = scmp.ne.s32.totalorder %s109, %s110
      %p121 = scmp.eq.s32.totalorder %s22, 0
      %p122 = por %p120, %p121
      %p123 = scmp.ne.s32.totalorder %s109, %s110
      %p124 = scmp.eq.s32.totalorder %s23, 1
      %p125 = por %p123, %p124
      %p127 = scmp.ne.s32.totalorder %s110, %s126
      %p128 = scmp.eq.s32.totalorder %s23, 0
      %p129 = por %p127, %p128
      %s130 = ssub.s32 %s25, %s39
      %p131 = scmp.eq.s32.totalorder %s130, 0
      %s133 = sadd.s32 %s132, 1
      %s134 = scalar_select %p131, %s132, %s133
      %p137 = pneg %p131
      %p138 = scmp.eq.s32.totalorder %s17, 1
      %p139 = por %p137, %p138
      %p140 = scmp.ne.s32.totalorder %s132, %s135
      %p141 = scmp.eq.s32.totalorder %s17, 0
      %p142 = por %p140, %p141
      %p143 = scmp.ne.s32.totalorder %s132, %s135
      %p144 = scmp.eq.s32.totalorder %s22, 1
      %p145 = por %p143, %p144
      %p146 = scmp.ne.s32.totalorder %s135, %s136
      %p147 = scmp.eq.s32.totalorder %s22, 0
      %p148 = por %p146, %p147
      %p149 = scmp.ne.s32.totalorder %s135, %s136
      %p150 = scmp.eq.s32.totalorder %s23, 1
      %p151 = por %p149, %p150
      %p153 = scmp.ne.s32.totalorder %s136, %s152
      %p154 = scmp.eq.s32.totalorder %s23, 0
      %p155 = por %p153, %p154
      %s156 = ssub.s32 %s24, %s43
      %s157 = ssub.s32 %s25, %s39
      %s158 = sor.u32 %s156, %s157
      %s159 = ssub.s32 %s26, %s35
      %s160 = sor.u32 %s158, %s159
      %p161 = scmp.eq.s32.totalorder %s160, 0
      %s163 = sadd.s32 %s162, 1
      %s164 = scalar_select %p161, %s162, %s163
      %p167 = pneg %p161
      %p168 = scmp.eq.s32.totalorder %s17, 1
      %p169 = por %p167, %p168
      %p170 = scmp.ne.s32.totalorder %s162, %s165
      %p171 = scmp.eq.s32.totalorder %s17, 0
      %p172 = por %p170, %p171
      %p173 = scmp.ne.s32.totalorder %s162, %s165
      %p174 = scmp.eq.s32.totalorder %s22, 1
      %p175 = por %p173, %p174
      %p176 = scmp.ne.s32.totalorder %s165, %s166
      %p177 = scmp.eq.s32.totalorder %s22, 0
      %p178 = por %p176, %p177
      %p179 = scmp.ne.s32.totalorder %s165, %s166
      %p180 = scmp.eq.s32.totalorder %s23, 1
      %p181 = por %p179, %p180
      %p183 = scmp.ne.s32.totalorder %s166, %s182
      %p184 = scmp.eq.s32.totalorder %s23, 0
      %p185 = por %p183, %p184
      %s186 = ssub.s32 %s24, %s43
      %s187 = ssub.s32 %s25, %s39
      %s188 = sor.u32 %s186, %s187
      %s189 = ssub.s32 %s26, %s35
      %s190 = sor.u32 %s188, %s189
      %p191 = scmp.eq.s32.totalorder %s190, 0
      %s193 = sadd.s32 %s192, 1
      %s194 = scalar_select %p191, %s192, %s193
      %p197 = pneg %p191
      %p198 = scmp.eq.s32.totalorder %s17, 1
      %p199 = por %p197, %p198
      %p200 = scmp.ne.s32.totalorder %s192, %s195
      %p201 = scmp.eq.s32.totalorder %s17, 0
      %p202 = por %p200, %p201
      %p203 = scmp.ne.s32.totalorder %s192, %s195
      %p204 = scmp.eq.s32.totalorder %s22, 1
      %p205 = por %p203, %p204
      %p206 = scmp.ne.s32.totalorder %s195, %s196
      %p207 = scmp.eq.s32.totalorder %s22, 0
      %p208 = por %p206, %p207
      %p209 = scmp.ne.s32.totalorder %s195, %s196
      %p210 = scmp.eq.s32.totalorder %s23, 1
      %p211 = por %p209, %p210
      %p213 = scmp.ne.s32.totalorder %s196, %s212
      %p214 = scmp.eq.s32.totalorder %s23, 0
      %p215 = por %p213, %p214
      %p216 = scmp.le.s32.totalorder 1, %s17
      %p217 = scmp.lt.s32.totalorder %s17, 3
      %p218 = pnand %p216, %p217
      %p219 = pneg %p218
      // Predicated region
      $region9: #{_lambda_.9} parent=5 // pred_check
        _
      $region10: #{_lambda_.9} parent=5 // pred_check_branch
        %221 = sbr.rel (%p218) target = $region12
      $region11: #{_lambda_.9} parent=5 // pred_region
        %s222 = ssub.s32 %s17, 1
        // Predicated region
        $region13: #{_lambda_.9} parent=11 // pred_check
          %p223 = pneg %p122
        $region14: #{_lambda_.9} parent=11 // pred_check_branch
          %225 = sbr.rel (%p223) target = $region16
        $region15: #{_lambda_.9} parent=11 // pred_region
          %p226 = scmp.lt.s32.totalorder %s28, 0
          %s227 = scalar_select %p226, %s28, 0
          %s228 = scalar_lea.vmem %s2, %s227
        $region16: #{_lambda_.9} parent=11 // pred_fallthru
          _
        // Predicated region
        $region17: #{_lambda_.9} parent=11 // pred_check
          %p229 = pneg %p148
        $region18: #{_lambda_.9} parent=11 // pred_check_branch
          %231 = sbr.rel (%p229) target = $region20
        $region19: #{_lambda_.9} parent=11 // pred_region
          %p232 = scmp.lt.s32.totalorder %s28, 0
          %s233 = scalar_select %p232, %s28, 0
          %s234 = scalar_lea.vmem [#allocation2], %s233
        $region20: #{_lambda_.9} parent=11 // pred_fallthru
          _
      $region12: #{_lambda_.9} parent=5 // pred_fallthru
        _
      %p235 = scmp.lt.s32.totalorder %s17, 2
      // Predicated region
      $region21: #{_lambda_.9} parent=5 // pred_check
        %p236 = pneg %p235
      $region22: #{_lambda_.9} parent=5 // pred_check_branch
        %238 = sbr.rel (%p236) target = $region24
      $region23: #{_lambda_.9} parent=5 // pred_region
        // Predicated region
        $region25: #{_lambda_.9} parent=23 // pred_check
          %p239 = pneg %p60
        $region26: #{_lambda_.9} parent=23 // pred_check_branch
          %241 = sbr.rel (%p239) target = $region28
        $region27: #{_lambda_.9} parent=23 // pred_region
          %s242 = smul.u32 4, %s25
          %p243 = scmp.lt.s32.totalorder %s24, 1
          %s244 = scalar_select %p243, %s24, 1
          %p245 = scmp.lt.s32.totalorder %s242, 3
          %s246 = scalar_select %p245, %s242, 3
          %p247 = scmp.lt.s32.totalorder %s26, 0
          %s248 = scalar_select %p247, %s26, 0
          %s249 = sadd.s32 %s248, %s246
          %s250 = smul.addr %s244, 4
          %s251 = sadd.s32 %s249, %s250
          %s252 = smul.addr %s251, 4
          %s253 = scalar_lea.vmem %s0, %s252
          %s254 = smul.u32 4, %s25
        $region28: #{_lambda_.9} parent=23 // pred_fallthru
          _
        // Predicated region
        $region29: #{_lambda_.9} parent=23 // pred_check
          %p255 = pneg %p90
        $region30: #{_lambda_.9} parent=23 // pred_check_branch
          %257 = sbr.rel (%p255) target = $region32
        $region31: #{_lambda_.9} parent=23 // pred_region
          %s258 = sadd.s32 %s24, %s26
          %s259 = smul.u32 4, %s25
          %p260 = scmp.lt.s32.totalorder %s258, 1
          %s261 = scalar_select %p260, %s258, 1
          %p262 = scmp.lt.s32.totalorder %s259, 3
          %s263 = scalar_select %p262, %s259, 3
          %s264 = smul.addr %s261, 4
          %s265 = sadd.s32 %s263, %s264
          %s266 = smul.addr %s265, 4
          %s267 = scalar_lea.vmem %s1, %s266
          %s268 = sadd.s32 %s24, %s26
          %s269 = smul.u32 4, %s25
        $region32: #{_lambda_.9} parent=23 // pred_fallthru
          _
      $region24: #{_lambda_.9} parent=5 // pred_fallthru
        _
      %p270 = scmp.le.s32.totalorder 1, %s17
      %p271 = scmp.lt.s32.totalorder %s17, 3
      %p272 = pnand %p270, %p271
      %p273 = pneg %p272
      // Predicated region
      $region33: #{_lambda_.9} parent=5 // pred_check
        _
      $region34: #{_lambda_.9} parent=5 // pred_check_branch
        %275 = sbr.rel (%p272) target = $region36
      $region35: #{_lambda_.9} parent=5 // pred_region
        %s276 = ssub.s32 %s17, 1
        %s277 = smul.u32 4, %s28
        %p278 = scmp.lt.s32.totalorder %s27, 1
        %s279 = scalar_select %p278, %s27, 1
        %p280 = scmp.lt.s32.totalorder %s277, 3
        %s281 = scalar_select %p280, %s277, 3
        %p282 = scmp.lt.s32.totalorder %s29, 0
        %s283 = scalar_select %p282, %s29, 0
        %s284 = sadd.s32 %s283, %s281
        %s285 = smul.addr %s279, 4
        %s286 = sadd.s32 %s284, %s285
        %s287 = smul.addr %s286, 4
        %s288 = scalar_lea.vmem %s0, %s287
        %p289 = pneg %p66
        %p290 = pneg %p63
        %s291 = sadd.s32 %s27, %s29
        %s292 = smul.u32 4, %s28
        %p293 = scmp.lt.s32.totalorder %s291, 1
        %s294 = scalar_select %p293, %s291, 1
        %p295 = scmp.lt.s32.totalorder %s292, 3
        %s296 = scalar_select %p295, %s292, 3
        %s297 = smul.addr %s294, 4
        %s298 = sadd.s32 %s296, %s297
        %s299 = smul.addr %s298, 4
        %s300 = scalar_lea.vmem %s1, %s299
        %p301 = pneg %p96
        %p302 = pneg %p93
        %p303 = scmp.lt.s32.totalorder %s28, 0
        %s304 = scalar_select %p303, %s28, 0
        %s305 = scalar_lea.vmem %s2, %s304
        %p306 = pneg %p122
        %p307 = pneg %p119
        %p308 = scmp.lt.s32.totalorder %s28, 0
        %s309 = scalar_select %p308, %s28, 0
        %s310 = scalar_lea.vmem [#allocation2], %s309
        %p311 = pneg %p148
        %p312 = pneg %p145
        %p313 = pneg %p178
        %p314 = pneg %p175
        %p315 = scmp.lt.s32.totalorder %s27, 1
        %s316 = scalar_select %p315, %s27, 1
        %p317 = scmp.lt.s32.totalorder %s28, 0
        %s318 = scalar_select %p317, %s28, 0
        %p319 = scmp.lt.s32.totalorder %s29, 0
        %s320 = scalar_select %p319, %s29, 0
        %s321 = sadd.s32 %s320, %s318
        %s322 = sadd.s32 %s321, %s316
        %s323 = scalar_lea.vmem %s4, %s322
        %p324 = pneg %p208
        %p325 = pneg %p205
        %s326 = sand.u32 %s195, 1
        %s327 = scalar_lea.sflag [#allocation4], %s326
        %s328 = sand.u32 %s195, 1
        %s329 = scalar_lea.vmem [#allocation3], %s328
        %s330 = smul.u32 4, %s28
        %p331 = scmp.lt.s32.totalorder %s27, 1
        %s332 = scalar_select %p331, %s27, 1
        %p333 = scmp.lt.s32.totalorder %s330, 3
        %s334 = scalar_select %p333, %s330, 3
        %p335 = scmp.lt.s32.totalorder %s29, 0
        %s336 = scalar_select %p335, %s29, 0
        %s337 = sadd.s32 %s336, %s334
        %s338 = smul.addr %s332, 4
        %s339 = sadd.s32 %s337, %s338
        %s340 = smul.addr %s339, 4
        %s341 = scalar_lea.vmem %s0, %s340
        %s342 = smul.u32 4, %s28
        %s343 = sadd.s32 %s27, %s29
        %s344 = smul.u32 4, %s28
        %p345 = scmp.lt.s32.totalorder %s343, 1
        %s346 = scalar_select %p345, %s343, 1
        %p347 = scmp.lt.s32.totalorder %s344, 3
        %s348 = scalar_select %p347, %s344, 3
        %s349 = smul.addr %s346, 4
        %s350 = sadd.s32 %s348, %s349
        %s351 = smul.addr %s350, 4
        %s352 = scalar_lea.vmem %s1, %s351
        %s353 = sadd.s32 %s27, %s29
        %s354 = smul.u32 4, %s28
        %p355 = scmp.lt.s32.totalorder %s28, 0
        %s356 = scalar_select %p355, %s28, 0
        %s357 = scalar_lea.vmem %s2, %s356
        %p358 = scmp.lt.s32.totalorder %s28, 0
        %s359 = scalar_select %p358, %s28, 0
        %s360 = scalar_lea.vmem [#allocation2], %s359
        %p361 = scmp.lt.s32.totalorder %s27, 1
        %s362 = scalar_select %p361, %s27, 1
        %p363 = scmp.lt.s32.totalorder %s28, 0
        %s364 = scalar_select %p363, %s28, 0
        %p365 = scmp.lt.s32.totalorder %s29, 0
        %s366 = scalar_select %p365, %s29, 0
        %s367 = sadd.s32 %s366, %s364
        %s368 = sadd.s32 %s367, %s362
        %s369 = scalar_lea.vmem %s4, %s368
        %v371 = vld [vmem:[%s341] sm:$0xf]
        %v372 = vld [vmem:[%s341 + $0x4] sm:$0xf]
        %v373 = vld [vmem:[%s341 + $0x8] sm:$0xf]
        %v374 = vld [vmem:[%s341 + $0xc] sm:$0xf]
        %v375 = vld [vmem:[%s352] sm:$0xf]
        %v376 = vld [vmem:[%s352 + $0x4] sm:$0xf]
        %v377 = vld [vmem:[%s352 + $0x8] sm:$0xf]
        %v378 = vld [vmem:[%s352 + $0xc] sm:$0xf]
        %v383 = vunpack.c.l.b16 %v371
        %v384 = vunpack.c.l.b16 %v372
        %v385 = vunpack.c.l.b16 %v373
        %v386 = vunpack.c.l.b16 %v374
        %v387 = vpack.c.b16 %v384, %v383
        %v388 = vpack.c.b16 %v386, %v385
        %v395 = vunpack.c.l.b16 %v375
        %v396 = vunpack.c.l.b16 %v376
        %v397 = vunpack.c.l.b16 %v377
        %v398 = vunpack.c.l.b16 %v378
        %v399 = vpack.c.b16 %v396, %v395
        %v400 = vpack.c.b16 %v398, %v397
        %401 = vrot.lane.b32.xlu0 %v387, 127
        %v402 = vpop.permute.xlu0 %401
        %403 = vrot.lane.b32.xlu0 %v399, 127
        %v404 = vpop.permute.xlu0 %403
        %405 = vrot.lane.b32.xlu0 %v388, 127
        %v406 = vpop.permute.xlu0 %405
        %407 = vrot.lane.b32.xlu0 %v400, 127
        %v408 = vpop.permute.xlu0 %407
        %vm409 = vcmask 1039360
        %v410 = vsel %vm409, %v402, %v404
        %v411 = vsel %vm409, %v406, %v408
        %414 = vrot.lane.b32.xlu0 %v387, 126
        %v415 = vpop.permute.xlu0 %414
        %416 = vrot.lane.b32.xlu0 %v399, 126
        %v417 = vpop.permute.xlu0 %416
        %418 = vrot.lane.b32.xlu0 %v388, 126
        %v419 = vpop.permute.xlu0 %418
        %420 = vrot.lane.b32.xlu0 %v400, 126
        %v421 = vpop.permute.xlu0 %420
        %vm422 = vcmask 1031168
        %v423 = vsel %vm422, %v415, %v417
        %v424 = vsel %vm422, %v419, %v421
        %v427 = vld [vmem:[%s357] sm:$0x1]
        %v428 = vld [vmem:[%s360] sm:$0x1]
        %430 = vset.pattern.permute.xlu0 0
        %431 = vperm.xlu0 %430, %v428
        %v432 = vpop.permute.xlu0 %431
        %v434 = vlaneseq
        %v435 = vshrl.u32 %v434, 7
        %v436 = vsub.s32 0, %v435
        %v437 = vrot.slane %v432, %v436
        %vm438 = vcmask 785408
        %v440 = vsel %vm438, %v427, 0
        %442 = vmatprep.subr.bf16.mxu0 0
        %443 = vmatpush1.bf16.msra.mxu0 %v387
        %444 = vmatprep.subr.bf16.mxu0 0
        %445 = vmatpush1.bf16.msra.mxu0 %v388
        %446 = vmatprep.subr.bf16.mxu0 0
        %447 = vmatpush1.bf16.msra.mxu0 %v410
        %448 = vmatprep.subr.bf16.mxu0 0
        %449 = vmatpush1.bf16.msra.mxu0 %v411
        %450 = vmatprep.subr.bf16.mxu0 0
        %451 = vmatpush1.bf16.msra.mxu0 %v423
        %452 = vmatprep.subr.bf16.mxu0 0
        %453 = vmatpush1.bf16.msra.mxu0 %v424
        %454 = vmatprep.subr.bf16.mxu0 0
        %455 = vmatpush1.bf16.msra.mxu0 0
        %456 = vmatprep.subr.bf16.mxu0 0
        %457 = vmatpush1.bf16.msra.mxu0 0
        %458 = vmatprep.subr.bf16.mxu0 0
        %459 = vmatpush1.bf16.msra.mxu0 0
        %460 = vmatprep.subr.bf16.mxu0 0
        %461 = vmatpush1.bf16.msra.mxu0 0
        %462 = vmatprep.subr.bf16.mxu0 0
        %463 = vmatpush1.bf16.msra.mxu0 0
        %464 = vmatprep.subr.bf16.mxu0 0
        %465 = vmatpush1.bf16.msra.mxu0 0
        %466 = vmatprep.subr.bf16.mxu0 0
        %467 = vmatpush1.bf16.msra.mxu0 0
        %468 = vmatprep.subr.bf16.mxu0 0
        %469 = vmatpush1.bf16.msra.mxu0 0
        %470 = vmatprep.subr.bf16.mxu0 0
        %471 = vmatpush1.bf16.msra.mxu0 0
        %472 = vmatprep.subr.bf16.mxu0 0
        %473 = vmatpush1.bf16.msra.mxu0 0
        %474 = vmatprep.mubr.bf16.mxu0 0
        %475 = vmatmul.mubr.bf16.gmra.mrb[0].mxu0 %v440
        %v476 = vpop.f32.mrb[0].mxu0
        %v477 = vadd.f32 %v437, %v476
        %v478 = vpop.f32.mrb[0].mxu0
        %v479 = vpop.f32.mrb[0].mxu0
        %v480 = vpop.f32.mrb[0].mxu0
        %481 = vdwg.mxu0
        %482 = vst [vmem:[%s369] sm:$0x1] %v477
        %v483 = vpack.c.bf16 %v477, %v477
        %vm484 = vcmask 1040384
        %vm485 = vsmask.f32 256
        %vm486 = vmand %vm484, %vm485
        %v487 = vld [vmem:[%s329] sm:$0x1]
        %v488 = vsel %vm486, %v483, %v487
        %489 = vst [vmem:[%s329] sm:$0x1] %v488
        %p490 = scmp.lt.s32.totalorder %s27, 1
        %s491 = scalar_select %p490, %s27, 1
        %p492 = scmp.lt.s32.totalorder %s28, 0
        %s493 = scalar_select %p492, %s28, 0
        %p494 = scmp.lt.s32.totalorder %s29, 0
        %s495 = scalar_select %p494, %s29, 0
        %s496 = sadd.s32 %s495, %s493
        %s497 = sadd.s32 %s496, %s491
        %s498 = scalar_lea.vmem %s4, %s497
        %s499 = sand.u32 %s195, 1
        %s500 = scalar_lea.sflag [#allocation4], %s499
        %s501 = sand.u32 %s195, 1
        %s502 = scalar_lea.vmem [#allocation3], %s501
        // Predicated region
        $region37: #{_lambda_.9} parent=35 // pred_check
          %p503 = pneg %p175
        $region38: #{_lambda_.9} parent=35 // pred_check_branch
          %505 = sbr.rel (%p503) target = $region40
        $region39: #{_lambda_.9} parent=35 // pred_region
          _
        $region40: #{_lambda_.9} parent=35 // pred_fallthru
          _
        // Predicated region
        $region41: #{_lambda_.9} parent=35 // pred_check
          %p506 = pneg %p205
        $region42: #{_lambda_.9} parent=35 // pred_check_branch
          %508 = sbr.rel (%p506) target = $region44
        $region43: #{_lambda_.9} parent=35 // pred_region
          %s510 = ssub.s32 16, 16
          %511 = vsyncadd %s500, %s510
          %s512 = sadd.s32 %s29, %s28
          %s513 = sadd.s32 %s512, %s27
          %s514 = smul.addr %s513, 16
          %s515 = scalar_lea.hbm %s5, %s514
          %s517 = sshll.u32 %s502, 4
          %s518 = int_to_ptr.vmem [resolvable:$true] %s517
          %520 = dma.vmem_to_hbm [thread:$0]  %s518, 16, %s515, %s500
        $region44: #{_lambda_.9} parent=35 // pred_fallthru
          _
      $region36: #{_lambda_.9} parent=5 // pred_fallthru
        _
      %p521 = scmp.le.s32.totalorder 2, %s17
      // Predicated region
      $region45: #{_lambda_.9} parent=5 // pred_check
        %p522 = pneg %p521
      $region46: #{_lambda_.9} parent=5 // pred_check_branch
        %524 = sbr.rel (%p522) target = $region48
      $region47: #{_lambda_.9} parent=5 // pred_region
        %s525 = ssub.s32 %s17, 2
        // Predicated region
        $region49: #{_lambda_.9} parent=47 // pred_check
          %p526 = pneg %p181
        $region50: #{_lambda_.9} parent=47 // pred_check_branch
          %528 = sbr.rel (%p526) target = $region52
        $region51: #{_lambda_.9} parent=47 // pred_region
          %p529 = scmp.lt.s32.totalorder %s30, 1
          %s530 = scalar_select %p529, %s30, 1
          %p531 = scmp.lt.s32.totalorder %s31, 0
          %s532 = scalar_select %p531, %s31, 0
          %p533 = scmp.lt.s32.totalorder %s32, 0
          %s534 = scalar_select %p533, %s32, 0
          %s535 = sadd.s32 %s534, %s532
          %s536 = sadd.s32 %s535, %s530
          %s537 = scalar_lea.vmem %s4, %s536
        $region52: #{_lambda_.9} parent=47 // pred_fallthru
          _
        // Predicated region
        $region53: #{_lambda_.9} parent=47 // pred_check
          %p538 = pneg %p211
        $region54: #{_lambda_.9} parent=47 // pred_check_branch
          %540 = sbr.rel (%p538) target = $region56
        $region55: #{_lambda_.9} parent=47 // pred_region
          %s541 = sand.u32 %s196, 1
          %s542 = scalar_lea.sflag [#allocation4], %s541
          %s543 = sand.u32 %s196, 1
          %s544 = scalar_lea.vmem [#allocation3], %s543
          %545 = dma.done %s542, 16
        $region56: #{_lambda_.9} parent=47 // pred_fallthru
          _
      $region48: #{_lambda_.9} parent=5 // pred_fallthru
        _
    $region6: #{_lambda_.9} parent=1 // loop_footer
      %s21 = sadd.s32 1, %s17
    $region7: #{_lambda_.9} parent=1 // loop_footer_branch
      %16 = sbr.rel target = $region3
    $region8: #{_lambda_.9} parent=1 // loop_exit
      _
    %546 = vsyncpa [#allocation4], 1
    %s547 = scalar_lea.sflag [#allocation4], 1
    %548 = vsyncpa %s547, 1

</llo_original>
